<compile_context>
chip_gen: v7x
topology: tpu7x:2x2x1
jax: 0.10.0
libtpu: 0.0.40
codegen_flags: <defaults>
</compile_context>

<pallas_src>
import jax
import jax.numpy as jnp
from jax.experimental import pallas as pl
from jax.experimental.pallas import tpu as pltpu

EPS = 1e-5  # PyTorch BatchNorm1d default eps


def _vmem_limit_bytes():
    """Generation-aware scoped-VMEM budget (v5e/v6e: 128 MiB phys, v7x: 64 MiB)."""
    cap = 64 << 20
    try:
        info = pltpu.get_tpu_info()
        cap = int(getattr(info, "vmem_capacity_bytes", cap))
    except Exception:
        pass
    # Leave headroom for compiler scratch / double-buffering; clamp to sane range.
    return int(min(max(cap - (16 << 20), 32 << 20), 100 << 20))


VMEM_LIMIT = _vmem_limit_bytes()


def _bf16_dot(a, w_bf16):
    """MXU matmul: bf16 operands, f32 accumulation."""
    return jnp.dot(a.astype(jnp.bfloat16), w_bf16.astype(jnp.bfloat16),
                   preferred_element_type=jnp.float32)


# ---------------------------------------------------------------------------
# Per-point stage kernels.  grid = (bs, n_pts // TP).
#   batch axis -> "parallel"   (independent per-sample outputs/accumulators)
#   point axis -> "arbitrary"  (carries BN-stat / max-pool accumulators)
# ---------------------------------------------------------------------------
def _point_first_kernel(w_ref, b_ref, x_ref, h_ref, s_ref, ss_ref):
    """Layer 1 (Conv1d k=1, Cin=dim): VPU broadcast-FMA (no K=3 MXU matmul).
    Emits bf16 h tile + f32 per-sample BN sum / sum-of-squares."""
    x = x_ref[...]                      # (tp, dim) f32
    w = w_ref[...]                      # (dim, C1) f32
    h = b_ref[...]                      # (1, C1) -> broadcasts to (tp, C1)
    for c in range(w.shape[0]):         # dim is tiny and static
        h = h + x[:, c:c + 1] * w[c:c + 1, :]
    h = jnp.maximum(h, 0.0)
    h_ref[...] = h.astype(h_ref.dtype)  # bf16 HBM write (halves traffic)

    @pl.when(pl.program_id(1) == 0)
    def _init():
        s_ref[...] = jnp.zeros_like(s_ref)
        ss_ref[...] = jnp.zeros_like(ss_ref)

    s_ref[...] += jnp.sum(h, axis=0, keepdims=True)
    ss_ref[...] += jnp.sum(h * h, axis=0, keepdims=True)


def _point_mid_kernel(scale_ref, shift_ref, w_ref, b_ref, x_ref,
                      h_ref, s_ref, ss_ref):
    """h = relu((x*scale + shift) @ w + b); emit bf16 h tile + BN sums (f32)."""
    x = x_ref[...].astype(jnp.float32) * scale_ref[...] + shift_ref[...]
    h = jnp.maximum(_bf16_dot(x, w_ref[...]) + b_ref[...], 0.0)
    h_ref[...] = h.astype(h_ref.dtype)

    @pl.when(pl.program_id(1) == 0)
    def _init():
        s_ref[...] = jnp.zeros_like(s_ref)
        ss_ref[...] = jnp.zeros_like(ss_ref)

    s_ref[...] += jnp.sum(h, axis=0, keepdims=True)
    ss_ref[...] += jnp.sum(h * h, axis=0, keepdims=True)


def _point_final_kernel(scale_ref, shift_ref, w_ref, b_ref, x_ref,
                        s_ref, ss_ref, mx_ref, mn_ref):
    """Last per-point layer: no HBM activation write.  Emits BN sums plus the
    per-sample running max/min of the pre-BN activation (max-pool commuted
    through the monotone BN3 affine in the head kernel)."""
    x = x_ref[...].astype(jnp.float32) * scale_ref[...] + shift_ref[...]
    h = jnp.maximum(_bf16_dot(x, w_ref[...]) + b_ref[...], 0.0)

    @pl.when(pl.program_id(1) == 0)
    def _init():
        s_ref[...] = jnp.zeros_like(s_ref)
        ss_ref[...] = jnp.zeros_like(ss_ref)
        mx_ref[...] = jnp.full(mx_ref.shape, -jnp.inf, mx_ref.dtype)
        mn_ref[...] = jnp.full(mn_ref.shape, jnp.inf, mn_ref.dtype)

    s_ref[...] += jnp.sum(h, axis=0, keepdims=True)
    ss_ref[...] += jnp.sum(h * h, axis=0, keepdims=True)
    mx_ref[...] = jnp.maximum(mx_ref[...], jnp.max(h, axis=0, keepdims=True))
    mn_ref[...] = jnp.minimum(mn_ref[...], jnp.min(h, axis=0, keepdims=True))


def _const_spec(shape):
    """Whole-array input replicated across the grid."""
    return pl.BlockSpec(shape, lambda bi, j: (0,) * len(shape))


def _point_pass(kernel, inputs, in_specs, *, bs, n_pts, tp, cout,
                emit_h, emit_pool):
    grid = (bs, n_pts // tp)
    acc_spec = pl.BlockSpec((None, 1, cout), lambda bi, j: (bi, 0, 0))
    acc_shape = jax.ShapeDtypeStruct((bs, 1, cout), jnp.float32)

    out_specs, out_shape = [], []
    if emit_h:
        out_specs.append(pl.BlockSpec((None, tp, cout), lambda bi, j: (bi, j, 0)))
        out_shape.append(jax.ShapeDtypeStruct((bs, n_pts, cout), jnp.bfloat16))
    out_specs += [acc_spec, acc_spec]            # sum, sum-of-squares
    out_shape += [acc_shape, acc_shape]
    if emit_pool:
        out_specs += [acc_spec, acc_spec]        # running max, running min
        out_shape += [acc_shape, acc_shape]

    return pl.pallas_call(
        kernel,
        grid=grid,
        in_specs=in_specs,
        out_specs=out_specs,
        out_shape=out_shape,
        compiler_params=pltpu.CompilerParams(
            dimension_semantics=("parallel", "arbitrary"),
            vmem_limit_bytes=VMEM_LIMIT),
    )(*inputs)


# ---------------------------------------------------------------------------
# FC head kernel: bn3(max-pool) -> 512 -> 256 -> dim*dim (+ identity, folded).
# ---------------------------------------------------------------------------
def _head_kernel(mx_ref, mn_ref, sc3_ref, sh3_ref,
                 w4_ref, b4_ref, g4_ref, be4_ref,
                 w5_ref, b5_ref, g5_ref, be5_ref,
                 w6_ref, b6_ref, out_ref):
    sc3 = sc3_ref[...]
    sh3 = sh3_ref[...]
    # BN3 is a per-channel affine with slope sign == sign(gamma3); max over the
    # point axis commutes: max(bn3(h)) = bn3(max h) if slope>=0 else bn3(min h).
    pooled = jnp.where(sc3 >= 0.0, mx_ref[...], mn_ref[...]) * sc3 + sh3

    def bn(h, g_ref, be_ref):       # training-mode BN, one-pass batch stats
        m = jnp.mean(h, axis=0, keepdims=True)
        var = jnp.mean(h * h, axis=0, keepdims=True) - m * m
        return (h - m) * jax.lax.rsqrt(var + EPS) * g_ref[...] + be_ref[...]

    h = bn(jnp.maximum(_bf16_dot(pooled, w4_ref[...]) + b4_ref[...], 0.0),
           g4_ref, be4_ref)
    h = bn(jnp.maximum(_bf16_dot(h, w5_ref[...]) + b5_ref[...], 0.0),
           g5_ref, be5_ref)
    # identity matrix already folded into b6; output is lane-dense (128-padded).
    out_ref[...] = _bf16_dot(h, w6_ref[...]) + b6_ref[...]


# ---------------------------------------------------------------------------
# Wrapper
# ---------------------------------------------------------------------------
def _pick_point_tile(n_pts, target):
    """Largest divisor of n_pts that is <= target and sublane-friendly."""
    for d in range(min(target, n_pts), 0, -1):
        if n_pts % d == 0 and (d % 8 == 0 or d == n_pts):
            return d
    return n_pts


def _bn_scale_shift(s_part, ss_part, n_rows, g, be):
    """Fold global training-mode BN statistics into per-channel scale/shift."""
    mean = jnp.sum(s_part, axis=0) / n_rows            # (1, C)
    var = jnp.sum(ss_part, axis=0) / n_rows - mean * mean
    scale = g * jax.lax.rsqrt(var + EPS)
    shift = be - mean * scale
    return scale, shift


def tnet_forward(x_ncw, params, *, point_tile=2048):
    (w1, b1, g1, be1, w2, b2, g2, be2, w3, b3, g3, be3,
     w4, b4, g4, be4, w5, b5, g5, be5, w6, b6) = params
    bs, dim, n_pts = x_ncw.shape
    n_rows = bs * n_pts
    tp = _pick_point_tile(n_pts, point_tile)

    # Lane-dense layer-1: pad its 64 output channels to 128 (zero gamma/beta,
    # zero bias, zero extra w2 rows -> padded channels are inert).
    C1 = 128
    pad1 = C1 - w1.shape[1]
    w1p = jnp.pad(w1.astype(jnp.float32), ((0, 0), (0, pad1)))
    b1p = jnp.pad(b1, ((0, 0), (0, pad1)))
    g1p = jnp.pad(g1, ((0, 0), (0, pad1)))
    be1p = jnp.pad(be1, ((0, 0), (0, pad1)))
    w2p = jnp.pad(w2, ((0, pad1), (0, 0)))

    # Channels-last input, raw (no cin padding needed: layer 1 is VPU FMAs).
    x3d = jnp.transpose(x_ncw, (0, 2, 1)).astype(jnp.float32)     # (bs, N, dim)

    # bf16 MXU operands (f32 accumulation inside the kernels).
    w2b, w3b = w2p.astype(jnp.bfloat16), w3.astype(jnp.bfloat16)
    w4b, w5b = w4.astype(jnp.bfloat16), w5.astype(jnp.bfloat16)

    # ---- per-point stage: conv1/2/3 + ReLU; BN stats accumulated per pass --
    l1_specs = [
        _const_spec((dim, C1)),                                   # w1 (f32)
        _const_spec((1, C1)),                                     # b1
        pl.BlockSpec((None, tp, dim), lambda bi, j: (bi, j, 0)),  # x
    ]
    h1, s1, ss1 = _point_pass(_point_first_kernel, (w1p, b1p, x3d), l1_specs,
                              bs=bs, n_pts=n_pts, tp=tp, cout=C1,
                              emit_h=True, emit_pool=False)
    sc1, sh1 = _bn_scale_shift(s1, ss1, n_rows, g1p, be1p)

    l2_specs = [
        _const_spec((1, C1)), _const_spec((1, C1)),               # scale, shift
        _const_spec((C1, 128)), _const_spec((1, 128)),            # w2, b2
        pl.BlockSpec((None, tp, C1), lambda bi, j: (bi, j, 0)),   # h1 (bf16)
    ]
    h2, s2, ss2 = _point_pass(_point_mid_kernel, (sc1, sh1, w2b, b2, h1),
                              l2_specs, bs=bs, n_pts=n_pts, tp=tp, cout=128,
                              emit_h=True, emit_pool=False)
    sc2, sh2 = _bn_scale_shift(s2, ss2, n_rows, g2, be2)

    l3_specs = [
        _const_spec((1, 128)), _const_spec((1, 128)),             # scale, shift
        _const_spec((128, 1024)), _const_spec((1, 1024)),         # w3, b3
        pl.BlockSpec((None, tp, 128), lambda bi, j: (bi, j, 0)),  # h2 (bf16)
    ]
    s3, ss3, mx, mn = _point_pass(_point_final_kernel, (sc2, sh2, w3b, b3, h2),
                                  l3_specs, bs=bs, n_pts=n_pts, tp=tp,
                                  cout=1024, emit_h=False, emit_pool=True)
    sc3, sh3 = _bn_scale_shift(s3, ss3, n_rows, g3, be3)

    # ---- FC head ------------------------------------------------------------
    out_pad = max(128, ((dim * dim + 127) // 128) * 128)   # lane-dense output
    eye_flat = jnp.eye(dim, dtype=jnp.float32).reshape(1, dim * dim)
    b6p = jnp.pad(b6 + eye_flat, ((0, 0), (0, out_pad - dim * dim)))
    w6p = jnp.pad(w6, ((0, 0), (0, out_pad - dim * dim))).astype(jnp.bfloat16)

    head_in = (mx[:, 0, :], mn[:, 0, :], sc3, sh3,
               w4b, b4, g4, be4, w5b, b5, g5, be5, w6p, b6p)
    out = pl.pallas_call(
        _head_kernel,
        out_shape=jax.ShapeDtypeStruct((bs, out_pad), jnp.float32),
        in_specs=[pl.BlockSpec(memory_space=pltpu.MemorySpace.VMEM)] * len(head_in),
        out_specs=pl.BlockSpec(memory_space=pltpu.MemorySpace.VMEM),
        compiler_params=pltpu.CompilerParams(vmem_limit_bytes=VMEM_LIMIT),
    )(*head_in)
    return out[:, :dim * dim].reshape(bs, dim, dim)


# ---------------------------------------------------------------------------
# Synthetic params + pure-JAX reference (mirrors the kernel's precision:
# bf16 MXU matmuls, bf16 round-trip of the h1/h2 intermediates).
# ---------------------------------------------------------------------------
def init_params(key, dim):
    """Deterministic synthetic parameters matching TNet.__init__ shapes."""
    layer_sizes = [(dim, 64), (64, 128), (128, 1024),
                   (1024, 512), (512, 256), (256, dim * dim)]
    flat = []
    for i, (cin, cout) in enumerate(layer_sizes):
        k = jax.random.fold_in(key, i)
        kw, kb, kg, kbe = jax.random.split(k, 4)
        w = 0.1 * jax.random.normal(kw, (cin, cout), jnp.float32)   # (Cin, Cout)
        b = 0.05 * jax.random.normal(kb, (1, cout), jnp.float32)
        flat += [w, b]
        if i < 5:  # bn1..bn5 (no BN after linear3)
            g = 1.0 + 0.1 * jax.random.normal(kg, (1, cout), jnp.float32)
            be = 0.1 * jax.random.normal(kbe, (1, cout), jnp.float32)
            flat += [g, be]
    return flat


def tnet_reference(x_ncw, params):
    """Pure-JAX reference mirroring the PyTorch forward (training-mode BN) with
    the same precision choices as the kernel (bf16 matmuls / intermediates)."""
    (w1, b1, g1, be1, w2, b2, g2, be2, w3, b3, g3, be3,
     w4, b4, g4, be4, w5, b5, g5, be5, w6, b6) = params
    bs, dim, n = x_ncw.shape

    def mm(a, w):
        return jnp.dot(a.astype(jnp.bfloat16), w.astype(jnp.bfloat16),
                       preferred_element_type=jnp.float32)

    def bn_fold(h32, g, b):
        m = h32.mean(0, keepdims=True)
        v = (h32 * h32).mean(0, keepdims=True) - m * m
        scale = g * jax.lax.rsqrt(v + EPS)
        return scale, b - m * scale

    def bn(h, g, b):
        sc, sh = bn_fold(h, g, b)
        return h * sc + sh

    def rt_bf16(h):  # mirrors the kernel's bf16 HBM round-trip of h1/h2
        return h.astype(jnp.bfloat16).astype(jnp.float32)

    x = jnp.transpose(x_ncw, (0, 2, 1)).reshape(bs * n, dim).astype(jnp.float32)
    h1 = jnp.maximum(
        jnp.dot(x, w1, precision=jax.lax.Precision.HIGHEST) + b1, 0.0)
    sc1, sh1 = bn_fold(h1, g1, be1)
    h2 = jnp.maximum(mm(rt_bf16(h1) * sc1 + sh1, w2) + b2, 0.0)
    sc2, sh2 = bn_fold(h2, g2, be2)
    h3 = jnp.maximum(mm(rt_bf16(h2) * sc2 + sh2, w3) + b3, 0.0)
    h3 = bn(h3, g3, be3)
    p = h3.reshape(bs, n, 1024).max(axis=1)
    p = bn(jnp.maximum(mm(p, w4) + b4, 0.0), g4, be4)
    p = bn(jnp.maximum(mm(p, w5) + b5, 0.0), g5, be5)
    out = mm(p, w6) + b6 + jnp.eye(dim, dtype=jnp.float32).reshape(1, dim * dim)
    return out.reshape(bs, dim, dim)


if __name__ == "__main__":
    dim, num_points, bs = 3, 16, 2
    key = jax.random.PRNGKey(0)
    kx, kp = jax.random.split(key)

    x = jax.random.normal(kx, (bs, dim, num_points), jnp.float32)  # PyTorch NCW
    params = init_params(kp, dim)

    tnet = jax.jit(tnet_forward)
    out = tnet(x, params)
    jax.block_until_ready(out)

    ref = tnet_reference(x, params)
    assert out.shape == (bs, dim, dim)
    max_err = float(jnp.max(jnp.abs(out - ref)))
    assert jnp.allclose(out, ref, atol=2e-2, rtol=2e-2), f"max_err={max_err}"
    print("KERNEL_OK")
</pallas_src>

<mosaic_0001>
module attributes {stable_mosaic.version = 11 : i64} {
  func.func @_point_first_kernel(%arg0: i32, %arg1: i32, %arg2: memref<3x128xf32, #tpu.memory_space<vmem>>, %arg3: memref<1x128xf32, #tpu.memory_space<vmem>>, %arg4: memref<1x16x3xf32, #tpu.memory_space<vmem>>, %arg5: memref<1x16x128xbf16, #tpu.memory_space<vmem>>, %arg6: memref<1x1x128xf32, #tpu.memory_space<vmem>>, %arg7: memref<1x1x128xf32, #tpu.memory_space<vmem>>) attributes {dimension_semantics = [#tpu.dimension_semantics<parallel>, #tpu.dimension_semantics<arbitrary>], iteration_bounds = array<i64: 2, 1>, scalar_prefetch = 0 : i64, scratch_operands = 0 : i64, tpu.core_type = #tpu.core_type<tc>, window_params = [{pipeline_mode = #tpu.pipeline_mode<synchronous>, transform_indices = @transform_0, window_bounds = array<i64: 3, 128>}, {pipeline_mode = #tpu.pipeline_mode<synchronous>, transform_indices = @transform_1, window_bounds = array<i64: 1, 128>}, {transform_indices = @transform_2, window_bounds = array<i64: 1, 16, 3>}, {transform_indices = @transform_3, window_bounds = array<i64: 1, 16, 128>}, {transform_indices = @transform_4, window_bounds = array<i64: 1, 1, 128>}, {transform_indices = @transform_5, window_bounds = array<i64: 1, 1, 128>}]} {
    %c0 = arith.constant 0 : index
    %c0_0 = arith.constant 0 : index
    %c0_1 = arith.constant 0 : index
    %0 = vector.load %arg4[%c0, %c0_0, %c0_1] : memref<1x16x3xf32, #tpu.memory_space<vmem>>, vector<1x16x3xf32>
    %1 = vector.shape_cast %0 : vector<1x16x3xf32> to vector<16x3xf32>
    %c0_2 = arith.constant 0 : index
    %c0_3 = arith.constant 0 : index
    %2 = vector.load %arg2[%c0_2, %c0_3] : memref<3x128xf32, #tpu.memory_space<vmem>>, vector<3x128xf32>
    %c0_4 = arith.constant 0 : index
    %c0_5 = arith.constant 0 : index
    %3 = vector.load %arg3[%c0_4, %c0_5] : memref<1x128xf32, #tpu.memory_space<vmem>>, vector<1x128xf32>
    %4 = vector.extract_strided_slice %1 {offsets = [0, 0], sizes = [16, 1], strides = [1, 1]} : vector<16x3xf32> to vector<16x1xf32>
    %5 = vector.extract_strided_slice %2 {offsets = [0, 0], sizes = [1, 128], strides = [1, 1]} : vector<3x128xf32> to vector<1x128xf32>
    %6 = vector.broadcast %4 : vector<16x1xf32> to vector<16x128xf32>
    %7 = vector.broadcast %5 : vector<1x128xf32> to vector<16x128xf32>
    %8 = arith.mulf %6, %7 : vector<16x128xf32>
    %9 = vector.broadcast %3 : vector<1x128xf32> to vector<16x128xf32>
    %10 = arith.addf %9, %8 : vector<16x128xf32>
    %11 = vector.extract_strided_slice %1 {offsets = [0, 1], sizes = [16, 1], strides = [1, 1]} : vector<16x3xf32> to vector<16x1xf32>
    %12 = vector.extract_strided_slice %2 {offsets = [1, 0], sizes = [1, 128], strides = [1, 1]} : vector<3x128xf32> to vector<1x128xf32>
    %13 = vector.broadcast %11 : vector<16x1xf32> to vector<16x128xf32>
    %14 = vector.broadcast %12 : vector<1x128xf32> to vector<16x128xf32>
    %15 = arith.mulf %13, %14 : vector<16x128xf32>
    %16 = arith.addf %10, %15 : vector<16x128xf32>
    %17 = vector.extract_strided_slice %1 {offsets = [0, 2], sizes = [16, 1], strides = [1, 1]} : vector<16x3xf32> to vector<16x1xf32>
    %18 = vector.extract_strided_slice %2 {offsets = [2, 0], sizes = [1, 128], strides = [1, 1]} : vector<3x128xf32> to vector<1x128xf32>
    %19 = vector.broadcast %17 : vector<16x1xf32> to vector<16x128xf32>
    %20 = vector.broadcast %18 : vector<1x128xf32> to vector<16x128xf32>
    %21 = arith.mulf %19, %20 : vector<16x128xf32>
    %22 = arith.addf %16, %21 : vector<16x128xf32>
    %cst = arith.constant 0.000000e+00 : f32
    %23 = vector.broadcast %cst : f32 to vector<16x128xf32>
    %24 = arith.maximumf %22, %23 : vector<16x128xf32>
    %25 = arith.truncf %24 : vector<16x128xf32> to vector<16x128xbf16>
    %c0_6 = arith.constant 0 : index
    %c0_7 = arith.constant 0 : index
    %c0_8 = arith.constant 0 : index
    %26 = vector.load %arg5[%c0_6, %c0_7, %c0_8] : memref<1x16x128xbf16, #tpu.memory_space<vmem>>, vector<1x16x128xbf16>
    %27 = vector.shape_cast %26 : vector<1x16x128xbf16> to vector<16x128xbf16>
    %28 = vector.shape_cast %25 : vector<16x128xbf16> to vector<1x16x128xbf16>
    tpu.vector_store %arg5[%c0_6, %c0_7, %c0_8], %28 {strides = array<i32>} : memref<1x16x128xbf16, #tpu.memory_space<vmem>>, vector<1x16x128xbf16>,
    %c0_i32 = arith.constant 0 : i32
    %29 = arith.cmpi eq, %arg1, %c0_i32 : i32
    %30 = arith.extui %29 : i1 to i32
    %c0_i32_9 = arith.constant 0 : i32
    %31 = arith.cmpi ne, %30, %c0_i32_9 : i32
    scf.if %31 {
      %cst_24 = arith.constant 0.000000e+00 : f32
      %49 = vector.broadcast %cst_24 : f32 to vector<1x128xf32>
      %c0_25 = arith.constant 0 : index
      %c0_26 = arith.constant 0 : index
      %c0_27 = arith.constant 0 : index
      %50 = vector.load %arg6[%c0_25, %c0_26, %c0_27] : memref<1x1x128xf32, #tpu.memory_space<vmem>>, vector<1x1x128xf32>
      %51 = vector.shape_cast %50 : vector<1x1x128xf32> to vector<1x128xf32>
      %52 = vector.shape_cast %49 : vector<1x128xf32> to vector<1x1x128xf32>
      tpu.vector_store %arg6[%c0_25, %c0_26, %c0_27], %52 {strides = array<i32>} : memref<1x1x128xf32, #tpu.memory_space<vmem>>, vector<1x1x128xf32>,
      %cst_28 = arith.constant 0.000000e+00 : f32
      %53 = vector.broadcast %cst_28 : f32 to vector<1x128xf32>
      %c0_29 = arith.constant 0 : index
      %c0_30 = arith.constant 0 : index
      %c0_31 = arith.constant 0 : index
      %54 = vector.load %arg7[%c0_29, %c0_30, %c0_31] : memref<1x1x128xf32, #tpu.memory_space<vmem>>, vector<1x1x128xf32>
      %55 = vector.shape_cast %54 : vector<1x1x128xf32> to vector<1x128xf32>
      %56 = vector.shape_cast %53 : vector<1x128xf32> to vector<1x1x128xf32>
      tpu.vector_store %arg7[%c0_29, %c0_30, %c0_31], %56 {strides = array<i32>} : memref<1x1x128xf32, #tpu.memory_space<vmem>>, vector<1x1x128xf32>,
    } else {
    }
    %c0_10 = arith.constant 0 : index
    %c0_11 = arith.constant 0 : index
    %c0_12 = arith.constant 0 : index
    %32 = vector.load %arg6[%c0_10, %c0_11, %c0_12] : memref<1x1x128xf32, #tpu.memory_space<vmem>>, vector<1x1x128xf32>
    %33 = vector.shape_cast %32 : vector<1x1x128xf32> to vector<1x128xf32>
    %cst_13 = arith.constant dense<0.000000e+00> : vector<128xf32>
    %34 = vector.multi_reduction <add>, %24, %cst_13 [0] : vector<16x128xf32> to vector<128xf32>
    %35 = vector.shape_cast %34 : vector<128xf32> to vector<1x128xf32>
    %36 = arith.addf %33, %35 : vector<1x128xf32>
    %c0_14 = arith.constant 0 : index
    %c0_15 = arith.constant 0 : index
    %c0_16 = arith.constant 0 : index
    %37 = vector.load %arg6[%c0_14, %c0_15, %c0_16] : memref<1x1x128xf32, #tpu.memory_space<vmem>>, vector<1x1x128xf32>
    %38 = vector.shape_cast %37 : vector<1x1x128xf32> to vector<1x128xf32>
    %39 = vector.shape_cast %36 : vector<1x128xf32> to vector<1x1x128xf32>
    tpu.vector_store %arg6[%c0_14, %c0_15, %c0_16], %39 {strides = array<i32>} : memref<1x1x128xf32, #tpu.memory_space<vmem>>, vector<1x1x128xf32>,
    %c0_17 = arith.constant 0 : index
    %c0_18 = arith.constant 0 : index
    %c0_19 = arith.constant 0 : index
    %40 = vector.load %arg7[%c0_17, %c0_18, %c0_19] : memref<1x1x128xf32, #tpu.memory_space<vmem>>, vector<1x1x128xf32>
    %41 = vector.shape_cast %40 : vector<1x1x128xf32> to vector<1x128xf32>
    %42 = arith.mulf %24, %24 : vector<16x128xf32>
    %cst_20 = arith.constant dense<0.000000e+00> : vector<128xf32>
    %43 = vector.multi_reduction <add>, %42, %cst_20 [0] : vector<16x128xf32> to vector<128xf32>
    %44 = vector.shape_cast %43 : vector<128xf32> to vector<1x128xf32>
    %45 = arith.addf %41, %44 : vector<1x128xf32>
    %c0_21 = arith.constant 0 : index
    %c0_22 = arith.constant 0 : index
    %c0_23 = arith.constant 0 : index
    %46 = vector.load %arg7[%c0_21, %c0_22, %c0_23] : memref<1x1x128xf32, #tpu.memory_space<vmem>>, vector<1x1x128xf32>
    %47 = vector.shape_cast %46 : vector<1x1x128xf32> to vector<1x128xf32>
    %48 = vector.shape_cast %45 : vector<1x128xf32> to vector<1x1x128xf32>
    tpu.vector_store %arg7[%c0_21, %c0_22, %c0_23], %48 {strides = array<i32>} : memref<1x1x128xf32, #tpu.memory_space<vmem>>, vector<1x1x128xf32>,
    return
  }
  func.func @transform_0(%arg0: i32, %arg1: i32) -> (i32, i32) {
    %c0_i32 = arith.constant 0 : i32
    %c0_i32_0 = arith.constant 0 : i32
    %c0_i32_1 = arith.constant 0 : i32
    return %c0_i32, %c0_i32_0 : i32, i32
  }
  func.func @transform_1(%arg0: i32, %arg1: i32) -> (i32, i32) {
    %c0_i32 = arith.constant 0 : i32
    %c0_i32_0 = arith.constant 0 : i32
    %c0_i32_1 = arith.constant 0 : i32
    return %c0_i32, %c0_i32_0 : i32, i32
  }
  func.func @transform_2(%arg0: i32, %arg1: i32) -> (i32, i32, i32) {
    %c0_i32 = arith.constant 0 : i32
    %c0_i32_0 = arith.constant 0 : i32
    return %arg0, %arg1, %c0_i32 : i32, i32, i32
  }
  func.func @transform_3(%arg0: i32, %arg1: i32) -> (i32, i32, i32) {
    %c0_i32 = arith.constant 0 : i32
    %c0_i32_0 = arith.constant 0 : i32
    return %arg0, %arg1, %c0_i32 : i32, i32, i32
  }
  func.func @transform_4(%arg0: i32, %arg1: i32) -> (i32, i32, i32) {
    %c0_i32 = arith.constant 0 : i32
    %c0_i32_0 = arith.constant 0 : i32
    %c0_i32_1 = arith.constant 0 : i32
    return %arg0, %c0_i32, %c0_i32_0 : i32, i32, i32
  }
  func.func @transform_5(%arg0: i32, %arg1: i32) -> (i32, i32, i32) {
    %c0_i32 = arith.constant 0 : i32
    %c0_i32_0 = arith.constant 0 : i32
    %c0_i32_1 = arith.constant 0 : i32
    return %arg0, %c0_i32, %c0_i32_0 : i32, i32, i32
  }
}

module attributes {stable_mosaic.version = 11 : i64} {
  func.func @_point_mid_kernel(%arg0: i32, %arg1: i32, %arg2: memref<1x128xf32, #tpu.memory_space<vmem>>, %arg3: memref<1x128xf32, #tpu.memory_space<vmem>>, %arg4: memref<128x128xbf16, #tpu.memory_space<vmem>>, %arg5: memref<1x128xf32, #tpu.memory_space<vmem>>, %arg6: memref<1x16x128xbf16, #tpu.memory_space<vmem>>, %arg7: memref<1x16x128xbf16, #tpu.memory_space<vmem>>, %arg8: memref<1x1x128xf32, #tpu.memory_space<vmem>>, %arg9: memref<1x1x128xf32, #tpu.memory_space<vmem>>) attributes {dimension_semantics = [#tpu.dimension_semantics<parallel>, #tpu.dimension_semantics<arbitrary>], iteration_bounds = array<i64: 2, 1>, scalar_prefetch = 0 : i64, scratch_operands = 0 : i64, tpu.core_type = #tpu.core_type<tc>, window_params = [{pipeline_mode = #tpu.pipeline_mode<synchronous>, transform_indices = @transform_0, window_bounds = array<i64: 1, 128>}, {pipeline_mode = #tpu.pipeline_mode<synchronous>, transform_indices = @transform_1, window_bounds = array<i64: 1, 128>}, {pipeline_mode = #tpu.pipeline_mode<synchronous>, transform_indices = @transform_2, window_bounds = array<i64: 128, 128>}, {pipeline_mode = #tpu.pipeline_mode<synchronous>, transform_indices = @transform_3, window_bounds = array<i64: 1, 128>}, {transform_indices = @transform_4, window_bounds = array<i64: 1, 16, 128>}, {transform_indices = @transform_5, window_bounds = array<i64: 1, 16, 128>}, {transform_indices = @transform_6, window_bounds = array<i64: 1, 1, 128>}, {transform_indices = @transform_7, window_bounds = array<i64: 1, 1, 128>}]} {
    %c0 = arith.constant 0 : index
    %c0_0 = arith.constant 0 : index
    %c0_1 = arith.constant 0 : index
    %0 = vector.load %arg6[%c0, %c0_0, %c0_1] : memref<1x16x128xbf16, #tpu.memory_space<vmem>>, vector<1x16x128xbf16>
    %1 = vector.shape_cast %0 : vector<1x16x128xbf16> to vector<16x128xbf16>
    %2 = arith.extf %1 : vector<16x128xbf16> to vector<16x128xf32>
    %c0_2 = arith.constant 0 : index
    %c0_3 = arith.constant 0 : index
    %3 = vector.load %arg2[%c0_2, %c0_3] : memref<1x128xf32, #tpu.memory_space<vmem>>, vector<1x128xf32>
    %4 = vector.broadcast %3 : vector<1x128xf32> to vector<16x128xf32>
    %5 = arith.mulf %2, %4 : vector<16x128xf32>
    %c0_4 = arith.constant 0 : index
    %c0_5 = arith.constant 0 : index
    %6 = vector.load %arg3[%c0_4, %c0_5] : memref<1x128xf32, #tpu.memory_space<vmem>>, vector<1x128xf32>
    %7 = vector.broadcast %6 : vector<1x128xf32> to vector<16x128xf32>
    %8 = arith.addf %5, %7 : vector<16x128xf32>
    %c0_6 = arith.constant 0 : index
    %c0_7 = arith.constant 0 : index
    %9 = vector.load %arg4[%c0_6, %c0_7] : memref<128x128xbf16, #tpu.memory_space<vmem>>, vector<128x128xbf16>
    %10 = arith.truncf %8 : vector<16x128xf32> to vector<16x128xbf16>
    %cst = arith.constant dense<0.000000e+00> : vector<16x128xf32>
    %11 = tpu.matmul %10, %9, %cst {dimension_numbers = #tpu.dot_dimension_numbers<[1], [0], [0], [1], [0, 0, 1, 1], [], []>} : vector<16x128xbf16>, vector<128x128xbf16>, vector<16x128xf32> -> vector<16x128xf32>
    %c0_8 = arith.constant 0 : index
    %c0_9 = arith.constant 0 : index
    %12 = vector.load %arg5[%c0_8, %c0_9] : memref<1x128xf32, #tpu.memory_space<vmem>>, vector<1x128xf32>
    %13 = vector.broadcast %12 : vector<1x128xf32> to vector<16x128xf32>
    %14 = arith.addf %11, %13 : vector<16x128xf32>
    %cst_10 = arith.constant 0.000000e+00 : f32
    %15 = vector.broadcast %cst_10 : f32 to vector<16x128xf32>
    %16 = arith.maximumf %14, %15 : vector<16x128xf32>
    %17 = arith.truncf %16 : vector<16x128xf32> to vector<16x128xbf16>
    %c0_11 = arith.constant 0 : index
    %c0_12 = arith.constant 0 : index
    %c0_13 = arith.constant 0 : index
    %18 = vector.load %arg7[%c0_11, %c0_12, %c0_13] : memref<1x16x128xbf16, #tpu.memory_space<vmem>>, vector<1x16x128xbf16>
    %19 = vector.shape_cast %18 : vector<1x16x128xbf16> to vector<16x128xbf16>
    %20 = vector.shape_cast %17 : vector<16x128xbf16> to vector<1x16x128xbf16>
    tpu.vector_store %arg7[%c0_11, %c0_12, %c0_13], %20 {strides = array<i32>} : memref<1x16x128xbf16, #tpu.memory_space<vmem>>, vector<1x16x128xbf16>,
    %c0_i32 = arith.constant 0 : i32
    %21 = arith.cmpi eq, %arg1, %c0_i32 : i32
    %22 = arith.extui %21 : i1 to i32
    %c0_i32_14 = arith.constant 0 : i32
    %23 = arith.cmpi ne, %22, %c0_i32_14 : i32
    scf.if %23 {
      %cst_29 = arith.constant 0.000000e+00 : f32
      %41 = vector.broadcast %cst_29 : f32 to vector<1x128xf32>
      %c0_30 = arith.constant 0 : index
      %c0_31 = arith.constant 0 : index
      %c0_32 = arith.constant 0 : index
      %42 = vector.load %arg8[%c0_30, %c0_31, %c0_32] : memref<1x1x128xf32, #tpu.memory_space<vmem>>, vector<1x1x128xf32>
      %43 = vector.shape_cast %42 : vector<1x1x128xf32> to vector<1x128xf32>
      %44 = vector.shape_cast %41 : vector<1x128xf32> to vector<1x1x128xf32>
      tpu.vector_store %arg8[%c0_30, %c0_31, %c0_32], %44 {strides = array<i32>} : memref<1x1x128xf32, #tpu.memory_space<vmem>>, vector<1x1x128xf32>,
      %cst_33 = arith.constant 0.000000e+00 : f32
      %45 = vector.broadcast %cst_33 : f32 to vector<1x128xf32>
      %c0_34 = arith.constant 0 : index
      %c0_35 = arith.constant 0 : index
      %c0_36 = arith.constant 0 : index
      %46 = vector.load %arg9[%c0_34, %c0_35, %c0_36] : memref<1x1x128xf32, #tpu.memory_space<vmem>>, vector<1x1x128xf32>
      %47 = vector.shape_cast %46 : vector<1x1x128xf32> to vector<1x128xf32>
      %48 = vector.shape_cast %45 : vector<1x128xf32> to vector<1x1x128xf32>
      tpu.vector_store %arg9[%c0_34, %c0_35, %c0_36], %48 {strides = array<i32>} : memref<1x1x128xf32, #tpu.memory_space<vmem>>, vector<1x1x128xf32>,
    } else {
    }
    %c0_15 = arith.constant 0 : index
    %c0_16 = arith.constant 0 : index
    %c0_17 = arith.constant 0 : index
    %24 = vector.load %arg8[%c0_15, %c0_16, %c0_17] : memref<1x1x128xf32, #tpu.memory_space<vmem>>, vector<1x1x128xf32>
    %25 = vector.shape_cast %24 : vector<1x1x128xf32> to vector<1x128xf32>
    %cst_18 = arith.constant dense<0.000000e+00> : vector<128xf32>
    %26 = vector.multi_reduction <add>, %16, %cst_18 [0] : vector<16x128xf32> to vector<128xf32>
    %27 = vector.shape_cast %26 : vector<128xf32> to vector<1x128xf32>
    %28 = arith.addf %25, %27 : vector<1x128xf32>
    %c0_19 = arith.constant 0 : index
    %c0_20 = arith.constant 0 : index
    %c0_21 = arith.constant 0 : index
    %29 = vector.load %arg8[%c0_19, %c0_20, %c0_21] : memref<1x1x128xf32, #tpu.memory_space<vmem>>, vector<1x1x128xf32>
    %30 = vector.shape_cast %29 : vector<1x1x128xf32> to vector<1x128xf32>
    %31 = vector.shape_cast %28 : vector<1x128xf32> to vector<1x1x128xf32>
    tpu.vector_store %arg8[%c0_19, %c0_20, %c0_21], %31 {strides = array<i32>} : memref<1x1x128xf32, #tpu.memory_space<vmem>>, vector<1x1x128xf32>,
    %c0_22 = arith.constant 0 : index
    %c0_23 = arith.constant 0 : index
    %c0_24 = arith.constant 0 : index
    %32 = vector.load %arg9[%c0_22, %c0_23, %c0_24] : memref<1x1x128xf32, #tpu.memory_space<vmem>>, vector<1x1x128xf32>
    %33 = vector.shape_cast %32 : vector<1x1x128xf32> to vector<1x128xf32>
    %34 = arith.mulf %16, %16 : vector<16x128xf32>
    %cst_25 = arith.constant dense<0.000000e+00> : vector<128xf32>
    %35 = vector.multi_reduction <add>, %34, %cst_25 [0] : vector<16x128xf32> to vector<128xf32>
    %36 = vector.shape_cast %35 : vector<128xf32> to vector<1x128xf32>
    %37 = arith.addf %33, %36 : vector<1x128xf32>
    %c0_26 = arith.constant 0 : index
    %c0_27 = arith.constant 0 : index
    %c0_28 = arith.constant 0 : index
    %38 = vector.load %arg9[%c0_26, %c0_27, %c0_28] : memref<1x1x128xf32, #tpu.memory_space<vmem>>, vector<1x1x128xf32>
    %39 = vector.shape_cast %38 : vector<1x1x128xf32> to vector<1x128xf32>
    %40 = vector.shape_cast %37 : vector<1x128xf32> to vector<1x1x128xf32>
    tpu.vector_store %arg9[%c0_26, %c0_27, %c0_28], %40 {strides = array<i32>} : memref<1x1x128xf32, #tpu.memory_space<vmem>>, vector<1x1x128xf32>,
    return
  }
  func.func @transform_0(%arg0: i32, %arg1: i32) -> (i32, i32) {
    %c0_i32 = arith.constant 0 : i32
    %c0_i32_0 = arith.constant 0 : i32
    %c0_i32_1 = arith.constant 0 : i32
    return %c0_i32, %c0_i32_0 : i32, i32
  }
  func.func @transform_1(%arg0: i32, %arg1: i32) -> (i32, i32) {
    %c0_i32 = arith.constant 0 : i32
    %c0_i32_0 = arith.constant 0 : i32
    %c0_i32_1 = arith.constant 0 : i32
    return %c0_i32, %c0_i32_0 : i32, i32
  }
  func.func @transform_2(%arg0: i32, %arg1: i32) -> (i32, i32) {
    %c0_i32 = arith.constant 0 : i32
    %c0_i32_0 = arith.constant 0 : i32
    %c0_i32_1 = arith.constant 0 : i32
    return %c0_i32, %c0_i32_0 : i32, i32
  }
  func.func @transform_3(%arg0: i32, %arg1: i32) -> (i32, i32) {
    %c0_i32 = arith.constant 0 : i32
    %c0_i32_0 = arith.constant 0 : i32
    %c0_i32_1 = arith.constant 0 : i32
    return %c0_i32, %c0_i32_0 : i32, i32
  }
  func.func @transform_4(%arg0: i32, %arg1: i32) -> (i32, i32, i32) {
    %c0_i32 = arith.constant 0 : i32
    %c0_i32_0 = arith.constant 0 : i32
    return %arg0, %arg1, %c0_i32 : i32, i32, i32
  }
  func.func @transform_5(%arg0: i32, %arg1: i32) -> (i32, i32, i32) {
    %c0_i32 = arith.constant 0 : i32
    %c0_i32_0 = arith.constant 0 : i32
    return %arg0, %arg1, %c0_i32 : i32, i32, i32
  }
  func.func @transform_6(%arg0: i32, %arg1: i32) -> (i32, i32, i32) {
    %c0_i32 = arith.constant 0 : i32
    %c0_i32_0 = arith.constant 0 : i32
    %c0_i32_1 = arith.constant 0 : i32
    return %arg0, %c0_i32, %c0_i32_0 : i32, i32, i32
  }
  func.func @transform_7(%arg0: i32, %arg1: i32) -> (i32, i32, i32) {
    %c0_i32 = arith.constant 0 : i32
    %c0_i32_0 = arith.constant 0 : i32
    %c0_i32_1 = arith.constant 0 : i32
    return %arg0, %c0_i32, %c0_i32_0 : i32, i32, i32
  }
}

module attributes {stable_mosaic.version = 11 : i64} {
  func.func @_point_final_kernel(%arg0: i32, %arg1: i32, %arg2: memref<1x128xf32, #tpu.memory_space<vmem>>, %arg3: memref<1x128xf32, #tpu.memory_space<vmem>>, %arg4: memref<128x1024xbf16, #tpu.memory_space<vmem>>, %arg5: memref<1x1024xf32, #tpu.memory_space<vmem>>, %arg6: memref<1x16x128xbf16, #tpu.memory_space<vmem>>, %arg7: memref<1x1x1024xf32, #tpu.memory_space<vmem>>, %arg8: memref<1x1x1024xf32, #tpu.memory_space<vmem>>, %arg9: memref<1x1x1024xf32, #tpu.memory_space<vmem>>, %arg10: memref<1x1x1024xf32, #tpu.memory_space<vmem>>) attributes {dimension_semantics = [#tpu.dimension_semantics<parallel>, #tpu.dimension_semantics<arbitrary>], iteration_bounds = array<i64: 2, 1>, scalar_prefetch = 0 : i64, scratch_operands = 0 : i64, tpu.core_type = #tpu.core_type<tc>, window_params = [{pipeline_mode = #tpu.pipeline_mode<synchronous>, transform_indices = @transform_0, window_bounds = array<i64: 1, 128>}, {pipeline_mode = #tpu.pipeline_mode<synchronous>, transform_indices = @transform_1, window_bounds = array<i64: 1, 128>}, {pipeline_mode = #tpu.pipeline_mode<synchronous>, transform_indices = @transform_2, window_bounds = array<i64: 128, 1024>}, {pipeline_mode = #tpu.pipeline_mode<synchronous>, transform_indices = @transform_3, window_bounds = array<i64: 1, 1024>}, {transform_indices = @transform_4, window_bounds = array<i64: 1, 16, 128>}, {transform_indices = @transform_5, window_bounds = array<i64: 1, 1, 1024>}, {transform_indices = @transform_6, window_bounds = array<i64: 1, 1, 1024>}, {transform_indices = @transform_7, window_bounds = array<i64: 1, 1, 1024>}, {transform_indices = @transform_8, window_bounds = array<i64: 1, 1, 1024>}]} {
    %c0 = arith.constant 0 : index
    %c0_0 = arith.constant 0 : index
    %c0_1 = arith.constant 0 : index
    %0 = vector.load %arg6[%c0, %c0_0, %c0_1] : memref<1x16x128xbf16, #tpu.memory_space<vmem>>, vector<1x16x128xbf16>
    %1 = vector.shape_cast %0 : vector<1x16x128xbf16> to vector<16x128xbf16>
    %2 = arith.extf %1 : vector<16x128xbf16> to vector<16x128xf32>
    %c0_2 = arith.constant 0 : index
    %c0_3 = arith.constant 0 : index
    %3 = vector.load %arg2[%c0_2, %c0_3] : memref<1x128xf32, #tpu.memory_space<vmem>>, vector<1x128xf32>
    %4 = vector.broadcast %3 : vector<1x128xf32> to vector<16x128xf32>
    %5 = arith.mulf %2, %4 : vector<16x128xf32>
    %c0_4 = arith.constant 0 : index
    %c0_5 = arith.constant 0 : index
    %6 = vector.load %arg3[%c0_4, %c0_5] : memref<1x128xf32, #tpu.memory_space<vmem>>, vector<1x128xf32>
    %7 = vector.broadcast %6 : vector<1x128xf32> to vector<16x128xf32>
    %8 = arith.addf %5, %7 : vector<16x128xf32>
    %c0_6 = arith.constant 0 : index
    %c0_7 = arith.constant 0 : index
    %9 = vector.load %arg4[%c0_6, %c0_7] : memref<128x1024xbf16, #tpu.memory_space<vmem>>, vector<128x1024xbf16>
    %10 = arith.truncf %8 : vector<16x128xf32> to vector<16x128xbf16>
    %cst = arith.constant dense<0.000000e+00> : vector<16x1024xf32>
    %11 = tpu.matmul %10, %9, %cst {dimension_numbers = #tpu.dot_dimension_numbers<[1], [0], [0], [1], [0, 0, 1, 1], [], []>} : vector<16x128xbf16>, vector<128x1024xbf16>, vector<16x1024xf32> -> vector<16x1024xf32>
    %c0_8 = arith.constant 0 : index
    %c0_9 = arith.constant 0 : index
    %12 = vector.load %arg5[%c0_8, %c0_9] : memref<1x1024xf32, #tpu.memory_space<vmem>>, vector<1x1024xf32>
    %13 = vector.broadcast %12 : vector<1x1024xf32> to vector<16x1024xf32>
    %14 = arith.addf %11, %13 : vector<16x1024xf32>
    %cst_10 = arith.constant 0.000000e+00 : f32
    %15 = vector.broadcast %cst_10 : f32 to vector<16x1024xf32>
    %16 = arith.maximumf %14, %15 : vector<16x1024xf32>
    %c0_i32 = arith.constant 0 : i32
    %17 = arith.cmpi eq, %arg1, %c0_i32 : i32
    %18 = arith.extui %17 : i1 to i32
    %c0_i32_11 = arith.constant 0 : i32
    %19 = arith.cmpi ne, %18, %c0_i32_11 : i32
    scf.if %19 {
      %cst_40 = arith.constant 0.000000e+00 : f32
      %53 = vector.broadcast %cst_40 : f32 to vector<1x1024xf32>
      %c0_41 = arith.constant 0 : index
      %c0_42 = arith.constant 0 : index
      %c0_43 = arith.constant 0 : index
      %54 = vector.load %arg7[%c0_41, %c0_42, %c0_43] : memref<1x1x1024xf32, #tpu.memory_space<vmem>>, vector<1x1x1024xf32>
      %55 = vector.shape_cast %54 : vector<1x1x1024xf32> to vector<1x1024xf32>
      %56 = vector.shape_cast %53 : vector<1x1024xf32> to vector<1x1x1024xf32>
      tpu.vector_store %arg7[%c0_41, %c0_42, %c0_43], %56 {strides = array<i32>} : memref<1x1x1024xf32, #tpu.memory_space<vmem>>, vector<1x1x1024xf32>,
      %cst_44 = arith.constant 0.000000e+00 : f32
      %57 = vector.broadcast %cst_44 : f32 to vector<1x1024xf32>
      %c0_45 = arith.constant 0 : index
      %c0_46 = arith.constant 0 : index
      %c0_47 = arith.constant 0 : index
      %58 = vector.load %arg8[%c0_45, %c0_46, %c0_47] : memref<1x1x1024xf32, #tpu.memory_space<vmem>>, vector<1x1x1024xf32>
      %59 = vector.shape_cast %58 : vector<1x1x1024xf32> to vector<1x1024xf32>
      %60 = vector.shape_cast %57 : vector<1x1024xf32> to vector<1x1x1024xf32>
      tpu.vector_store %arg8[%c0_45, %c0_46, %c0_47], %60 {strides = array<i32>} : memref<1x1x1024xf32, #tpu.memory_space<vmem>>, vector<1x1x1024xf32>,
      %cst_48 = arith.constant 0xFF800000 : f32
      %61 = vector.broadcast %cst_48 : f32 to vector<1x1024xf32>
      %c0_49 = arith.constant 0 : index
      %c0_50 = arith.constant 0 : index
      %c0_51 = arith.constant 0 : index
      %62 = vector.load %arg9[%c0_49, %c0_50, %c0_51] : memref<1x1x1024xf32, #tpu.memory_space<vmem>>, vector<1x1x1024xf32>
      %63 = vector.shape_cast %62 : vector<1x1x1024xf32> to vector<1x1024xf32>
      %64 = vector.shape_cast %61 : vector<1x1024xf32> to vector<1x1x1024xf32>
      tpu.vector_store %arg9[%c0_49, %c0_50, %c0_51], %64 {strides = array<i32>} : memref<1x1x1024xf32, #tpu.memory_space<vmem>>, vector<1x1x1024xf32>,
      %cst_52 = arith.constant 0x7F800000 : f32
      %65 = vector.broadcast %cst_52 : f32 to vector<1x1024xf32>
      %c0_53 = arith.constant 0 : index
      %c0_54 = arith.constant 0 : index
      %c0_55 = arith.constant 0 : index
      %66 = vector.load %arg10[%c0_53, %c0_54, %c0_55] : memref<1x1x1024xf32, #tpu.memory_space<vmem>>, vector<1x1x1024xf32>
      %67 = vector.shape_cast %66 : vector<1x1x1024xf32> to vector<1x1024xf32>
      %68 = vector.shape_cast %65 : vector<1x1024xf32> to vector<1x1x1024xf32>
      tpu.vector_store %arg10[%c0_53, %c0_54, %c0_55], %68 {strides = array<i32>} : memref<1x1x1024xf32, #tpu.memory_space<vmem>>, vector<1x1x1024xf32>,
    } else {
    }
    %c0_12 = arith.constant 0 : index
    %c0_13 = arith.constant 0 : index
    %c0_14 = arith.constant 0 : index
    %20 = vector.load %arg7[%c0_12, %c0_13, %c0_14] : memref<1x1x1024xf32, #tpu.memory_space<vmem>>, vector<1x1x1024xf32>
    %21 = vector.shape_cast %20 : vector<1x1x1024xf32> to vector<1x1024xf32>
    %cst_15 = arith.constant dense<0.000000e+00> : vector<1024xf32>
    %22 = vector.multi_reduction <add>, %16, %cst_15 [0] : vector<16x1024xf32> to vector<1024xf32>
    %23 = vector.shape_cast %22 : vector<1024xf32> to vector<1x1024xf32>
    %24 = arith.addf %21, %23 : vector<1x1024xf32>
    %c0_16 = arith.constant 0 : index
    %c0_17 = arith.constant 0 : index
    %c0_18 = arith.constant 0 : index
    %25 = vector.load %arg7[%c0_16, %c0_17, %c0_18] : memref<1x1x1024xf32, #tpu.memory_space<vmem>>, vector<1x1x1024xf32>
    %26 = vector.shape_cast %25 : vector<1x1x1024xf32> to vector<1x1024xf32>
    %27 = vector.shape_cast %24 : vector<1x1024xf32> to vector<1x1x1024xf32>
    tpu.vector_store %arg7[%c0_16, %c0_17, %c0_18], %27 {strides = array<i32>} : memref<1x1x1024xf32, #tpu.memory_space<vmem>>, vector<1x1x1024xf32>,
    %c0_19 = arith.constant 0 : index
    %c0_20 = arith.constant 0 : index
    %c0_21 = arith.constant 0 : index
    %28 = vector.load %arg8[%c0_19, %c0_20, %c0_21] : memref<1x1x1024xf32, #tpu.memory_space<vmem>>, vector<1x1x1024xf32>
    %29 = vector.shape_cast %28 : vector<1x1x1024xf32> to vector<1x1024xf32>
    %30 = arith.mulf %16, %16 : vector<16x1024xf32>
    %cst_22 = arith.constant dense<0.000000e+00> : vector<1024xf32>
    %31 = vector.multi_reduction <add>, %30, %cst_22 [0] : vector<16x1024xf32> to vector<1024xf32>
    %32 = vector.shape_cast %31 : vector<1024xf32> to vector<1x1024xf32>
    %33 = arith.addf %29, %32 : vector<1x1024xf32>
    %c0_23 = arith.constant 0 : index
    %c0_24 = arith.constant 0 : index
    %c0_25 = arith.constant 0 : index
    %34 = vector.load %arg8[%c0_23, %c0_24, %c0_25] : memref<1x1x1024xf32, #tpu.memory_space<vmem>>, vector<1x1x1024xf32>
    %35 = vector.shape_cast %34 : vector<1x1x1024xf32> to vector<1x1024xf32>
    %36 = vector.shape_cast %33 : vector<1x1024xf32> to vector<1x1x1024xf32>
    tpu.vector_store %arg8[%c0_23, %c0_24, %c0_25], %36 {strides = array<i32>} : memref<1x1x1024xf32, #tpu.memory_space<vmem>>, vector<1x1x1024xf32>,
    %c0_26 = arith.constant 0 : index
    %c0_27 = arith.constant 0 : index
    %c0_28 = arith.constant 0 : index
    %37 = vector.load %arg9[%c0_26, %c0_27, %c0_28] : memref<1x1x1024xf32, #tpu.memory_space<vmem>>, vector<1x1x1024xf32>
    %38 = vector.shape_cast %37 : vector<1x1x1024xf32> to vector<1x1024xf32>
    %cst_29 = arith.constant dense<0xFF800000> : vector<1024xf32>
    %39 = vector.multi_reduction <maximumf>, %16, %cst_29 [0] : vector<16x1024xf32> to vector<1024xf32>
    %40 = vector.shape_cast %39 : vector<1024xf32> to vector<1x1024xf32>
    %41 = arith.maximumf %38, %40 : vector<1x1024xf32>
    %c0_30 = arith.constant 0 : index
    %c0_31 = arith.constant 0 : index
    %c0_32 = arith.constant 0 : index
    %42 = vector.load %arg9[%c0_30, %c0_31, %c0_32] : memref<1x1x1024xf32, #tpu.memory_space<vmem>>, vector<1x1x1024xf32>
    %43 = vector.shape_cast %42 : vector<1x1x1024xf32> to vector<1x1024xf32>
    %44 = vector.shape_cast %41 : vector<1x1024xf32> to vector<1x1x1024xf32>
    tpu.vector_store %arg9[%c0_30, %c0_31, %c0_32], %44 {strides = array<i32>} : memref<1x1x1024xf32, #tpu.memory_space<vmem>>, vector<1x1x1024xf32>,
    %c0_33 = arith.constant 0 : index
    %c0_34 = arith.constant 0 : index
    %c0_35 = arith.constant 0 : index
    %45 = vector.load %arg10[%c0_33, %c0_34, %c0_35] : memref<1x1x1024xf32, #tpu.memory_space<vmem>>, vector<1x1x1024xf32>
    %46 = vector.shape_cast %45 : vector<1x1x1024xf32> to vector<1x1024xf32>
    %cst_36 = arith.constant dense<0x7F800000> : vector<1024xf32>
    %47 = vector.multi_reduction <minimumf>, %16, %cst_36 [0] : vector<16x1024xf32> to vector<1024xf32>
    %48 = vector.shape_cast %47 : vector<1024xf32> to vector<1x1024xf32>
    %49 = arith.minimumf %46, %48 : vector<1x1024xf32>
    %c0_37 = arith.constant 0 : index
    %c0_38 = arith.constant 0 : index
    %c0_39 = arith.constant 0 : index
    %50 = vector.load %arg10[%c0_37, %c0_38, %c0_39] : memref<1x1x1024xf32, #tpu.memory_space<vmem>>, vector<1x1x1024xf32>
    %51 = vector.shape_cast %50 : vector<1x1x1024xf32> to vector<1x1024xf32>
    %52 = vector.shape_cast %49 : vector<1x1024xf32> to vector<1x1x1024xf32>
    tpu.vector_store %arg10[%c0_37, %c0_38, %c0_39], %52 {strides = array<i32>} : memref<1x1x1024xf32, #tpu.memory_space<vmem>>, vector<1x1x1024xf32>,
    return
  }
  func.func @transform_0(%arg0: i32, %arg1: i32) -> (i32, i32) {
    %c0_i32 = arith.constant 0 : i32
    %c0_i32_0 = arith.constant 0 : i32
    %c0_i32_1 = arith.constant 0 : i32
    return %c0_i32, %c0_i32_0 : i32, i32
  }
  func.func @transform_1(%arg0: i32, %arg1: i32) -> (i32, i32) {
    %c0_i32 = arith.constant 0 : i32
    %c0_i32_0 = arith.constant 0 : i32
    %c0_i32_1 = arith.constant 0 : i32
    return %c0_i32, %c0_i32_0 : i32, i32
  }
  func.func @transform_2(%arg0: i32, %arg1: i32) -> (i32, i32) {
    %c0_i32 = arith.constant 0 : i32
    %c0_i32_0 = arith.constant 0 : i32
    %c0_i32_1 = arith.constant 0 : i32
    return %c0_i32, %c0_i32_0 : i32, i32
  }
  func.func @transform_3(%arg0: i32, %arg1: i32) -> (i32, i32) {
    %c0_i32 = arith.constant 0 : i32
    %c0_i32_0 = arith.constant 0 : i32
    %c0_i32_1 = arith.constant 0 : i32
    return %c0_i32, %c0_i32_0 : i32, i32
  }
  func.func @transform_4(%arg0: i32, %arg1: i32) -> (i32, i32, i32) {
    %c0_i32 = arith.constant 0 : i32
    %c0_i32_0 = arith.constant 0 : i32
    return %arg0, %arg1, %c0_i32 : i32, i32, i32
  }
  func.func @transform_5(%arg0: i32, %arg1: i32) -> (i32, i32, i32) {
    %c0_i32 = arith.constant 0 : i32
    %c0_i32_0 = arith.constant 0 : i32
    %c0_i32_1 = arith.constant 0 : i32
    return %arg0, %c0_i32, %c0_i32_0 : i32, i32, i32
  }
  func.func @transform_6(%arg0: i32, %arg1: i32) -> (i32, i32, i32) {
    %c0_i32 = arith.constant 0 : i32
    %c0_i32_0 = arith.constant 0 : i32
    %c0_i32_1 = arith.constant 0 : i32
    return %arg0, %c0_i32, %c0_i32_0 : i32, i32, i32
  }
  func.func @transform_7(%arg0: i32, %arg1: i32) -> (i32, i32, i32) {
    %c0_i32 = arith.constant 0 : i32
    %c0_i32_0 = arith.constant 0 : i32
    %c0_i32_1 = arith.constant 0 : i32
    return %arg0, %c0_i32, %c0_i32_0 : i32, i32, i32
  }
  func.func @transform_8(%arg0: i32, %arg1: i32) -> (i32, i32, i32) {
    %c0_i32 = arith.constant 0 : i32
    %c0_i32_0 = arith.constant 0 : i32
    %c0_i32_1 = arith.constant 0 : i32
    return %arg0, %c0_i32, %c0_i32_0 : i32, i32, i32
  }
}

module attributes {stable_mosaic.version = 11 : i64} {
  func.func @_head_kernel(%arg0: memref<2x1024xf32, #tpu.memory_space<vmem>>, %arg1: memref<2x1024xf32, #tpu.memory_space<vmem>>, %arg2: memref<1x1024xf32, #tpu.memory_space<vmem>>, %arg3: memref<1x1024xf32, #tpu.memory_space<vmem>>, %arg4: memref<1024x512xbf16, #tpu.memory_space<vmem>>, %arg5: memref<1x512xf32, #tpu.memory_space<vmem>>, %arg6: memref<1x512xf32, #tpu.memory_space<vmem>>, %arg7: memref<1x512xf32, #tpu.memory_space<vmem>>, %arg8: memref<512x256xbf16, #tpu.memory_space<vmem>>, %arg9: memref<1x256xf32, #tpu.memory_space<vmem>>, %arg10: memref<1x256xf32, #tpu.memory_space<vmem>>, %arg11: memref<1x256xf32, #tpu.memory_space<vmem>>, %arg12: memref<256x128xbf16, #tpu.memory_space<vmem>>, %arg13: memref<1x128xf32, #tpu.memory_space<vmem>>, %arg14: memref<2x128xf32, #tpu.memory_space<vmem>>) attributes {dimension_semantics = [], scalar_prefetch = 0 : i64, scratch_operands = 0 : i64, tpu.core_type = #tpu.core_type<tc>} {
    %c0 = arith.constant 0 : index
    %c0_0 = arith.constant 0 : index
    %0 = vector.load %arg2[%c0, %c0_0] : memref<1x1024xf32, #tpu.memory_space<vmem>>, vector<1x1024xf32>
    %c0_1 = arith.constant 0 : index
    %c0_2 = arith.constant 0 : index
    %1 = vector.load %arg3[%c0_1, %c0_2] : memref<1x1024xf32, #tpu.memory_space<vmem>>, vector<1x1024xf32>
    %cst = arith.constant 0.000000e+00 : f32
    %2 = vector.broadcast %cst : f32 to vector<1x1024xf32>
    %3 = arith.cmpf oge, %0, %2 : vector<1x1024xf32>
    %c0_3 = arith.constant 0 : index
    %c0_4 = arith.constant 0 : index
    %4 = vector.load %arg0[%c0_3, %c0_4] : memref<2x1024xf32, #tpu.memory_space<vmem>>, vector<2x1024xf32>
    %c0_5 = arith.constant 0 : index
    %c0_6 = arith.constant 0 : index
    %5 = vector.load %arg1[%c0_5, %c0_6] : memref<2x1024xf32, #tpu.memory_space<vmem>>, vector<2x1024xf32>
    %6 = vector.shape_cast %3 : vector<1x1024xi1> to vector<1x1024xi1>
    %7 = vector.broadcast %6 : vector<1x1024xi1> to vector<2x1024xi1>
    %8 = arith.select %7, %4, %5 : vector<2x1024xi1>, vector<2x1024xf32>
    %9 = vector.broadcast %0 : vector<1x1024xf32> to vector<2x1024xf32>
    %10 = arith.mulf %8, %9 : vector<2x1024xf32>
    %11 = vector.broadcast %1 : vector<1x1024xf32> to vector<2x1024xf32>
    %12 = arith.addf %10, %11 : vector<2x1024xf32>
    %c0_7 = arith.constant 0 : index
    %c0_8 = arith.constant 0 : index
    %13 = vector.load %arg4[%c0_7, %c0_8] : memref<1024x512xbf16, #tpu.memory_space<vmem>>, vector<1024x512xbf16>
    %14 = arith.truncf %12 : vector<2x1024xf32> to vector<2x1024xbf16>
    %cst_9 = arith.constant dense<0.000000e+00> : vector<2x512xf32>
    %15 = tpu.matmul %14, %13, %cst_9 {dimension_numbers = #tpu.dot_dimension_numbers<[1], [0], [0], [1], [0, 0, 1, 1], [], []>} : vector<2x1024xbf16>, vector<1024x512xbf16>, vector<2x512xf32> -> vector<2x512xf32>
    %c0_10 = arith.constant 0 : index
    %c0_11 = arith.constant 0 : index
    %16 = vector.load %arg5[%c0_10, %c0_11] : memref<1x512xf32, #tpu.memory_space<vmem>>, vector<1x512xf32>
    %17 = vector.broadcast %16 : vector<1x512xf32> to vector<2x512xf32>
    %18 = arith.addf %15, %17 : vector<2x512xf32>
    %cst_12 = arith.constant 0.000000e+00 : f32
    %19 = vector.broadcast %cst_12 : f32 to vector<2x512xf32>
    %20 = arith.maximumf %18, %19 : vector<2x512xf32>
    %cst_13 = arith.constant dense<0.000000e+00> : vector<512xf32>
    %21 = vector.multi_reduction <add>, %20, %cst_13 [0] : vector<2x512xf32> to vector<512xf32>
    %22 = vector.shape_cast %21 : vector<512xf32> to vector<1x512xf32>
    %cst_14 = arith.constant 2.000000e+00 : f32
    %23 = vector.broadcast %cst_14 : f32 to vector<1x512xf32>
    %24 = arith.divf %22, %23 : vector<1x512xf32>
    %25 = arith.mulf %20, %20 : vector<2x512xf32>
    %cst_15 = arith.constant dense<0.000000e+00> : vector<512xf32>
    %26 = vector.multi_reduction <add>, %25, %cst_15 [0] : vector<2x512xf32> to vector<512xf32>
    %27 = vector.shape_cast %26 : vector<512xf32> to vector<1x512xf32>
    %cst_16 = arith.constant 2.000000e+00 : f32
    %28 = vector.broadcast %cst_16 : f32 to vector<1x512xf32>
    %29 = arith.divf %27, %28 : vector<1x512xf32>
    %30 = arith.mulf %24, %24 : vector<1x512xf32>
    %31 = arith.subf %29, %30 : vector<1x512xf32>
    %32 = vector.broadcast %24 : vector<1x512xf32> to vector<2x512xf32>
    %33 = arith.subf %20, %32 : vector<2x512xf32>
    %cst_17 = arith.constant 9.99999974E-6 : f32
    %34 = vector.broadcast %cst_17 : f32 to vector<1x512xf32>
    %35 = arith.addf %31, %34 : vector<1x512xf32>
    %36 = math.rsqrt %35 : vector<1x512xf32>
    %37 = vector.broadcast %36 : vector<1x512xf32> to vector<2x512xf32>
    %38 = arith.mulf %33, %37 : vector<2x512xf32>
    %c0_18 = arith.constant 0 : index
    %c0_19 = arith.constant 0 : index
    %39 = vector.load %arg6[%c0_18, %c0_19] : memref<1x512xf32, #tpu.memory_space<vmem>>, vector<1x512xf32>
    %40 = vector.broadcast %39 : vector<1x512xf32> to vector<2x512xf32>
    %41 = arith.mulf %38, %40 : vector<2x512xf32>
    %c0_20 = arith.constant 0 : index
    %c0_21 = arith.constant 0 : index
    %42 = vector.load %arg7[%c0_20, %c0_21] : memref<1x512xf32, #tpu.memory_space<vmem>>, vector<1x512xf32>
    %43 = vector.broadcast %42 : vector<1x512xf32> to vector<2x512xf32>
    %44 = arith.addf %41, %43 : vector<2x512xf32>
    %c0_22 = arith.constant 0 : index
    %c0_23 = arith.constant 0 : index
    %45 = vector.load %arg8[%c0_22, %c0_23] : memref<512x256xbf16, #tpu.memory_space<vmem>>, vector<512x256xbf16>
    %46 = arith.truncf %44 : vector<2x512xf32> to vector<2x512xbf16>
    %cst_24 = arith.constant dense<0.000000e+00> : vector<2x256xf32>
    %47 = tpu.matmul %46, %45, %cst_24 {dimension_numbers = #tpu.dot_dimension_numbers<[1], [0], [0], [1], [0, 0, 1, 1], [], []>} : vector<2x512xbf16>, vector<512x256xbf16>, vector<2x256xf32> -> vector<2x256xf32>
    %c0_25 = arith.constant 0 : index
    %c0_26 = arith.constant 0 : index
    %48 = vector.load %arg9[%c0_25, %c0_26] : memref<1x256xf32, #tpu.memory_space<vmem>>, vector<1x256xf32>
    %49 = vector.broadcast %48 : vector<1x256xf32> to vector<2x256xf32>
    %50 = arith.addf %47, %49 : vector<2x256xf32>
    %cst_27 = arith.constant 0.000000e+00 : f32
    %51 = vector.broadcast %cst_27 : f32 to vector<2x256xf32>
    %52 = arith.maximumf %50, %51 : vector<2x256xf32>
    %cst_28 = arith.constant dense<0.000000e+00> : vector<256xf32>
    %53 = vector.multi_reduction <add>, %52, %cst_28 [0] : vector<2x256xf32> to vector<256xf32>
    %54 = vector.shape_cast %53 : vector<256xf32> to vector<1x256xf32>
    %cst_29 = arith.constant 2.000000e+00 : f32
    %55 = vector.broadcast %cst_29 : f32 to vector<1x256xf32>
    %56 = arith.divf %54, %55 : vector<1x256xf32>
    %57 = arith.mulf %52, %52 : vector<2x256xf32>
    %cst_30 = arith.constant dense<0.000000e+00> : vector<256xf32>
    %58 = vector.multi_reduction <add>, %57, %cst_30 [0] : vector<2x256xf32> to vector<256xf32>
    %59 = vector.shape_cast %58 : vector<256xf32> to vector<1x256xf32>
    %cst_31 = arith.constant 2.000000e+00 : f32
    %60 = vector.broadcast %cst_31 : f32 to vector<1x256xf32>
    %61 = arith.divf %59, %60 : vector<1x256xf32>
    %62 = arith.mulf %56, %56 : vector<1x256xf32>
    %63 = arith.subf %61, %62 : vector<1x256xf32>
    %64 = vector.broadcast %56 : vector<1x256xf32> to vector<2x256xf32>
    %65 = arith.subf %52, %64 : vector<2x256xf32>
    %cst_32 = arith.constant 9.99999974E-6 : f32
    %66 = vector.broadcast %cst_32 : f32 to vector<1x256xf32>
    %67 = arith.addf %63, %66 : vector<1x256xf32>
    %68 = math.rsqrt %67 : vector<1x256xf32>
    %69 = vector.broadcast %68 : vector<1x256xf32> to vector<2x256xf32>
    %70 = arith.mulf %65, %69 : vector<2x256xf32>
    %c0_33 = arith.constant 0 : index
    %c0_34 = arith.constant 0 : index
    %71 = vector.load %arg10[%c0_33, %c0_34] : memref<1x256xf32, #tpu.memory_space<vmem>>, vector<1x256xf32>
    %72 = vector.broadcast %71 : vector<1x256xf32> to vector<2x256xf32>
    %73 = arith.mulf %70, %72 : vector<2x256xf32>
    %c0_35 = arith.constant 0 : index
    %c0_36 = arith.constant 0 : index
    %74 = vector.load %arg11[%c0_35, %c0_36] : memref<1x256xf32, #tpu.memory_space<vmem>>, vector<1x256xf32>
    %75 = vector.broadcast %74 : vector<1x256xf32> to vector<2x256xf32>
    %76 = arith.addf %73, %75 : vector<2x256xf32>
    %c0_37 = arith.constant 0 : index
    %c0_38 = arith.constant 0 : index
    %77 = vector.load %arg12[%c0_37, %c0_38] : memref<256x128xbf16, #tpu.memory_space<vmem>>, vector<256x128xbf16>
    %78 = arith.truncf %76 : vector<2x256xf32> to vector<2x256xbf16>
    %cst_39 = arith.constant dense<0.000000e+00> : vector<2x128xf32>
    %79 = tpu.matmul %78, %77, %cst_39 {dimension_numbers = #tpu.dot_dimension_numbers<[1], [0], [0], [1], [0, 0, 1, 1], [], []>} : vector<2x256xbf16>, vector<256x128xbf16>, vector<2x128xf32> -> vector<2x128xf32>
    %c0_40 = arith.constant 0 : index
    %c0_41 = arith.constant 0 : index
    %80 = vector.load %arg13[%c0_40, %c0_41] : memref<1x128xf32, #tpu.memory_space<vmem>>, vector<1x128xf32>
    %81 = vector.broadcast %80 : vector<1x128xf32> to vector<2x128xf32>
    %82 = arith.addf %79, %81 : vector<2x128xf32>
    %c0_42 = arith.constant 0 : index
    %c0_43 = arith.constant 0 : index
    %83 = vector.load %arg14[%c0_42, %c0_43] : memref<2x128xf32, #tpu.memory_space<vmem>>, vector<2x128xf32>
    tpu.vector_store %arg14[%c0_42, %c0_43], %82 {strides = array<i32>} : memref<2x128xf32, #tpu.memory_space<vmem>>, vector<2x128xf32>,
    return
  }
}

</mosaic_0001>

<llo_original>
// kernel: tnet_forward.5
$region0: #{tnet_forward.5}
  #allocation0 [shape = 'u32[]', space=smem, size = 0x4, offset = 0x4, fixed_abs, tag = 'smem constant byte address 0x4 - core index']
  #allocation1 [shape = 'u32[144,128]{1,0:T(1,128)}', space=vmem, size = 0x12000, scoped, tag = 'internal scratch']
  %s0 = inlined_call_operand.vmem [shape: f32[1,128], index: 0, kind: input, shape index: {}]
  %s1 = inlined_call_operand.vmem [shape: f32[1,128], index: 1, kind: input, shape index: {}]
  %s2 = inlined_call_operand.vmem [shape: bf16[128,128], index: 2, kind: input, shape index: {}]
  %s3 = inlined_call_operand.hbm [shape: f32[1,128], index: 3, kind: input, shape index: {}]
  %s4 = inlined_call_operand.vmem [shape: bf16[2,16,128], index: 4, kind: input, shape index: {}]
  %s5 = inlined_call_operand.vmem [shape: bf16[2,16,128], index: 5, kind: output, shape index: {0}]
  %s6 = inlined_call_operand.vmem [shape: f32[2,1,128], index: 6, kind: output, shape index: {1}]
  %s7 = inlined_call_operand.vmem [shape: f32[2,1,128], index: 7, kind: output, shape index: {2}]
  %8 = xla_tuple %s5, %s6, %s7
  %s9 = sld [smem:[#allocation0]]
  $region77: #{tnet_forward.5} parent=0
    _
  %s11 = ssub.s32 1, %s9
  %s12 = scalar_select 0, %s11, %s9
  $region1: #{tnet_forward.5} parent=0
    #allocation2 [shape = 'u8[512]{0}', space=vmem, size = 0x400, scoped, tag = 'input window, operand 3, single buffered']
    #allocation3 [shape = 's32[2]{0}', space=sflag, size = 0x8, scoped, tag = 'scoped memory for tnet_forward.5']
    %13 = vsyncpa [#allocation3], 0
    loop: start=0, step=1, limit=4
    $region2: #{tnet_forward.5} parent=1 // loop_pre_header
      _
    $region3: #{tnet_forward.5} parent=1 // loop_header
      %s15 = sphi 0, %s19
      %p16 = scmp.ge.s32.totalorder %s15, 4
      %s22 = sphi 0, %s34
      %s23 = sphi 0, %s30
      %s24 = sphi 0, %s22
      %s25 = sphi 0, %s23
      %s26 = sphi 0, %s24
      %s27 = sphi 0, %s25
      %s35 = sphi 0, %s35
      %s37 = sphi 0, %s35
      %s38 = sphi 0, %s37
      %s52 = sphi 0, %s38
      %s56 = sphi 0, %s56
      %s58 = sphi 0, %s56
      %s59 = sphi 0, %s58
      %s73 = sphi 0, %s59
      %s77 = sphi 0, %s77
      %s79 = sphi 0, %s77
      %s80 = sphi 0, %s79
      %s94 = sphi 0, %s80
      %s98 = sphi 0, %s98
      %s100 = sphi 0, %s98
      %s101 = sphi 0, %s100
      %s115 = sphi 0, %s101
      %s123 = sphi 0, %s125
      %s126 = sphi 0, %s123
      %s127 = sphi 0, %s126
      %s143 = sphi 0, %s127
      %s151 = sphi 0, %s153
      %s154 = sphi 0, %s151
      %s155 = sphi 0, %s154
      %s171 = sphi 0, %s155
      %s177 = sphi 0, %s179
      %s180 = sphi 0, %s177
      %s181 = sphi 0, %s180
      %s197 = sphi 0, %s181
      %s203 = sphi 0, %s205
      %s206 = sphi 0, %s203
      %s207 = sphi 0, %s206
      %s223 = sphi 0, %s207
    $region4: #{tnet_forward.5} parent=1 // loop_header_branch
      %18 = sbr.rel (%p16) target = $region8
    $region5: #{tnet_forward.5} parent=1 // loop_body
      %s20 = ssub.s32 %s15, 1
      %s21 = ssub.s32 %s15, 2
      %s28 = sadd.s32 1, %s23
      %p29 = scmp.ge.s32.totalorder %s28, 1
      %s30 = scalar_select %p29, 0, %s28
      %s31 = sadd.s32 1, %s22
      %s32 = scalar_select %p29, %s31, %s22
      %p33 = scmp.ge.s32.totalorder %s32, 2
      %s34 = scalar_select %p33, 0, %s32
      %s36 = sadd.s32 %s35, 1
      %p39 = scmp.eq.s32.totalorder %s15, 1
      %p40 = scmp.ne.s32.totalorder %s35, %s37
      %p41 = scmp.eq.s32.totalorder %s15, 0
      %p42 = por %p40, %p41
      %p43 = scmp.ne.s32.totalorder %s35, %s37
      %p44 = scmp.eq.s32.totalorder %s20, 1
      %p45 = por %p43, %p44
      %p46 = scmp.ne.s32.totalorder %s37, %s38
      %p47 = scmp.eq.s32.totalorder %s20, 0
      %p48 = por %p46, %p47
      %p49 = scmp.ne.s32.totalorder %s37, %s38
      %p50 = scmp.eq.s32.totalorder %s21, 1
      %p51 = por %p49, %p50
      %p53 = scmp.ne.s32.totalorder %s38, %s52
      %p54 = scmp.eq.s32.totalorder %s21, 0
      %p55 = por %p53, %p54
      %s57 = sadd.s32 %s56, 1
      %p60 = scmp.eq.s32.totalorder %s15, 1
      %p61 = scmp.ne.s32.totalorder %s56, %s58
      %p62 = scmp.eq.s32.totalorder %s15, 0
      %p63 = por %p61, %p62
      %p64 = scmp.ne.s32.totalorder %s56, %s58
      %p65 = scmp.eq.s32.totalorder %s20, 1
      %p66 = por %p64, %p65
      %p67 = scmp.ne.s32.totalorder %s58, %s59
      %p68 = scmp.eq.s32.totalorder %s20, 0
      %p69 = por %p67, %p68
      %p70 = scmp.ne.s32.totalorder %s58, %s59
      %p71 = scmp.eq.s32.totalorder %s21, 1
      %p72 = por %p70, %p71
      %p74 = scmp.ne.s32.totalorder %s59, %s73
      %p75 = scmp.eq.s32.totalorder %s21, 0
      %p76 = por %p74, %p75
      %s78 = sadd.s32 %s77, 1
      %p81 = scmp.eq.s32.totalorder %s15, 1
      %p82 = scmp.ne.s32.totalorder %s77, %s79
      %p83 = scmp.eq.s32.totalorder %s15, 0
      %p84 = por %p82, %p83
      %p85 = scmp.ne.s32.totalorder %s77, %s79
      %p86 = scmp.eq.s32.totalorder %s20, 1
      %p87 = por %p85, %p86
      %p88 = scmp.ne.s32.totalorder %s79, %s80
      %p89 = scmp.eq.s32.totalorder %s20, 0
      %p90 = por %p88, %p89
      %p91 = scmp.ne.s32.totalorder %s79, %s80
      %p92 = scmp.eq.s32.totalorder %s21, 1
      %p93 = por %p91, %p92
      %p95 = scmp.ne.s32.totalorder %s80, %s94
      %p96 = scmp.eq.s32.totalorder %s21, 0
      %p97 = por %p95, %p96
      %s99 = sadd.s32 %s98, 1
      %p102 = scmp.eq.s32.totalorder %s15, 1
      %p103 = scmp.ne.s32.totalorder %s98, %s100
      %p104 = scmp.eq.s32.totalorder %s15, 0
      %p105 = por %p103, %p104
      %p106 = scmp.ne.s32.totalorder %s98, %s100
      %p107 = scmp.eq.s32.totalorder %s20, 1
      %p108 = por %p106, %p107
      %p109 = scmp.ne.s32.totalorder %s100, %s101
      %p110 = scmp.eq.s32.totalorder %s20, 0
      %p111 = por %p109, %p110
      %p112 = scmp.ne.s32.totalorder %s100, %s101
      %p113 = scmp.eq.s32.totalorder %s21, 1
      %p114 = por %p112, %p113
      %p116 = scmp.ne.s32.totalorder %s101, %s115
      %p117 = scmp.eq.s32.totalorder %s21, 0
      %p118 = por %p116, %p117
      %s119 = ssub.s32 %s22, %s34
      %s120 = ssub.s32 %s23, %s30
      %s121 = sor.u32 %s119, %s120
      %p122 = scmp.eq.s32.totalorder %s121, 0
      %s124 = sadd.s32 %s123, 1
      %s125 = scalar_select %p122, %s123, %s124
      %p128 = pneg %p122
      %p129 = scmp.eq.s32.totalorder %s15, 1
      %p130 = por %p128, %p129
      %p131 = scmp.ne.s32.totalorder %s123, %s126
      %p132 = scmp.eq.s32.totalorder %s15, 0
      %p133 = por %p131, %p132
      %p134 = scmp.ne.s32.totalorder %s123, %s126
      %p135 = scmp.eq.s32.totalorder %s20, 1
      %p136 = por %p134, %p135
      %p137 = scmp.ne.s32.totalorder %s126, %s127
      %p138 = scmp.eq.s32.totalorder %s20, 0
      %p139 = por %p137, %p138
      %p140 = scmp.ne.s32.totalorder %s126, %s127
      %p141 = scmp.eq.s32.totalorder %s21, 1
      %p142 = por %p140, %p141
      %p144 = scmp.ne.s32.totalorder %s127, %s143
      %p145 = scmp.eq.s32.totalorder %s21, 0
      %p146 = por %p144, %p145
      %s147 = ssub.s32 %s22, %s34
      %s148 = ssub.s32 %s23, %s30
      %s149 = sor.u32 %s147, %s148
      %p150 = scmp.eq.s32.totalorder %s149, 0
      %s152 = sadd.s32 %s151, 1
      %s153 = scalar_select %p150, %s151, %s152
      %p156 = pneg %p150
      %p157 = scmp.eq.s32.totalorder %s15, 1
      %p158 = por %p156, %p157
      %p159 = scmp.ne.s32.totalorder %s151, %s154
      %p160 = scmp.eq.s32.totalorder %s15, 0
      %p161 = por %p159, %p160
      %p162 = scmp.ne.s32.totalorder %s151, %s154
      %p163 = scmp.eq.s32.totalorder %s20, 1
      %p164 = por %p162, %p163
      %p165 = scmp.ne.s32.totalorder %s154, %s155
      %p166 = scmp.eq.s32.totalorder %s20, 0
      %p167 = por %p165, %p166
      %p168 = scmp.ne.s32.totalorder %s154, %s155
      %p169 = scmp.eq.s32.totalorder %s21, 1
      %p170 = por %p168, %p169
      %p172 = scmp.ne.s32.totalorder %s155, %s171
      %p173 = scmp.eq.s32.totalorder %s21, 0
      %p174 = por %p172, %p173
      %s175 = ssub.s32 %s22, %s34
      %p176 = scmp.eq.s32.totalorder %s175, 0
      %s178 = sadd.s32 %s177, 1
      %s179 = scalar_select %p176, %s177, %s178
      %p182 = pneg %p176
      %p183 = scmp.eq.s32.totalorder %s15, 1
      %p184 = por %p182, %p183
      %p185 = scmp.ne.s32.totalorder %s177, %s180
      %p186 = scmp.eq.s32.totalorder %s15, 0
      %p187 = por %p185, %p186
      %p188 = scmp.ne.s32.totalorder %s177, %s180
      %p189 = scmp.eq.s32.totalorder %s20, 1
      %p190 = por %p188, %p189
      %p191 = scmp.ne.s32.totalorder %s180, %s181
      %p192 = scmp.eq.s32.totalorder %s20, 0
      %p193 = por %p191, %p192
      %p194 = scmp.ne.s32.totalorder %s180, %s181
      %p195 = scmp.eq.s32.totalorder %s21, 1
      %p196 = por %p194, %p195
      %p198 = scmp.ne.s32.totalorder %s181, %s197
      %p199 = scmp.eq.s32.totalorder %s21, 0
      %p200 = por %p198, %p199
      %s201 = ssub.s32 %s22, %s34
      %p202 = scmp.eq.s32.totalorder %s201, 0
      %s204 = sadd.s32 %s203, 1
      %s205 = scalar_select %p202, %s203, %s204
      %p208 = pneg %p202
      %p209 = scmp.eq.s32.totalorder %s15, 1
      %p210 = por %p208, %p209
      %p211 = scmp.ne.s32.totalorder %s203, %s206
      %p212 = scmp.eq.s32.totalorder %s15, 0
      %p213 = por %p211, %p212
      %p214 = scmp.ne.s32.totalorder %s203, %s206
      %p215 = scmp.eq.s32.totalorder %s20, 1
      %p216 = por %p214, %p215
      %p217 = scmp.ne.s32.totalorder %s206, %s207
      %p218 = scmp.eq.s32.totalorder %s20, 0
      %p219 = por %p217, %p218
      %p220 = scmp.ne.s32.totalorder %s206, %s207
      %p221 = scmp.eq.s32.totalorder %s21, 1
      %p222 = por %p220, %p221
      %p224 = scmp.ne.s32.totalorder %s207, %s223
      %p225 = scmp.eq.s32.totalorder %s21, 0
      %p226 = por %p224, %p225
      %p227 = scmp.le.s32.totalorder 1, %s15
      %p228 = scmp.lt.s32.totalorder %s15, 3
      %p229 = pnand %p227, %p228
      %p230 = pneg %p229
      // Predicated region
      $region9: #{tnet_forward.5} parent=5 // pred_check
        _
      $region10: #{tnet_forward.5} parent=5 // pred_check_branch
        %232 = sbr.rel (%p229) target = $region12
      $region11: #{tnet_forward.5} parent=5 // pred_region
        %s233 = ssub.s32 %s15, 1
        // Predicated region
        $region13: #{tnet_forward.5} parent=11 // pred_check
          %p234 = pneg %p48
        $region14: #{tnet_forward.5} parent=11 // pred_check_branch
          %236 = sbr.rel (%p234) target = $region16
        $region15: #{tnet_forward.5} parent=11 // pred_region
          _
        $region16: #{tnet_forward.5} parent=11 // pred_fallthru
          _
        // Predicated region
        $region17: #{tnet_forward.5} parent=11 // pred_check
          %p237 = pneg %p69
        $region18: #{tnet_forward.5} parent=11 // pred_check_branch
          %239 = sbr.rel (%p237) target = $region20
        $region19: #{tnet_forward.5} parent=11 // pred_region
          _
        $region20: #{tnet_forward.5} parent=11 // pred_fallthru
          _
        // Predicated region
        $region21: #{tnet_forward.5} parent=11 // pred_check
          %p240 = pneg %p90
        $region22: #{tnet_forward.5} parent=11 // pred_check_branch
          %242 = sbr.rel (%p240) target = $region24
        $region23: #{tnet_forward.5} parent=11 // pred_region
          _
        $region24: #{tnet_forward.5} parent=11 // pred_fallthru
          _
        // Predicated region
        $region25: #{tnet_forward.5} parent=11 // pred_check
          %p243 = pneg %p111
        $region26: #{tnet_forward.5} parent=11 // pred_check_branch
          %245 = sbr.rel (%p243) target = $region28
        $region27: #{tnet_forward.5} parent=11 // pred_region
          %s247 = ssub.s32 16, 16
          %248 = vsyncadd [#allocation3], %s247
          %s250 = sshll.u32 [#allocation2], 4
          %s251 = int_to_ptr.vmem [resolvable:$true] %s250
          %253 = dma.hbm_to_vmem [thread:$0]  %s3, 16, %s251, [#allocation3]
        $region28: #{tnet_forward.5} parent=11 // pred_fallthru
          _
      $region12: #{tnet_forward.5} parent=5 // pred_fallthru
        _
      %p254 = scmp.lt.s32.totalorder %s15, 2
      // Predicated region
      $region29: #{tnet_forward.5} parent=5 // pred_check
        %p255 = pneg %p254
      $region30: #{tnet_forward.5} parent=5 // pred_check_branch
        %257 = sbr.rel (%p255) target = $region32
      $region31: #{tnet_forward.5} parent=5 // pred_region
        // Predicated region
        $region33: #{tnet_forward.5} parent=31 // pred_check
          %p258 = pneg %p133
        $region34: #{tnet_forward.5} parent=31 // pred_check_branch
          %260 = sbr.rel (%p258) target = $region36
        $region35: #{tnet_forward.5} parent=31 // pred_region
          %s261 = smul.u32 2, %s23
          %p262 = scmp.lt.s32.totalorder %s22, 1
          %s263 = scalar_select %p262, %s22, 1
          %p264 = scmp.lt.s32.totalorder %s261, 1
          %s265 = scalar_select %p264, %s261, 1
          %s266 = smul.addr %s263, 2
          %s267 = sadd.s32 %s265, %s266
          %s268 = smul.addr %s267, 4
          %s269 = scalar_lea.vmem %s4, %s268
          %s270 = smul.u32 2, %s23
        $region36: #{tnet_forward.5} parent=31 // pred_fallthru
          _
      $region32: #{tnet_forward.5} parent=5 // pred_fallthru
        _
      %p271 = scmp.le.s32.totalorder 1, %s15
      %p272 = scmp.lt.s32.totalorder %s15, 3
      %p273 = pnand %p271, %p272
      %p274 = pneg %p273
      // Predicated region
      $region37: #{tnet_forward.5} parent=5 // pred_check
        _
      $region38: #{tnet_forward.5} parent=5 // pred_check_branch
        %276 = sbr.rel (%p273) target = $region40
      $region39: #{tnet_forward.5} parent=5 // pred_region
        %s277 = ssub.s32 %s15, 1
        // Predicated region
        $region41: #{tnet_forward.5} parent=39 // pred_check
          %p278 = pneg %p111
        $region42: #{tnet_forward.5} parent=39 // pred_check_branch
          %280 = sbr.rel (%p278) target = $region44
        $region43: #{tnet_forward.5} parent=39 // pred_region
          %281 = dma.done [#allocation3], 16
        $region44: #{tnet_forward.5} parent=39 // pred_fallthru
          _
        %p282 = pneg %p48
        %p283 = pneg %p45
        %p284 = pneg %p69
        %p285 = pneg %p66
        %p286 = pneg %p90
        %p287 = pneg %p87
        %p288 = pneg %p111
        %p289 = pneg %p108
        %s290 = smul.u32 2, %s25
        %p291 = scmp.lt.s32.totalorder %s24, 1
        %s292 = scalar_select %p291, %s24, 1
        %p293 = scmp.lt.s32.totalorder %s290, 1
        %s294 = scalar_select %p293, %s290, 1
        %s295 = smul.addr %s292, 2
        %s296 = sadd.s32 %s294, %s295
        %s297 = smul.addr %s296, 4
        %s298 = scalar_lea.vmem %s4, %s297
        %p299 = pneg %p139
        %p300 = pneg %p136
        %p301 = pneg %p167
        %p302 = pneg %p164
        %s303 = smul.u32 2, %s25
        %p304 = scmp.lt.s32.totalorder %s24, 1
        %s305 = scalar_select %p304, %s24, 1
        %p306 = scmp.lt.s32.totalorder %s303, 1
        %s307 = scalar_select %p306, %s303, 1
        %s308 = smul.addr %s305, 2
        %s309 = sadd.s32 %s307, %s308
        %s310 = smul.addr %s309, 4
        %s311 = scalar_lea.vmem %s5, %s310
        %p312 = pneg %p193
        %p313 = pneg %p190
        %p314 = scmp.lt.s32.totalorder %s24, 1
        %s315 = scalar_select %p314, %s24, 1
        %s316 = scalar_lea.vmem %s6, %s315
        %p317 = pneg %p219
        %p318 = pneg %p216
        %p319 = scmp.lt.s32.totalorder %s24, 1
        %s320 = scalar_select %p319, %s24, 1
        %s321 = scalar_lea.vmem %s7, %s320
        %s322 = smul.u32 2, %s25
        %p323 = scmp.lt.s32.totalorder %s24, 1
        %s324 = scalar_select %p323, %s24, 1
        %p325 = scmp.lt.s32.totalorder %s322, 1
        %s326 = scalar_select %p325, %s322, 1
        %s327 = smul.addr %s324, 2
        %s328 = sadd.s32 %s326, %s327
        %s329 = smul.addr %s328, 4
        %s330 = scalar_lea.vmem %s4, %s329
        %s331 = smul.u32 2, %s25
        %s332 = smul.u32 2, %s25
        %p333 = scmp.lt.s32.totalorder %s24, 1
        %s334 = scalar_select %p333, %s24, 1
        %p335 = scmp.lt.s32.totalorder %s332, 1
        %s336 = scalar_select %p335, %s332, 1
        %s337 = smul.addr %s334, 2
        %s338 = sadd.s32 %s336, %s337
        %s339 = smul.addr %s338, 4
        %s340 = scalar_lea.vmem %s5, %s339
        %s341 = smul.u32 2, %s25
        %p342 = scmp.lt.s32.totalorder %s24, 1
        %s343 = scalar_select %p342, %s24, 1
        %s344 = scalar_lea.vmem %s6, %s343
        %p345 = scmp.lt.s32.totalorder %s24, 1
        %s346 = scalar_select %p345, %s24, 1
        %s347 = scalar_lea.vmem %s7, %s346
        %v349 = vld [vmem:[%s330] sm:$0xf]
        %v350 = vld [vmem:[%s330 + $0x4] sm:$0xf]
        %v351 = vunpack.c.l.bf16 %v349
        %v352 = vunpack.c.l.bf16 %v350
        %v353 = vld [vmem:[%s0] sm:$0x1]
        %v355 = vlaneseq
        %v356 = vshrl.u32 %v355, 7
        %v357 = vsub.s32 0, %v356
        %v358 = vrot.slane %v353, %v357
        %v360 = vmul.f32 %v351, %v358
        %v361 = vmul.f32 %v352, %v358
        %v362 = vld [vmem:[%s1] sm:$0x1]
        %v364 = vlaneseq
        %v365 = vshrl.u32 %v364, 7
        %v366 = vsub.s32 0, %v365
        %v367 = vrot.slane %v362, %v366
        %v369 = vadd.f32 %v360, %v367
        %v370 = vadd.f32 %v361, %v367
        %v371 = vld [vmem:[%s2] sm:$0xf]
        %v372 = vld [vmem:[%s2 + $0x4] sm:$0xf]
        %v373 = vld [vmem:[%s2 + $0x8] sm:$0xf]
        %v374 = vld [vmem:[%s2 + $0xc] sm:$0xf]
        %v375 = vld [vmem:[%s2 + $0x10] sm:$0xf]
        %v376 = vld [vmem:[%s2 + $0x14] sm:$0xf]
        %v377 = vld [vmem:[%s2 + $0x18] sm:$0xf]
        %v378 = vld [vmem:[%s2 + $0x1c] sm:$0xf]
        %v379 = vld [vmem:[%s2 + $0x20] sm:$0xf]
        %v380 = vld [vmem:[%s2 + $0x24] sm:$0xf]
        %v381 = vld [vmem:[%s2 + $0x28] sm:$0xf]
        %v382 = vld [vmem:[%s2 + $0x2c] sm:$0xf]
        %v383 = vld [vmem:[%s2 + $0x30] sm:$0xf]
        %v384 = vld [vmem:[%s2 + $0x34] sm:$0xf]
        %v385 = vld [vmem:[%s2 + $0x38] sm:$0xf]
        %v386 = vld [vmem:[%s2 + $0x3c] sm:$0xf]
        %v387 = vpack.c.bf16 %v370, %v369
        %v388 = vld [vmem:[#allocation2] sm:$0x1]
        %v390 = vlaneseq
        %v391 = vshrl.u32 %v390, 7
        %v392 = vsub.s32 0, %v391
        %v393 = vrot.slane %v388, %v392
        %v411 = vunpack.c.l.b16 %v371
        %v412 = vunpack.c.l.b16 %v372
        %v413 = vunpack.c.l.b16 %v373
        %v414 = vunpack.c.l.b16 %v374
        %v415 = vunpack.c.l.b16 %v375
        %v416 = vunpack.c.l.b16 %v376
        %v417 = vunpack.c.l.b16 %v377
        %v418 = vunpack.c.l.b16 %v378
        %v419 = vunpack.c.l.b16 %v379
        %v420 = vunpack.c.l.b16 %v380
        %v421 = vunpack.c.l.b16 %v381
        %v422 = vunpack.c.l.b16 %v382
        %v423 = vunpack.c.l.b16 %v383
        %v424 = vunpack.c.l.b16 %v384
        %v425 = vunpack.c.l.b16 %v385
        %v426 = vunpack.c.l.b16 %v386
        %v427 = vpack.c.b16 %v412, %v411
        %v428 = vpack.c.b16 %v414, %v413
        %v429 = vpack.c.b16 %v416, %v415
        %v430 = vpack.c.b16 %v418, %v417
        %v431 = vpack.c.b16 %v420, %v419
        %v432 = vpack.c.b16 %v422, %v421
        %v433 = vpack.c.b16 %v424, %v423
        %v434 = vpack.c.b16 %v426, %v425
        %443 = vmatprep.subr.bf16.mxu0 0
        %444 = vmatpush1.bf16.msra.mxu0 %v427
        %445 = vmatprep.subr.bf16.mxu0 0
        %446 = vmatpush1.bf16.msra.mxu0 %v428
        %447 = vmatprep.subr.bf16.mxu0 0
        %448 = vmatpush1.bf16.msra.mxu0 %v429
        %449 = vmatprep.subr.bf16.mxu0 0
        %450 = vmatpush1.bf16.msra.mxu0 %v430
        %451 = vmatprep.subr.bf16.mxu0 0
        %452 = vmatpush1.bf16.msra.mxu0 %v431
        %453 = vmatprep.subr.bf16.mxu0 0
        %454 = vmatpush1.bf16.msra.mxu0 %v432
        %455 = vmatprep.subr.bf16.mxu0 0
        %456 = vmatpush1.bf16.msra.mxu0 %v433
        %457 = vmatprep.subr.bf16.mxu0 0
        %458 = vmatpush1.bf16.msra.mxu0 %v434
        %459 = vmatprep.subr.bf16.mxu0 0
        %460 = vmatpush1.bf16.msra.mxu0 0
        %461 = vmatprep.subr.bf16.mxu0 0
        %462 = vmatpush1.bf16.msra.mxu0 0
        %463 = vmatprep.subr.bf16.mxu0 0
        %464 = vmatpush1.bf16.msra.mxu0 0
        %465 = vmatprep.subr.bf16.mxu0 0
        %466 = vmatpush1.bf16.msra.mxu0 0
        %467 = vmatprep.subr.bf16.mxu0 0
        %468 = vmatpush1.bf16.msra.mxu0 0
        %469 = vmatprep.subr.bf16.mxu0 0
        %470 = vmatpush1.bf16.msra.mxu0 0
        %471 = vmatprep.subr.bf16.mxu0 0
        %472 = vmatpush1.bf16.msra.mxu0 0
        %473 = vmatprep.subr.bf16.mxu0 0
        %474 = vmatpush1.bf16.msra.mxu0 0
        %475 = vmatprep.mubr.bf16.mxu0 0
        %476 = vmatmul.mubr.bf16.gmra.mrb[0].mxu0 %v387
        %v477 = vpop.f32.mrb[0].mxu0
        %v478 = vadd.f32 %v393, %v477
        %v479 = vpop.f32.mrb[0].mxu0
        %v480 = vpop.f32.mrb[0].mxu0
        %v481 = vadd.f32 %v393, %v480
        %v482 = vpop.f32.mrb[0].mxu0
        %483 = vdwg.mxu0
        %v484 = vmax.f32 %v478, 0.0
        %v485 = vmax.f32 %v481, 0.0
        %v486 = vpack.c.bf16 %v485, %v484
        %v488 = vunpack.c.l.b16 %v486
        %v489 = vunpack.c.h.b16 %v486
        %v490 = vpack.c.b16 %v488, %v488
        %v491 = vpack.c.b16 %v489, %v489
        %494 = vst [vmem:[%s340] sm:$0xf] %v490
        %495 = vst [vmem:[%s340 + $0x4] sm:$0xf] %v491
        %p496 = scmp.eq.s32.totalorder %s25, 0
        // Predicated region
        $region45: #{tnet_forward.5} parent=39 // pred_check
          %p497 = pneg %p496
        $region46: #{tnet_forward.5} parent=39 // pred_check_branch
          %499 = sbr.rel (%p497) target = $region48
        $region47: #{tnet_forward.5} parent=39 // pred_region
          %500 = vst [vmem:[%s344] sm:$0x1] 0.0
          %501 = vst [vmem:[%s347] sm:$0x1] 0.0
        $region48: #{tnet_forward.5} parent=39 // pred_fallthru
          _
        %v502 = vld [vmem:[%s344] sm:$0x1]
        %v503 = vadd.f32 %v484, %v485
        %v504 = vrot.slane %v503, 4
        %v505 = vadd.f32 %v503, %v504
        %v506 = vrot.slane %v505, 2
        %v507 = vadd.f32 %v505, %v506
        %v508 = vrot.slane %v507, 1
        %v509 = vadd.f32 %v507, %v508
        %v510 = vadd.f32 %v502, %v509
        %511 = vst [vmem:[%s344] sm:$0x1] %v510
        %v512 = vld [vmem:[%s347] sm:$0x1]
        %v513 = vmul.f32 %v484, %v484
        %v514 = vmul.f32 %v485, %v485
        %v515 = vadd.f32 %v513, %v514
        %v516 = vrot.slane %v515, 4
        %v517 = vadd.f32 %v515, %v516
        %v518 = vrot.slane %v517, 2
        %v519 = vadd.f32 %v517, %v518
        %v520 = vrot.slane %v519, 1
        %v521 = vadd.f32 %v519, %v520
        %v522 = vadd.f32 %v512, %v521
        %523 = vst [vmem:[%s347] sm:$0x1] %v522
        %s524 = smul.u32 2, %s25
        %p525 = scmp.lt.s32.totalorder %s24, 1
        %s526 = scalar_select %p525, %s24, 1
        %p527 = scmp.lt.s32.totalorder %s524, 1
        %s528 = scalar_select %p527, %s524, 1
        %s529 = smul.addr %s526, 2
        %s530 = sadd.s32 %s528, %s529
        %s531 = smul.addr %s530, 4
        %s532 = scalar_lea.vmem %s5, %s531
        %p533 = scmp.lt.s32.totalorder %s24, 1
        %s534 = scalar_select %p533, %s24, 1
        %s535 = scalar_lea.vmem %s6, %s534
        %p536 = scmp.lt.s32.totalorder %s24, 1
        %s537 = scalar_select %p536, %s24, 1
        %s538 = scalar_lea.vmem %s7, %s537
        // Predicated region
        $region49: #{tnet_forward.5} parent=39 // pred_check
          %p539 = pneg %p164
        $region50: #{tnet_forward.5} parent=39 // pred_check_branch
          %541 = sbr.rel (%p539) target = $region52
        $region51: #{tnet_forward.5} parent=39 // pred_region
          %s542 = smul.u32 2, %s25
        $region52: #{tnet_forward.5} parent=39 // pred_fallthru
          _
        // Predicated region
        $region53: #{tnet_forward.5} parent=39 // pred_check
          %p543 = pneg %p190
        $region54: #{tnet_forward.5} parent=39 // pred_check_branch
          %545 = sbr.rel (%p543) target = $region56
        $region55: #{tnet_forward.5} parent=39 // pred_region
          _
        $region56: #{tnet_forward.5} parent=39 // pred_fallthru
          _
        // Predicated region
        $region57: #{tnet_forward.5} parent=39 // pred_check
          %p546 = pneg %p216
        $region58: #{tnet_forward.5} parent=39 // pred_check_branch
          %548 = sbr.rel (%p546) target = $region60
        $region59: #{tnet_forward.5} parent=39 // pred_region
          _
        $region60: #{tnet_forward.5} parent=39 // pred_fallthru
          _
      $region40: #{tnet_forward.5} parent=5 // pred_fallthru
        _
      %p549 = scmp.le.s32.totalorder 2, %s15
      // Predicated region
      $region61: #{tnet_forward.5} parent=5 // pred_check
        %p550 = pneg %p549
      $region62: #{tnet_forward.5} parent=5 // pred_check_branch
        %552 = sbr.rel (%p550) target = $region64
      $region63: #{tnet_forward.5} parent=5 // pred_region
        %s553 = ssub.s32 %s15, 2
        // Predicated region
        $region65: #{tnet_forward.5} parent=63 // pred_check
          %p554 = pneg %p170
        $region66: #{tnet_forward.5} parent=63 // pred_check_branch
          %556 = sbr.rel (%p554) target = $region68
        $region67: #{tnet_forward.5} parent=63 // pred_region
          %s557 = smul.u32 2, %s27
          %p558 = scmp.lt.s32.totalorder %s26, 1
          %s559 = scalar_select %p558, %s26, 1
          %p560 = scmp.lt.s32.totalorder %s557, 1
          %s561 = scalar_select %p560, %s557, 1
          %s562 = smul.addr %s559, 2
          %s563 = sadd.s32 %s561, %s562
          %s564 = smul.addr %s563, 4
          %s565 = scalar_lea.vmem %s5, %s564
        $region68: #{tnet_forward.5} parent=63 // pred_fallthru
          _
        // Predicated region
        $region69: #{tnet_forward.5} parent=63 // pred_check
          %p566 = pneg %p196
        $region70: #{tnet_forward.5} parent=63 // pred_check_branch
          %568 = sbr.rel (%p566) target = $region72
        $region71: #{tnet_forward.5} parent=63 // pred_region
          %p569 = scmp.lt.s32.totalorder %s26, 1
          %s570 = scalar_select %p569, %s26, 1
          %s571 = scalar_lea.vmem %s6, %s570
        $region72: #{tnet_forward.5} parent=63 // pred_fallthru
          _
        // Predicated region
        $region73: #{tnet_forward.5} parent=63 // pred_check
          %p572 = pneg %p222
        $region74: #{tnet_forward.5} parent=63 // pred_check_branch
          %574 = sbr.rel (%p572) target = $region76
        $region75: #{tnet_forward.5} parent=63 // pred_region
          %p575 = scmp.lt.s32.totalorder %s26, 1
          %s576 = scalar_select %p575, %s26, 1
          %s577 = scalar_lea.vmem %s7, %s576
        $region76: #{tnet_forward.5} parent=63 // pred_fallthru
          _
      $region64: #{tnet_forward.5} parent=5 // pred_fallthru
        _
    $region6: #{tnet_forward.5} parent=1 // loop_footer
      %s19 = sadd.s32 1, %s15
    $region7: #{tnet_forward.5} parent=1 // loop_footer_branch
      %14 = sbr.rel target = $region3
    $region8: #{tnet_forward.5} parent=1 // loop_exit
      _
    %578 = vsyncpa [#allocation3], 1
    %s579 = scalar_lea.sflag [#allocation3], 1
    %580 = vsyncpa %s579, 1

// kernel: tnet_forward.4
$region0: #{tnet_forward.4}
  #allocation0 [shape = 'u32[]', space=smem, size = 0x4, offset = 0x4, fixed_abs, tag = 'smem constant byte address 0x4 - core index']
  #allocation1 [shape = 'u32[144,128]{1,0:T(1,128)}', space=vmem, size = 0x12000, scoped, tag = 'internal scratch']
  %s0 = inlined_call_operand.vmem [shape: f32[3,128], index: 0, kind: input, shape index: {}]
  %s1 = inlined_call_operand.vmem [shape: f32[1,128], index: 1, kind: input, shape index: {}]
  %s2 = inlined_call_operand.vmem [shape: f32[2,16,3], index: 2, kind: input, shape index: {}]
  %s3 = inlined_call_operand.vmem [shape: bf16[2,16,128], index: 3, kind: output, shape index: {0}]
  %s4 = inlined_call_operand.vmem [shape: f32[2,1,128], index: 4, kind: output, shape index: {1}]
  %s5 = inlined_call_operand.vmem [shape: f32[2,1,128], index: 5, kind: output, shape index: {2}]
  %6 = xla_tuple %s3, %s4, %s5
  %s7 = sld [smem:[#allocation0]]
  $region65: #{tnet_forward.4} parent=0
    _
  %s9 = ssub.s32 1, %s7
  %s10 = scalar_select 0, %s9, %s7
  loop: start=0, step=1, limit=4
  $region2: #{tnet_forward.4} parent=0 // loop_pre_header
    _
  $region3: #{tnet_forward.4} parent=0 // loop_header
    %s12 = sphi 0, %s16
    %p13 = scmp.ge.s32.totalorder %s12, 4
    %s19 = sphi 0, %s31
    %s20 = sphi 0, %s27
    %s21 = sphi 0, %s19
    %s22 = sphi 0, %s20
    %s23 = sphi 0, %s21
    %s24 = sphi 0, %s22
    %s32 = sphi 0, %s32
    %s34 = sphi 0, %s32
    %s35 = sphi 0, %s34
    %s49 = sphi 0, %s35
    %s53 = sphi 0, %s53
    %s55 = sphi 0, %s53
    %s56 = sphi 0, %s55
    %s70 = sphi 0, %s56
    %s78 = sphi 0, %s80
    %s81 = sphi 0, %s78
    %s82 = sphi 0, %s81
    %s98 = sphi 0, %s82
    %s106 = sphi 0, %s108
    %s109 = sphi 0, %s106
    %s110 = sphi 0, %s109
    %s126 = sphi 0, %s110
    %s132 = sphi 0, %s134
    %s135 = sphi 0, %s132
    %s136 = sphi 0, %s135
    %s152 = sphi 0, %s136
    %s158 = sphi 0, %s160
    %s161 = sphi 0, %s158
    %s162 = sphi 0, %s161
    %s178 = sphi 0, %s162
  $region4: #{tnet_forward.4} parent=0 // loop_header_branch
    %15 = sbr.rel (%p13) target = $region8
  $region5: #{tnet_forward.4} parent=0 // loop_body
    %s17 = ssub.s32 %s12, 1
    %s18 = ssub.s32 %s12, 2
    %s25 = sadd.s32 1, %s20
    %p26 = scmp.ge.s32.totalorder %s25, 1
    %s27 = scalar_select %p26, 0, %s25
    %s28 = sadd.s32 1, %s19
    %s29 = scalar_select %p26, %s28, %s19
    %p30 = scmp.ge.s32.totalorder %s29, 2
    %s31 = scalar_select %p30, 0, %s29
    %s33 = sadd.s32 %s32, 1
    %p36 = scmp.eq.s32.totalorder %s12, 1
    %p37 = scmp.ne.s32.totalorder %s32, %s34
    %p38 = scmp.eq.s32.totalorder %s12, 0
    %p39 = por %p37, %p38
    %p40 = scmp.ne.s32.totalorder %s32, %s34
    %p41 = scmp.eq.s32.totalorder %s17, 1
    %p42 = por %p40, %p41
    %p43 = scmp.ne.s32.totalorder %s34, %s35
    %p44 = scmp.eq.s32.totalorder %s17, 0
    %p45 = por %p43, %p44
    %p46 = scmp.ne.s32.totalorder %s34, %s35
    %p47 = scmp.eq.s32.totalorder %s18, 1
    %p48 = por %p46, %p47
    %p50 = scmp.ne.s32.totalorder %s35, %s49
    %p51 = scmp.eq.s32.totalorder %s18, 0
    %p52 = por %p50, %p51
    %s54 = sadd.s32 %s53, 1
    %p57 = scmp.eq.s32.totalorder %s12, 1
    %p58 = scmp.ne.s32.totalorder %s53, %s55
    %p59 = scmp.eq.s32.totalorder %s12, 0
    %p60 = por %p58, %p59
    %p61 = scmp.ne.s32.totalorder %s53, %s55
    %p62 = scmp.eq.s32.totalorder %s17, 1
    %p63 = por %p61, %p62
    %p64 = scmp.ne.s32.totalorder %s55, %s56
    %p65 = scmp.eq.s32.totalorder %s17, 0
    %p66 = por %p64, %p65
    %p67 = scmp.ne.s32.totalorder %s55, %s56
    %p68 = scmp.eq.s32.totalorder %s18, 1
    %p69 = por %p67, %p68
    %p71 = scmp.ne.s32.totalorder %s56, %s70
    %p72 = scmp.eq.s32.totalorder %s18, 0
    %p73 = por %p71, %p72
    %s74 = ssub.s32 %s19, %s31
    %s75 = ssub.s32 %s20, %s27
    %s76 = sor.u32 %s74, %s75
    %p77 = scmp.eq.s32.totalorder %s76, 0
    %s79 = sadd.s32 %s78, 1
    %s80 = scalar_select %p77, %s78, %s79
    %p83 = pneg %p77
    %p84 = scmp.eq.s32.totalorder %s12, 1
    %p85 = por %p83, %p84
    %p86 = scmp.ne.s32.totalorder %s78, %s81
    %p87 = scmp.eq.s32.totalorder %s12, 0
    %p88 = por %p86, %p87
    %p89 = scmp.ne.s32.totalorder %s78, %s81
    %p90 = scmp.eq.s32.totalorder %s17, 1
    %p91 = por %p89, %p90
    %p92 = scmp.ne.s32.totalorder %s81, %s82
    %p93 = scmp.eq.s32.totalorder %s17, 0
    %p94 = por %p92, %p93
    %p95 = scmp.ne.s32.totalorder %s81, %s82
    %p96 = scmp.eq.s32.totalorder %s18, 1
    %p97 = por %p95, %p96
    %p99 = scmp.ne.s32.totalorder %s82, %s98
    %p100 = scmp.eq.s32.totalorder %s18, 0
    %p101 = por %p99, %p100
    %s102 = ssub.s32 %s19, %s31
    %s103 = ssub.s32 %s20, %s27
    %s104 = sor.u32 %s102, %s103
    %p105 = scmp.eq.s32.totalorder %s104, 0
    %s107 = sadd.s32 %s106, 1
    %s108 = scalar_select %p105, %s106, %s107
    %p111 = pneg %p105
    %p112 = scmp.eq.s32.totalorder %s12, 1
    %p113 = por %p111, %p112
    %p114 = scmp.ne.s32.totalorder %s106, %s109
    %p115 = scmp.eq.s32.totalorder %s12, 0
    %p116 = por %p114, %p115
    %p117 = scmp.ne.s32.totalorder %s106, %s109
    %p118 = scmp.eq.s32.totalorder %s17, 1
    %p119 = por %p117, %p118
    %p120 = scmp.ne.s32.totalorder %s109, %s110
    %p121 = scmp.eq.s32.totalorder %s17, 0
    %p122 = por %p120, %p121
    %p123 = scmp.ne.s32.totalorder %s109, %s110
    %p124 = scmp.eq.s32.totalorder %s18, 1
    %p125 = por %p123, %p124
    %p127 = scmp.ne.s32.totalorder %s110, %s126
    %p128 = scmp.eq.s32.totalorder %s18, 0
    %p129 = por %p127, %p128
    %s130 = ssub.s32 %s19, %s31
    %p131 = scmp.eq.s32.totalorder %s130, 0
    %s133 = sadd.s32 %s132, 1
    %s134 = scalar_select %p131, %s132, %s133
    %p137 = pneg %p131
    %p138 = scmp.eq.s32.totalorder %s12, 1
    %p139 = por %p137, %p138
    %p140 = scmp.ne.s32.totalorder %s132, %s135
    %p141 = scmp.eq.s32.totalorder %s12, 0
    %p142 = por %p140, %p141
    %p143 = scmp.ne.s32.totalorder %s132, %s135
    %p144 = scmp.eq.s32.totalorder %s17, 1
    %p145 = por %p143, %p144
    %p146 = scmp.ne.s32.totalorder %s135, %s136
    %p147 = scmp.eq.s32.totalorder %s17, 0
    %p148 = por %p146, %p147
    %p149 = scmp.ne.s32.totalorder %s135, %s136
    %p150 = scmp.eq.s32.totalorder %s18, 1
    %p151 = por %p149, %p150
    %p153 = scmp.ne.s32.totalorder %s136, %s152
    %p154 = scmp.eq.s32.totalorder %s18, 0
    %p155 = por %p153, %p154
    %s156 = ssub.s32 %s19, %s31
    %p157 = scmp.eq.s32.totalorder %s156, 0
    %s159 = sadd.s32 %s158, 1
    %s160 = scalar_select %p157, %s158, %s159
    %p163 = pneg %p157
    %p164 = scmp.eq.s32.totalorder %s12, 1
    %p165 = por %p163, %p164
    %p166 = scmp.ne.s32.totalorder %s158, %s161
    %p167 = scmp.eq.s32.totalorder %s12, 0
    %p168 = por %p166, %p167
    %p169 = scmp.ne.s32.totalorder %s158, %s161
    %p170 = scmp.eq.s32.totalorder %s17, 1
    %p171 = por %p169, %p170
    %p172 = scmp.ne.s32.totalorder %s161, %s162
    %p173 = scmp.eq.s32.totalorder %s17, 0
    %p174 = por %p172, %p173
    %p175 = scmp.ne.s32.totalorder %s161, %s162
    %p176 = scmp.eq.s32.totalorder %s18, 1
    %p177 = por %p175, %p176
    %p179 = scmp.ne.s32.totalorder %s162, %s178
    %p180 = scmp.eq.s32.totalorder %s18, 0
    %p181 = por %p179, %p180
    %p182 = scmp.le.s32.totalorder 1, %s12
    %p183 = scmp.lt.s32.totalorder %s12, 3
    %p184 = pnand %p182, %p183
    %p185 = pneg %p184
    // Predicated region
    $region9: #{tnet_forward.4} parent=5 // pred_check
      _
    $region10: #{tnet_forward.4} parent=5 // pred_check_branch
      %187 = sbr.rel (%p184) target = $region12
    $region11: #{tnet_forward.4} parent=5 // pred_region
      %s188 = ssub.s32 %s12, 1
      // Predicated region
      $region13: #{tnet_forward.4} parent=11 // pred_check
        %p189 = pneg %p45
      $region14: #{tnet_forward.4} parent=11 // pred_check_branch
        %191 = sbr.rel (%p189) target = $region16
      $region15: #{tnet_forward.4} parent=11 // pred_region
        _
      $region16: #{tnet_forward.4} parent=11 // pred_fallthru
        _
      // Predicated region
      $region17: #{tnet_forward.4} parent=11 // pred_check
        %p192 = pneg %p66
      $region18: #{tnet_forward.4} parent=11 // pred_check_branch
        %194 = sbr.rel (%p192) target = $region20
      $region19: #{tnet_forward.4} parent=11 // pred_region
        _
      $region20: #{tnet_forward.4} parent=11 // pred_fallthru
        _
    $region12: #{tnet_forward.4} parent=5 // pred_fallthru
      _
    %p195 = scmp.lt.s32.totalorder %s12, 2
    // Predicated region
    $region21: #{tnet_forward.4} parent=5 // pred_check
      %p196 = pneg %p195
    $region22: #{tnet_forward.4} parent=5 // pred_check_branch
      %198 = sbr.rel (%p196) target = $region24
    $region23: #{tnet_forward.4} parent=5 // pred_region
      // Predicated region
      $region25: #{tnet_forward.4} parent=23 // pred_check
        %p199 = pneg %p88
      $region26: #{tnet_forward.4} parent=23 // pred_check_branch
        %201 = sbr.rel (%p199) target = $region28
      $region27: #{tnet_forward.4} parent=23 // pred_region
        %s202 = smul.u32 2, %s20
        %p203 = scmp.lt.s32.totalorder %s19, 1
        %s204 = scalar_select %p203, %s19, 1
        %p205 = scmp.lt.s32.totalorder %s202, 1
        %s206 = scalar_select %p205, %s202, 1
        %s207 = smul.addr %s204, 2
        %s208 = sadd.s32 %s206, %s207
        %s209 = smul.addr %s208, 8
        %s210 = scalar_lea.vmem %s2, %s209
        %s211 = smul.u32 2, %s20
      $region28: #{tnet_forward.4} parent=23 // pred_fallthru
        _
    $region24: #{tnet_forward.4} parent=5 // pred_fallthru
      _
    %p212 = scmp.le.s32.totalorder 1, %s12
    %p213 = scmp.lt.s32.totalorder %s12, 3
    %p214 = pnand %p212, %p213
    %p215 = pneg %p214
    // Predicated region
    $region29: #{tnet_forward.4} parent=5 // pred_check
      _
    $region30: #{tnet_forward.4} parent=5 // pred_check_branch
      %217 = sbr.rel (%p214) target = $region32
    $region31: #{tnet_forward.4} parent=5 // pred_region
      %s218 = ssub.s32 %s12, 1
      %p219 = pneg %p45
      %p220 = pneg %p42
      %p221 = pneg %p66
      %p222 = pneg %p63
      %s223 = smul.u32 2, %s22
      %p224 = scmp.lt.s32.totalorder %s21, 1
      %s225 = scalar_select %p224, %s21, 1
      %p226 = scmp.lt.s32.totalorder %s223, 1
      %s227 = scalar_select %p226, %s223, 1
      %s228 = smul.addr %s225, 2
      %s229 = sadd.s32 %s227, %s228
      %s230 = smul.addr %s229, 8
      %s231 = scalar_lea.vmem %s2, %s230
      %p232 = pneg %p94
      %p233 = pneg %p91
      %p234 = pneg %p122
      %p235 = pneg %p119
      %s236 = smul.u32 2, %s22
      %p237 = scmp.lt.s32.totalorder %s21, 1
      %s238 = scalar_select %p237, %s21, 1
      %p239 = scmp.lt.s32.totalorder %s236, 1
      %s240 = scalar_select %p239, %s236, 1
      %s241 = smul.addr %s238, 2
      %s242 = sadd.s32 %s240, %s241
      %s243 = smul.addr %s242, 4
      %s244 = scalar_lea.vmem %s3, %s243
      %p245 = pneg %p148
      %p246 = pneg %p145
      %p247 = scmp.lt.s32.totalorder %s21, 1
      %s248 = scalar_select %p247, %s21, 1
      %s249 = scalar_lea.vmem %s4, %s248
      %p250 = pneg %p174
      %p251 = pneg %p171
      %p252 = scmp.lt.s32.totalorder %s21, 1
      %s253 = scalar_select %p252, %s21, 1
      %s254 = scalar_lea.vmem %s5, %s253
      %s255 = smul.u32 2, %s22
      %p256 = scmp.lt.s32.totalorder %s21, 1
      %s257 = scalar_select %p256, %s21, 1
      %p258 = scmp.lt.s32.totalorder %s255, 1
      %s259 = scalar_select %p258, %s255, 1
      %s260 = smul.addr %s257, 2
      %s261 = sadd.s32 %s259, %s260
      %s262 = smul.addr %s261, 8
      %s263 = scalar_lea.vmem %s2, %s262
      %s264 = smul.u32 2, %s22
      %s265 = smul.u32 2, %s22
      %p266 = scmp.lt.s32.totalorder %s21, 1
      %s267 = scalar_select %p266, %s21, 1
      %p268 = scmp.lt.s32.totalorder %s265, 1
      %s269 = scalar_select %p268, %s265, 1
      %s270 = smul.addr %s267, 2
      %s271 = sadd.s32 %s269, %s270
      %s272 = smul.addr %s271, 4
      %s273 = scalar_lea.vmem %s3, %s272
      %s274 = smul.u32 2, %s22
      %p275 = scmp.lt.s32.totalorder %s21, 1
      %s276 = scalar_select %p275, %s21, 1
      %s277 = scalar_lea.vmem %s4, %s276
      %p278 = scmp.lt.s32.totalorder %s21, 1
      %s279 = scalar_select %p278, %s21, 1
      %s280 = scalar_lea.vmem %s5, %s279
      %v281 = vld [vmem:[%s263] sm:$0xff]
      %v282 = vld [vmem:[%s263 + $0x8] sm:$0xff]
      %v283 = vld [vmem:[%s0] sm:$0x7]
      %v284 = vld [vmem:[%s1] sm:$0x1]
      %286 = vset.pattern.permute.xlu0 0
      %287 = vperm.xlu0 %286, %v281
      %v288 = vpop.permute.xlu0 %287
      %291 = vset.pattern.permute.xlu0 0
      %292 = vperm.xlu0 %291, %v282
      %v293 = vpop.permute.xlu0 %292
      %v295 = vlaneseq
      %v296 = vshrl.u32 %v295, 7
      %v297 = vsub.s32 0, %v296
      %v298 = vrot.slane %v283, %v297
      %v299 = vmul.f32 %v288, %v298
      %v300 = vmul.f32 %v293, %v298
      %v302 = vlaneseq
      %v303 = vshrl.u32 %v302, 7
      %v304 = vsub.s32 0, %v303
      %v305 = vrot.slane %v284, %v304
      %v307 = vadd.f32 %v305, %v299
      %v308 = vadd.f32 %v305, %v300
      %309 = vset.pattern.permute.xlu0 1
      %310 = vperm.xlu0 %309, %v281
      %v311 = vpop.permute.xlu0 %310
      %313 = vset.pattern.permute.xlu0 1
      %314 = vperm.xlu0 %313, %v282
      %v315 = vpop.permute.xlu0 %314
      %v317 = vlaneseq
      %v318 = vshrl.u32 %v317, 7
      %v319 = vsub.s32 1, %v318
      %v320 = vrot.slane %v283, %v319
      %v321 = vmul.f32 %v311, %v320
      %v322 = vmul.f32 %v315, %v320
      %v323 = vadd.f32 %v307, %v321
      %v324 = vadd.f32 %v308, %v322
      %325 = vset.pattern.permute.xlu0 2
      %326 = vperm.xlu0 %325, %v281
      %v327 = vpop.permute.xlu0 %326
      %329 = vset.pattern.permute.xlu0 2
      %330 = vperm.xlu0 %329, %v282
      %v331 = vpop.permute.xlu0 %330
      %v333 = vlaneseq
      %v334 = vshrl.u32 %v333, 7
      %v335 = vsub.s32 2, %v334
      %v336 = vrot.slane %v283, %v335
      %v337 = vmul.f32 %v327, %v336
      %v338 = vmul.f32 %v331, %v336
      %v339 = vadd.f32 %v323, %v337
      %v340 = vadd.f32 %v324, %v338
      %v341 = vmax.f32 %v339, 0.0
      %v342 = vmax.f32 %v340, 0.0
      %v343 = vpack.c.bf16 %v342, %v341
      %v345 = vunpack.c.l.b16 %v343
      %v346 = vunpack.c.h.b16 %v343
      %v347 = vpack.c.b16 %v345, %v345
      %v348 = vpack.c.b16 %v346, %v346
      %351 = vst [vmem:[%s273] sm:$0xf] %v347
      %352 = vst [vmem:[%s273 + $0x4] sm:$0xf] %v348
      %p353 = scmp.eq.s32.totalorder %s22, 0
      // Predicated region
      $region33: #{tnet_forward.4} parent=31 // pred_check
        %p354 = pneg %p353
      $region34: #{tnet_forward.4} parent=31 // pred_check_branch
        %356 = sbr.rel (%p354) target = $region36
      $region35: #{tnet_forward.4} parent=31 // pred_region
        %357 = vst [vmem:[%s277] sm:$0x1] 0.0
        %358 = vst [vmem:[%s280] sm:$0x1] 0.0
      $region36: #{tnet_forward.4} parent=31 // pred_fallthru
        _
      %v359 = vld [vmem:[%s277] sm:$0x1]
      %v360 = vadd.f32 %v341, %v342
      %v361 = vrot.slane %v360, 4
      %v362 = vadd.f32 %v360, %v361
      %v363 = vrot.slane %v362, 2
      %v364 = vadd.f32 %v362, %v363
      %v365 = vrot.slane %v364, 1
      %v366 = vadd.f32 %v364, %v365
      %v367 = vadd.f32 %v359, %v366
      %368 = vst [vmem:[%s277] sm:$0x1] %v367
      %v369 = vld [vmem:[%s280] sm:$0x1]
      %v370 = vmul.f32 %v341, %v341
      %v371 = vmul.f32 %v342, %v342
      %v372 = vadd.f32 %v370, %v371
      %v373 = vrot.slane %v372, 4
      %v374 = vadd.f32 %v372, %v373
      %v375 = vrot.slane %v374, 2
      %v376 = vadd.f32 %v374, %v375
      %v377 = vrot.slane %v376, 1
      %v378 = vadd.f32 %v376, %v377
      %v379 = vadd.f32 %v369, %v378
      %380 = vst [vmem:[%s280] sm:$0x1] %v379
      %s381 = smul.u32 2, %s22
      %p382 = scmp.lt.s32.totalorder %s21, 1
      %s383 = scalar_select %p382, %s21, 1
      %p384 = scmp.lt.s32.totalorder %s381, 1
      %s385 = scalar_select %p384, %s381, 1
      %s386 = smul.addr %s383, 2
      %s387 = sadd.s32 %s385, %s386
      %s388 = smul.addr %s387, 4
      %s389 = scalar_lea.vmem %s3, %s388
      %p390 = scmp.lt.s32.totalorder %s21, 1
      %s391 = scalar_select %p390, %s21, 1
      %s392 = scalar_lea.vmem %s4, %s391
      %p393 = scmp.lt.s32.totalorder %s21, 1
      %s394 = scalar_select %p393, %s21, 1
      %s395 = scalar_lea.vmem %s5, %s394
      // Predicated region
      $region37: #{tnet_forward.4} parent=31 // pred_check
        %p396 = pneg %p119
      $region38: #{tnet_forward.4} parent=31 // pred_check_branch
        %398 = sbr.rel (%p396) target = $region40
      $region39: #{tnet_forward.4} parent=31 // pred_region
        %s399 = smul.u32 2, %s22
      $region40: #{tnet_forward.4} parent=31 // pred_fallthru
        _
      // Predicated region
      $region41: #{tnet_forward.4} parent=31 // pred_check
        %p400 = pneg %p145
      $region42: #{tnet_forward.4} parent=31 // pred_check_branch
        %402 = sbr.rel (%p400) target = $region44
      $region43: #{tnet_forward.4} parent=31 // pred_region
        _
      $region44: #{tnet_forward.4} parent=31 // pred_fallthru
        _
      // Predicated region
      $region45: #{tnet_forward.4} parent=31 // pred_check
        %p403 = pneg %p171
      $region46: #{tnet_forward.4} parent=31 // pred_check_branch
        %405 = sbr.rel (%p403) target = $region48
      $region47: #{tnet_forward.4} parent=31 // pred_region
        _
      $region48: #{tnet_forward.4} parent=31 // pred_fallthru
        _
    $region32: #{tnet_forward.4} parent=5 // pred_fallthru
      _
    %p406 = scmp.le.s32.totalorder 2, %s12
    // Predicated region
    $region49: #{tnet_forward.4} parent=5 // pred_check
      %p407 = pneg %p406
    $region50: #{tnet_forward.4} parent=5 // pred_check_branch
      %409 = sbr.rel (%p407) target = $region52
    $region51: #{tnet_forward.4} parent=5 // pred_region
      %s410 = ssub.s32 %s12, 2
      // Predicated region
      $region53: #{tnet_forward.4} parent=51 // pred_check
        %p411 = pneg %p125
      $region54: #{tnet_forward.4} parent=51 // pred_check_branch
        %413 = sbr.rel (%p411) target = $region56
      $region55: #{tnet_forward.4} parent=51 // pred_region
        %s414 = smul.u32 2, %s24
        %p415 = scmp.lt.s32.totalorder %s23, 1
        %s416 = scalar_select %p415, %s23, 1
        %p417 = scmp.lt.s32.totalorder %s414, 1
        %s418 = scalar_select %p417, %s414, 1
        %s419 = smul.addr %s416, 2
        %s420 = sadd.s32 %s418, %s419
        %s421 = smul.addr %s420, 4
        %s422 = scalar_lea.vmem %s3, %s421
      $region56: #{tnet_forward.4} parent=51 // pred_fallthru
        _
      // Predicated region
      $region57: #{tnet_forward.4} parent=51 // pred_check
        %p423 = pneg %p151
      $region58: #{tnet_forward.4} parent=51 // pred_check_branch
        %425 = sbr.rel (%p423) target = $region60
      $region59: #{tnet_forward.4} parent=51 // pred_region
        %p426 = scmp.lt.s32.totalorder %s23, 1
        %s427 = scalar_select %p426, %s23, 1
        %s428 = scalar_lea.vmem %s4, %s427
      $region60: #{tnet_forward.4} parent=51 // pred_fallthru
        _
      // Predicated region
      $region61: #{tnet_forward.4} parent=51 // pred_check
        %p429 = pneg %p177
      $region62: #{tnet_forward.4} parent=51 // pred_check_branch
        %431 = sbr.rel (%p429) target = $region64
      $region63: #{tnet_forward.4} parent=51 // pred_region
        %p432 = scmp.lt.s32.totalorder %s23, 1
        %s433 = scalar_select %p432, %s23, 1
        %s434 = scalar_lea.vmem %s5, %s433
      $region64: #{tnet_forward.4} parent=51 // pred_fallthru
        _
    $region52: #{tnet_forward.4} parent=5 // pred_fallthru
      _
  $region6: #{tnet_forward.4} parent=0 // loop_footer
    %s16 = sadd.s32 1, %s12
  $region7: #{tnet_forward.4} parent=0 // loop_footer_branch
    %11 = sbr.rel target = $region3
  $region8: #{tnet_forward.4} parent=0 // loop_exit
    _

// kernel: tnet_forward.6
$region0: #{tnet_forward.6}
  #allocation0 [shape = 'u32[]', space=smem, size = 0x4, offset = 0x4, fixed_abs, tag = 'smem constant byte address 0x4 - core index']
  #allocation1 [shape = 'u32[144,128]{1,0:T(1,128)}', space=vmem, size = 0x12000, scoped, tag = 'internal scratch']
  %s0 = inlined_call_operand.vmem [shape: f32[1,128], index: 0, kind: input, shape index: {}]
  %s1 = inlined_call_operand.vmem [shape: f32[1,128], index: 1, kind: input, shape index: {}]
  %s2 = inlined_call_operand.vmem [shape: bf16[128,1024], index: 2, kind: input, shape index: {}]
  %s3 = inlined_call_operand.hbm [shape: f32[1,1024], index: 3, kind: input, shape index: {}]
  %s4 = inlined_call_operand.vmem [shape: bf16[2,16,128], index: 4, kind: input, shape index: {}]
  %s5 = inlined_call_operand.vmem [shape: f32[2,1,1024], index: 5, kind: output, shape index: {0}]
  %s6 = inlined_call_operand.vmem [shape: f32[2,1,1024], index: 6, kind: output, shape index: {1}]
  %s7 = inlined_call_operand.vmem [shape: f32[2,1,1024], index: 7, kind: output, shape index: {2}]
  %s8 = inlined_call_operand.vmem [shape: f32[2,1,1024], index: 8, kind: output, shape index: {3}]
  %9 = xla_tuple %s5, %s6, %s7, %s8
  %s10 = sld [smem:[#allocation0]]
  $region85: #{tnet_forward.6} parent=0
    _
  %s12 = ssub.s32 1, %s10
  %s13 = scalar_select 0, %s12, %s10
  $region1: #{tnet_forward.6} parent=0
    #allocation2 [shape = 'u8[4096]{0}', space=vmem, size = 0x1000, scoped, tag = 'input window, operand 3, single buffered']
    #allocation3 [shape = 's32[2]{0}', space=sflag, size = 0x8, scoped, tag = 'scoped memory for tnet_forward.6']
    %14 = vsyncpa [#allocation3], 0
    loop: start=0, step=1, limit=4
    $region2: #{tnet_forward.6} parent=1 // loop_pre_header
      _
    $region3: #{tnet_forward.6} parent=1 // loop_header
      %s16 = sphi 0, %s20
      %p17 = scmp.ge.s32.totalorder %s16, 4
      %s23 = sphi 0, %s35
      %s24 = sphi 0, %s31
      %s25 = sphi 0, %s23
      %s26 = sphi 0, %s24
      %s27 = sphi 0, %s25
      %s28 = sphi 0, %s26
      %s36 = sphi 0, %s36
      %s38 = sphi 0, %s36
      %s39 = sphi 0, %s38
      %s53 = sphi 0, %s39
      %s57 = sphi 0, %s57
      %s59 = sphi 0, %s57
      %s60 = sphi 0, %s59
      %s74 = sphi 0, %s60
      %s78 = sphi 0, %s78
      %s80 = sphi 0, %s78
      %s81 = sphi 0, %s80
      %s95 = sphi 0, %s81
      %s99 = sphi 0, %s99
      %s101 = sphi 0, %s99
      %s102 = sphi 0, %s101
      %s116 = sphi 0, %s102
      %s124 = sphi 0, %s126
      %s127 = sphi 0, %s124
      %s128 = sphi 0, %s127
      %s144 = sphi 0, %s128
      %s150 = sphi 0, %s152
      %s153 = sphi 0, %s150
      %s154 = sphi 0, %s153
      %s170 = sphi 0, %s154
      %s176 = sphi 0, %s178
      %s179 = sphi 0, %s176
      %s180 = sphi 0, %s179
      %s196 = sphi 0, %s180
      %s202 = sphi 0, %s204
      %s205 = sphi 0, %s202
      %s206 = sphi 0, %s205
      %s222 = sphi 0, %s206
      %s228 = sphi 0, %s230
      %s231 = sphi 0, %s228
      %s232 = sphi 0, %s231
      %s248 = sphi 0, %s232
    $region4: #{tnet_forward.6} parent=1 // loop_header_branch
      %19 = sbr.rel (%p17) target = $region8
    $region5: #{tnet_forward.6} parent=1 // loop_body
      %s21 = ssub.s32 %s16, 1
      %s22 = ssub.s32 %s16, 2
      %s29 = sadd.s32 1, %s24
      %p30 = scmp.ge.s32.totalorder %s29, 1
      %s31 = scalar_select %p30, 0, %s29
      %s32 = sadd.s32 1, %s23
      %s33 = scalar_select %p30, %s32, %s23
      %p34 = scmp.ge.s32.totalorder %s33, 2
      %s35 = scalar_select %p34, 0, %s33
      %s37 = sadd.s32 %s36, 1
      %p40 = scmp.eq.s32.totalorder %s16, 1
      %p41 = scmp.ne.s32.totalorder %s36, %s38
      %p42 = scmp.eq.s32.totalorder %s16, 0
      %p43 = por %p41, %p42
      %p44 = scmp.ne.s32.totalorder %s36, %s38
      %p45 = scmp.eq.s32.totalorder %s21, 1
      %p46 = por %p44, %p45
      %p47 = scmp.ne.s32.totalorder %s38, %s39
      %p48 = scmp.eq.s32.totalorder %s21, 0
      %p49 = por %p47, %p48
      %p50 = scmp.ne.s32.totalorder %s38, %s39
      %p51 = scmp.eq.s32.totalorder %s22, 1
      %p52 = por %p50, %p51
      %p54 = scmp.ne.s32.totalorder %s39, %s53
      %p55 = scmp.eq.s32.totalorder %s22, 0
      %p56 = por %p54, %p55
      %s58 = sadd.s32 %s57, 1
      %p61 = scmp.eq.s32.totalorder %s16, 1
      %p62 = scmp.ne.s32.totalorder %s57, %s59
      %p63 = scmp.eq.s32.totalorder %s16, 0
      %p64 = por %p62, %p63
      %p65 = scmp.ne.s32.totalorder %s57, %s59
      %p66 = scmp.eq.s32.totalorder %s21, 1
      %p67 = por %p65, %p66
      %p68 = scmp.ne.s32.totalorder %s59, %s60
      %p69 = scmp.eq.s32.totalorder %s21, 0
      %p70 = por %p68, %p69
      %p71 = scmp.ne.s32.totalorder %s59, %s60
      %p72 = scmp.eq.s32.totalorder %s22, 1
      %p73 = por %p71, %p72
      %p75 = scmp.ne.s32.totalorder %s60, %s74
      %p76 = scmp.eq.s32.totalorder %s22, 0
      %p77 = por %p75, %p76
      %s79 = sadd.s32 %s78, 1
      %p82 = scmp.eq.s32.totalorder %s16, 1
      %p83 = scmp.ne.s32.totalorder %s78, %s80
      %p84 = scmp.eq.s32.totalorder %s16, 0
      %p85 = por %p83, %p84
      %p86 = scmp.ne.s32.totalorder %s78, %s80
      %p87 = scmp.eq.s32.totalorder %s21, 1
      %p88 = por %p86, %p87
      %p89 = scmp.ne.s32.totalorder %s80, %s81
      %p90 = scmp.eq.s32.totalorder %s21, 0
      %p91 = por %p89, %p90
      %p92 = scmp.ne.s32.totalorder %s80, %s81
      %p93 = scmp.eq.s32.totalorder %s22, 1
      %p94 = por %p92, %p93
      %p96 = scmp.ne.s32.totalorder %s81, %s95
      %p97 = scmp.eq.s32.totalorder %s22, 0
      %p98 = por %p96, %p97
      %s100 = sadd.s32 %s99, 1
      %p103 = scmp.eq.s32.totalorder %s16, 1
      %p104 = scmp.ne.s32.totalorder %s99, %s101
      %p105 = scmp.eq.s32.totalorder %s16, 0
      %p106 = por %p104, %p105
      %p107 = scmp.ne.s32.totalorder %s99, %s101
      %p108 = scmp.eq.s32.totalorder %s21, 1
      %p109 = por %p107, %p108
      %p110 = scmp.ne.s32.totalorder %s101, %s102
      %p111 = scmp.eq.s32.totalorder %s21, 0
      %p112 = por %p110, %p111
      %p113 = scmp.ne.s32.totalorder %s101, %s102
      %p114 = scmp.eq.s32.totalorder %s22, 1
      %p115 = por %p113, %p114
      %p117 = scmp.ne.s32.totalorder %s102, %s116
      %p118 = scmp.eq.s32.totalorder %s22, 0
      %p119 = por %p117, %p118
      %s120 = ssub.s32 %s23, %s35
      %s121 = ssub.s32 %s24, %s31
      %s122 = sor.u32 %s120, %s121
      %p123 = scmp.eq.s32.totalorder %s122, 0
      %s125 = sadd.s32 %s124, 1
      %s126 = scalar_select %p123, %s124, %s125
      %p129 = pneg %p123
      %p130 = scmp.eq.s32.totalorder %s16, 1
      %p131 = por %p129, %p130
      %p132 = scmp.ne.s32.totalorder %s124, %s127
      %p133 = scmp.eq.s32.totalorder %s16, 0
      %p134 = por %p132, %p133
      %p135 = scmp.ne.s32.totalorder %s124, %s127
      %p136 = scmp.eq.s32.totalorder %s21, 1
      %p137 = por %p135, %p136
      %p138 = scmp.ne.s32.totalorder %s127, %s128
      %p139 = scmp.eq.s32.totalorder %s21, 0
      %p140 = por %p138, %p139
      %p141 = scmp.ne.s32.totalorder %s127, %s128
      %p142 = scmp.eq.s32.totalorder %s22, 1
      %p143 = por %p141, %p142
      %p145 = scmp.ne.s32.totalorder %s128, %s144
      %p146 = scmp.eq.s32.totalorder %s22, 0
      %p147 = por %p145, %p146
      %s148 = ssub.s32 %s23, %s35
      %p149 = scmp.eq.s32.totalorder %s148, 0
      %s151 = sadd.s32 %s150, 1
      %s152 = scalar_select %p149, %s150, %s151
      %p155 = pneg %p149
      %p156 = scmp.eq.s32.totalorder %s16, 1
      %p157 = por %p155, %p156
      %p158 = scmp.ne.s32.totalorder %s150, %s153
      %p159 = scmp.eq.s32.totalorder %s16, 0
      %p160 = por %p158, %p159
      %p161 = scmp.ne.s32.totalorder %s150, %s153
      %p162 = scmp.eq.s32.totalorder %s21, 1
      %p163 = por %p161, %p162
      %p164 = scmp.ne.s32.totalorder %s153, %s154
      %p165 = scmp.eq.s32.totalorder %s21, 0
      %p166 = por %p164, %p165
      %p167 = scmp.ne.s32.totalorder %s153, %s154
      %p168 = scmp.eq.s32.totalorder %s22, 1
      %p169 = por %p167, %p168
      %p171 = scmp.ne.s32.totalorder %s154, %s170
      %p172 = scmp.eq.s32.totalorder %s22, 0
      %p173 = por %p171, %p172
      %s174 = ssub.s32 %s23, %s35
      %p175 = scmp.eq.s32.totalorder %s174, 0
      %s177 = sadd.s32 %s176, 1
      %s178 = scalar_select %p175, %s176, %s177
      %p181 = pneg %p175
      %p182 = scmp.eq.s32.totalorder %s16, 1
      %p183 = por %p181, %p182
      %p184 = scmp.ne.s32.totalorder %s176, %s179
      %p185 = scmp.eq.s32.totalorder %s16, 0
      %p186 = por %p184, %p185
      %p187 = scmp.ne.s32.totalorder %s176, %s179
      %p188 = scmp.eq.s32.totalorder %s21, 1
      %p189 = por %p187, %p188
      %p190 = scmp.ne.s32.totalorder %s179, %s180
      %p191 = scmp.eq.s32.totalorder %s21, 0
      %p192 = por %p190, %p191
      %p193 = scmp.ne.s32.totalorder %s179, %s180
      %p194 = scmp.eq.s32.totalorder %s22, 1
      %p195 = por %p193, %p194
      %p197 = scmp.ne.s32.totalorder %s180, %s196
      %p198 = scmp.eq.s32.totalorder %s22, 0
      %p199 = por %p197, %p198
      %s200 = ssub.s32 %s23, %s35
      %p201 = scmp.eq.s32.totalorder %s200, 0
      %s203 = sadd.s32 %s202, 1
      %s204 = scalar_select %p201, %s202, %s203
      %p207 = pneg %p201
      %p208 = scmp.eq.s32.totalorder %s16, 1
      %p209 = por %p207, %p208
      %p210 = scmp.ne.s32.totalorder %s202, %s205
      %p211 = scmp.eq.s32.totalorder %s16, 0
      %p212 = por %p210, %p211
      %p213 = scmp.ne.s32.totalorder %s202, %s205
      %p214 = scmp.eq.s32.totalorder %s21, 1
      %p215 = por %p213, %p214
      %p216 = scmp.ne.s32.totalorder %s205, %s206
      %p217 = scmp.eq.s32.totalorder %s21, 0
      %p218 = por %p216, %p217
      %p219 = scmp.ne.s32.totalorder %s205, %s206
      %p220 = scmp.eq.s32.totalorder %s22, 1
      %p221 = por %p219, %p220
      %p223 = scmp.ne.s32.totalorder %s206, %s222
      %p224 = scmp.eq.s32.totalorder %s22, 0
      %p225 = por %p223, %p224
      %s226 = ssub.s32 %s23, %s35
      %p227 = scmp.eq.s32.totalorder %s226, 0
      %s229 = sadd.s32 %s228, 1
      %s230 = scalar_select %p227, %s228, %s229
      %p233 = pneg %p227
      %p234 = scmp.eq.s32.totalorder %s16, 1
      %p235 = por %p233, %p234
      %p236 = scmp.ne.s32.totalorder %s228, %s231
      %p237 = scmp.eq.s32.totalorder %s16, 0
      %p238 = por %p236, %p237
      %p239 = scmp.ne.s32.totalorder %s228, %s231
      %p240 = scmp.eq.s32.totalorder %s21, 1
      %p241 = por %p239, %p240
      %p242 = scmp.ne.s32.totalorder %s231, %s232
      %p243 = scmp.eq.s32.totalorder %s21, 0
      %p244 = por %p242, %p243
      %p245 = scmp.ne.s32.totalorder %s231, %s232
      %p246 = scmp.eq.s32.totalorder %s22, 1
      %p247 = por %p245, %p246
      %p249 = scmp.ne.s32.totalorder %s232, %s248
      %p250 = scmp.eq.s32.totalorder %s22, 0
      %p251 = por %p249, %p250
      %p252 = scmp.le.s32.totalorder 1, %s16
      %p253 = scmp.lt.s32.totalorder %s16, 3
      %p254 = pnand %p252, %p253
      %p255 = pneg %p254
      // Predicated region
      $region9: #{tnet_forward.6} parent=5 // pred_check
        _
      $region10: #{tnet_forward.6} parent=5 // pred_check_branch
        %257 = sbr.rel (%p254) target = $region12
      $region11: #{tnet_forward.6} parent=5 // pred_region
        %s258 = ssub.s32 %s16, 1
        // Predicated region
        $region13: #{tnet_forward.6} parent=11 // pred_check
          %p259 = pneg %p49
        $region14: #{tnet_forward.6} parent=11 // pred_check_branch
          %261 = sbr.rel (%p259) target = $region16
        $region15: #{tnet_forward.6} parent=11 // pred_region
          _
        $region16: #{tnet_forward.6} parent=11 // pred_fallthru
          _
        // Predicated region
        $region17: #{tnet_forward.6} parent=11 // pred_check
          %p262 = pneg %p70
        $region18: #{tnet_forward.6} parent=11 // pred_check_branch
          %264 = sbr.rel (%p262) target = $region20
        $region19: #{tnet_forward.6} parent=11 // pred_region
          _
        $region20: #{tnet_forward.6} parent=11 // pred_fallthru
          _
        // Predicated region
        $region21: #{tnet_forward.6} parent=11 // pred_check
          %p265 = pneg %p91
        $region22: #{tnet_forward.6} parent=11 // pred_check_branch
          %267 = sbr.rel (%p265) target = $region24
        $region23: #{tnet_forward.6} parent=11 // pred_region
          _
        $region24: #{tnet_forward.6} parent=11 // pred_fallthru
          _
        // Predicated region
        $region25: #{tnet_forward.6} parent=11 // pred_check
          %p268 = pneg %p112
        $region26: #{tnet_forward.6} parent=11 // pred_check_branch
          %270 = sbr.rel (%p268) target = $region28
        $region27: #{tnet_forward.6} parent=11 // pred_region
          %s272 = ssub.s32 128, 128
          %273 = vsyncadd [#allocation3], %s272
          %s275 = sshll.u32 [#allocation2], 4
          %s276 = int_to_ptr.vmem [resolvable:$true] %s275
          %278 = dma.hbm_to_vmem [thread:$0]  %s3, 128, %s276, [#allocation3]
        $region28: #{tnet_forward.6} parent=11 // pred_fallthru
          _
      $region12: #{tnet_forward.6} parent=5 // pred_fallthru
        _
      %p279 = scmp.lt.s32.totalorder %s16, 2
      // Predicated region
      $region29: #{tnet_forward.6} parent=5 // pred_check
        %p280 = pneg %p279
      $region30: #{tnet_forward.6} parent=5 // pred_check_branch
        %282 = sbr.rel (%p280) target = $region32
      $region31: #{tnet_forward.6} parent=5 // pred_region
        // Predicated region
        $region33: #{tnet_forward.6} parent=31 // pred_check
          %p283 = pneg %p134
        $region34: #{tnet_forward.6} parent=31 // pred_check_branch
          %285 = sbr.rel (%p283) target = $region36
        $region35: #{tnet_forward.6} parent=31 // pred_region
          %s286 = smul.u32 2, %s24
          %p287 = scmp.lt.s32.totalorder %s23, 1
          %s288 = scalar_select %p287, %s23, 1
          %p289 = scmp.lt.s32.totalorder %s286, 1
          %s290 = scalar_select %p289, %s286, 1
          %s291 = smul.addr %s288, 2
          %s292 = sadd.s32 %s290, %s291
          %s293 = smul.addr %s292, 4
          %s294 = scalar_lea.vmem %s4, %s293
          %s295 = smul.u32 2, %s24
        $region36: #{tnet_forward.6} parent=31 // pred_fallthru
          _
      $region32: #{tnet_forward.6} parent=5 // pred_fallthru
        _
      %p296 = scmp.le.s32.totalorder 1, %s16
      %p297 = scmp.lt.s32.totalorder %s16, 3
      %p298 = pnand %p296, %p297
      %p299 = pneg %p298
      // Predicated region
      $region37: #{tnet_forward.6} parent=5 // pred_check
        _
      $region38: #{tnet_forward.6} parent=5 // pred_check_branch
        %301 = sbr.rel (%p298) target = $region40
      $region39: #{tnet_forward.6} parent=5 // pred_region
        %s302 = ssub.s32 %s16, 1
        // Predicated region
        $region41: #{tnet_forward.6} parent=39 // pred_check
          %p303 = pneg %p112
        $region42: #{tnet_forward.6} parent=39 // pred_check_branch
          %305 = sbr.rel (%p303) target = $region44
        $region43: #{tnet_forward.6} parent=39 // pred_region
          %306 = dma.done [#allocation3], 128
        $region44: #{tnet_forward.6} parent=39 // pred_fallthru
          _
        %p307 = pneg %p49
        %p308 = pneg %p46
        %p309 = pneg %p70
        %p310 = pneg %p67
        %p311 = pneg %p91
        %p312 = pneg %p88
        %p313 = pneg %p112
        %p314 = pneg %p109
        %s315 = smul.u32 2, %s26
        %p316 = scmp.lt.s32.totalorder %s25, 1
        %s317 = scalar_select %p316, %s25, 1
        %p318 = scmp.lt.s32.totalorder %s315, 1
        %s319 = scalar_select %p318, %s315, 1
        %s320 = smul.addr %s317, 2
        %s321 = sadd.s32 %s319, %s320
        %s322 = smul.addr %s321, 4
        %s323 = scalar_lea.vmem %s4, %s322
        %p324 = pneg %p140
        %p325 = pneg %p137
        %p326 = pneg %p166
        %p327 = pneg %p163
        %p328 = scmp.lt.s32.totalorder %s25, 1
        %s329 = scalar_select %p328, %s25, 1
        %s330 = smul.addr %s329, 8
        %s331 = scalar_lea.vmem %s5, %s330
        %p332 = pneg %p192
        %p333 = pneg %p189
        %p334 = scmp.lt.s32.totalorder %s25, 1
        %s335 = scalar_select %p334, %s25, 1
        %s336 = smul.addr %s335, 8
        %s337 = scalar_lea.vmem %s6, %s336
        %p338 = pneg %p218
        %p339 = pneg %p215
        %p340 = scmp.lt.s32.totalorder %s25, 1
        %s341 = scalar_select %p340, %s25, 1
        %s342 = smul.addr %s341, 8
        %s343 = scalar_lea.vmem %s7, %s342
        %p344 = pneg %p244
        %p345 = pneg %p241
        %p346 = scmp.lt.s32.totalorder %s25, 1
        %s347 = scalar_select %p346, %s25, 1
        %s348 = smul.addr %s347, 8
        %s349 = scalar_lea.vmem %s8, %s348
        %s350 = smul.u32 2, %s26
        %p351 = scmp.lt.s32.totalorder %s25, 1
        %s352 = scalar_select %p351, %s25, 1
        %p353 = scmp.lt.s32.totalorder %s350, 1
        %s354 = scalar_select %p353, %s350, 1
        %s355 = smul.addr %s352, 2
        %s356 = sadd.s32 %s354, %s355
        %s357 = smul.addr %s356, 4
        %s358 = scalar_lea.vmem %s4, %s357
        %s359 = smul.u32 2, %s26
        %p360 = scmp.lt.s32.totalorder %s25, 1
        %s361 = scalar_select %p360, %s25, 1
        %s362 = smul.addr %s361, 8
        %s363 = scalar_lea.vmem %s5, %s362
        %p364 = scmp.lt.s32.totalorder %s25, 1
        %s365 = scalar_select %p364, %s25, 1
        %s366 = smul.addr %s365, 8
        %s367 = scalar_lea.vmem %s6, %s366
        %p368 = scmp.lt.s32.totalorder %s25, 1
        %s369 = scalar_select %p368, %s25, 1
        %s370 = smul.addr %s369, 8
        %s371 = scalar_lea.vmem %s7, %s370
        %p372 = scmp.lt.s32.totalorder %s25, 1
        %s373 = scalar_select %p372, %s25, 1
        %s374 = smul.addr %s373, 8
        %s375 = scalar_lea.vmem %s8, %s374
        %v377 = vld [vmem:[%s358] sm:$0xf]
        %v378 = vld [vmem:[%s358 + $0x4] sm:$0xf]
        %v379 = vunpack.c.l.bf16 %v377
        %v380 = vunpack.c.l.bf16 %v378
        %v381 = vld [vmem:[%s0] sm:$0x1]
        %v383 = vlaneseq
        %v384 = vshrl.u32 %v383, 7
        %v385 = vsub.s32 0, %v384
        %v386 = vrot.slane %v381, %v385
        %v388 = vmul.f32 %v379, %v386
        %v389 = vmul.f32 %v380, %v386
        %v390 = vld [vmem:[%s1] sm:$0x1]
        %v392 = vlaneseq
        %v393 = vshrl.u32 %v392, 7
        %v394 = vsub.s32 0, %v393
        %v395 = vrot.slane %v390, %v394
        %v397 = vadd.f32 %v388, %v395
        %v398 = vadd.f32 %v389, %v395
        %v399 = vld [vmem:[%s2] sm:$0xff]
        %v400 = vld [vmem:[%s2 + $0x8] sm:$0xff]
        %v401 = vld [vmem:[%s2 + $0x10] sm:$0xff]
        %v402 = vld [vmem:[%s2 + $0x18] sm:$0xff]
        %v403 = vld [vmem:[%s2 + $0x20] sm:$0xff]
        %v404 = vld [vmem:[%s2 + $0x28] sm:$0xff]
        %v405 = vld [vmem:[%s2 + $0x30] sm:$0xff]
        %v406 = vld [vmem:[%s2 + $0x38] sm:$0xff]
        %v407 = vld [vmem:[%s2 + $0x40] sm:$0xff]
        %v408 = vld [vmem:[%s2 + $0x48] sm:$0xff]
        %v409 = vld [vmem:[%s2 + $0x50] sm:$0xff]
        %v410 = vld [vmem:[%s2 + $0x58] sm:$0xff]
        %v411 = vld [vmem:[%s2 + $0x60] sm:$0xff]
        %v412 = vld [vmem:[%s2 + $0x68] sm:$0xff]
        %v413 = vld [vmem:[%s2 + $0x70] sm:$0xff]
        %v414 = vld [vmem:[%s2 + $0x78] sm:$0xff]
        %v415 = vld [vmem:[%s2 + $0x80] sm:$0xff]
        %v416 = vld [vmem:[%s2 + $0x88] sm:$0xff]
        %v417 = vld [vmem:[%s2 + $0x90] sm:$0xff]
        %v418 = vld [vmem:[%s2 + $0x98] sm:$0xff]
        %v419 = vld [vmem:[%s2 + $0xa0] sm:$0xff]
        %v420 = vld [vmem:[%s2 + $0xa8] sm:$0xff]
        %v421 = vld [vmem:[%s2 + $0xb0] sm:$0xff]
        %v422 = vld [vmem:[%s2 + $0xb8] sm:$0xff]
        %v423 = vld [vmem:[%s2 + $0xc0] sm:$0xff]
        %v424 = vld [vmem:[%s2 + $0xc8] sm:$0xff]
        %v425 = vld [vmem:[%s2 + $0xd0] sm:$0xff]
        %v426 = vld [vmem:[%s2 + $0xd8] sm:$0xff]
        %v427 = vld [vmem:[%s2 + $0xe0] sm:$0xff]
        %v428 = vld [vmem:[%s2 + $0xe8] sm:$0xff]
        %v429 = vld [vmem:[%s2 + $0xf0] sm:$0xff]
        %v430 = vld [vmem:[%s2 + $0xf8] sm:$0xff]
        %v431 = vld [vmem:[%s2 + $0x100] sm:$0xff]
        %v432 = vld [vmem:[%s2 + $0x108] sm:$0xff]
        %v433 = vld [vmem:[%s2 + $0x110] sm:$0xff]
        %v434 = vld [vmem:[%s2 + $0x118] sm:$0xff]
        %v435 = vld [vmem:[%s2 + $0x120] sm:$0xff]
        %v436 = vld [vmem:[%s2 + $0x128] sm:$0xff]
        %v437 = vld [vmem:[%s2 + $0x130] sm:$0xff]
        %v438 = vld [vmem:[%s2 + $0x138] sm:$0xff]
        %v439 = vld [vmem:[%s2 + $0x140] sm:$0xff]
        %v440 = vld [vmem:[%s2 + $0x148] sm:$0xff]
        %v441 = vld [vmem:[%s2 + $0x150] sm:$0xff]
        %v442 = vld [vmem:[%s2 + $0x158] sm:$0xff]
        %v443 = vld [vmem:[%s2 + $0x160] sm:$0xff]
        %v444 = vld [vmem:[%s2 + $0x168] sm:$0xff]
        %v445 = vld [vmem:[%s2 + $0x170] sm:$0xff]
        %v446 = vld [vmem:[%s2 + $0x178] sm:$0xff]
        %v447 = vld [vmem:[%s2 + $0x180] sm:$0xff]
        %v448 = vld [vmem:[%s2 + $0x188] sm:$0xff]
        %v449 = vld [vmem:[%s2 + $0x190] sm:$0xff]
        %v450 = vld [vmem:[%s2 + $0x198] sm:$0xff]
        %v451 = vld [vmem:[%s2 + $0x1a0] sm:$0xff]
        %v452 = vld [vmem:[%s2 + $0x1a8] sm:$0xff]
        %v453 = vld [vmem:[%s2 + $0x1b0] sm:$0xff]
        %v454 = vld [vmem:[%s2 + $0x1b8] sm:$0xff]
        %v455 = vld [vmem:[%s2 + $0x1c0] sm:$0xff]
        %v456 = vld [vmem:[%s2 + $0x1c8] sm:$0xff]
        %v457 = vld [vmem:[%s2 + $0x1d0] sm:$0xff]
        %v458 = vld [vmem:[%s2 + $0x1d8] sm:$0xff]
        %v459 = vld [vmem:[%s2 + $0x1e0] sm:$0xff]
        %v460 = vld [vmem:[%s2 + $0x1e8] sm:$0xff]
        %v461 = vld [vmem:[%s2 + $0x1f0] sm:$0xff]
        %v462 = vld [vmem:[%s2 + $0x1f8] sm:$0xff]
        %v463 = vpack.c.bf16 %v398, %v397
        %v464 = vld [vmem:[#allocation2] sm:$0xff]
        %v466 = vlaneseq
        %v467 = vshrl.u32 %v466, 7
        %v468 = vsub.s32 0, %v467
        %v469 = vrot.slane %v464, %v468
        %v470 = vlaneseq
        %v471 = vshrl.u32 %v470, 7
        %v472 = vsub.s32 1, %v471
        %v473 = vrot.slane %v464, %v472
        %v474 = vlaneseq
        %v475 = vshrl.u32 %v474, 7
        %v476 = vsub.s32 2, %v475
        %v477 = vrot.slane %v464, %v476
        %v478 = vlaneseq
        %v479 = vshrl.u32 %v478, 7
        %v480 = vsub.s32 3, %v479
        %v481 = vrot.slane %v464, %v480
        %v482 = vlaneseq
        %v483 = vshrl.u32 %v482, 7
        %v484 = vsub.s32 4, %v483
        %v485 = vrot.slane %v464, %v484
        %v486 = vlaneseq
        %v487 = vshrl.u32 %v486, 7
        %v488 = vsub.s32 5, %v487
        %v489 = vrot.slane %v464, %v488
        %v490 = vlaneseq
        %v491 = vshrl.u32 %v490, 7
        %v492 = vsub.s32 6, %v491
        %v493 = vrot.slane %v464, %v492
        %v494 = vlaneseq
        %v495 = vshrl.u32 %v494, 7
        %v496 = vsub.s32 7, %v495
        %v497 = vrot.slane %v464, %v496
        %v570 = vunpack.c.l.b16 %v399
        %v571 = vunpack.c.h.b16 %v399
        %v572 = vunpack.c.l.b16 %v400
        %v573 = vunpack.c.h.b16 %v400
        %v574 = vunpack.c.l.b16 %v401
        %v575 = vunpack.c.h.b16 %v401
        %v576 = vunpack.c.l.b16 %v402
        %v577 = vunpack.c.h.b16 %v402
        %v578 = vunpack.c.l.b16 %v403
        %v579 = vunpack.c.h.b16 %v403
        %v580 = vunpack.c.l.b16 %v404
        %v581 = vunpack.c.h.b16 %v404
        %v582 = vunpack.c.l.b16 %v405
        %v583 = vunpack.c.h.b16 %v405
        %v584 = vunpack.c.l.b16 %v406
        %v585 = vunpack.c.h.b16 %v406
        %v586 = vunpack.c.l.b16 %v407
        %v587 = vunpack.c.h.b16 %v407
        %v588 = vunpack.c.l.b16 %v408
        %v589 = vunpack.c.h.b16 %v408
        %v590 = vunpack.c.l.b16 %v409
        %v591 = vunpack.c.h.b16 %v409
        %v592 = vunpack.c.l.b16 %v410
        %v593 = vunpack.c.h.b16 %v410
        %v594 = vunpack.c.l.b16 %v411
        %v595 = vunpack.c.h.b16 %v411
        %v596 = vunpack.c.l.b16 %v412
        %v597 = vunpack.c.h.b16 %v412
        %v598 = vunpack.c.l.b16 %v413
        %v599 = vunpack.c.h.b16 %v413
        %v600 = vunpack.c.l.b16 %v414
        %v601 = vunpack.c.h.b16 %v414
        %v602 = vunpack.c.l.b16 %v415
        %v603 = vunpack.c.h.b16 %v415
        %v604 = vunpack.c.l.b16 %v416
        %v605 = vunpack.c.h.b16 %v416
        %v606 = vunpack.c.l.b16 %v417
        %v607 = vunpack.c.h.b16 %v417
        %v608 = vunpack.c.l.b16 %v418
        %v609 = vunpack.c.h.b16 %v418
        %v610 = vunpack.c.l.b16 %v419
        %v611 = vunpack.c.h.b16 %v419
        %v612 = vunpack.c.l.b16 %v420
        %v613 = vunpack.c.h.b16 %v420
        %v614 = vunpack.c.l.b16 %v421
        %v615 = vunpack.c.h.b16 %v421
        %v616 = vunpack.c.l.b16 %v422
        %v617 = vunpack.c.h.b16 %v422
        %v618 = vunpack.c.l.b16 %v423
        %v619 = vunpack.c.h.b16 %v423
        %v620 = vunpack.c.l.b16 %v424
        %v621 = vunpack.c.h.b16 %v424
        %v622 = vunpack.c.l.b16 %v425
        %v623 = vunpack.c.h.b16 %v425
        %v624 = vunpack.c.l.b16 %v426
        %v625 = vunpack.c.h.b16 %v426
        %v626 = vunpack.c.l.b16 %v427
        %v627 = vunpack.c.h.b16 %v427
        %v628 = vunpack.c.l.b16 %v428
        %v629 = vunpack.c.h.b16 %v428
        %v630 = vunpack.c.l.b16 %v429
        %v631 = vunpack.c.h.b16 %v429
        %v632 = vunpack.c.l.b16 %v430
        %v633 = vunpack.c.h.b16 %v430
        %v634 = vunpack.c.l.b16 %v431
        %v635 = vunpack.c.h.b16 %v431
        %v636 = vunpack.c.l.b16 %v432
        %v637 = vunpack.c.h.b16 %v432
        %v638 = vunpack.c.l.b16 %v433
        %v639 = vunpack.c.h.b16 %v433
        %v640 = vunpack.c.l.b16 %v434
        %v641 = vunpack.c.h.b16 %v434
        %v642 = vunpack.c.l.b16 %v435
        %v643 = vunpack.c.h.b16 %v435
        %v644 = vunpack.c.l.b16 %v436
        %v645 = vunpack.c.h.b16 %v436
        %v646 = vunpack.c.l.b16 %v437
        %v647 = vunpack.c.h.b16 %v437
        %v648 = vunpack.c.l.b16 %v438
        %v649 = vunpack.c.h.b16 %v438
        %v650 = vunpack.c.l.b16 %v439
        %v651 = vunpack.c.h.b16 %v439
        %v652 = vunpack.c.l.b16 %v440
        %v653 = vunpack.c.h.b16 %v440
        %v654 = vunpack.c.l.b16 %v441
        %v655 = vunpack.c.h.b16 %v441
        %v656 = vunpack.c.l.b16 %v442
        %v657 = vunpack.c.h.b16 %v442
        %v658 = vunpack.c.l.b16 %v443
        %v659 = vunpack.c.h.b16 %v443
        %v660 = vunpack.c.l.b16 %v444
        %v661 = vunpack.c.h.b16 %v444
        %v662 = vunpack.c.l.b16 %v445
        %v663 = vunpack.c.h.b16 %v445
        %v664 = vunpack.c.l.b16 %v446
        %v665 = vunpack.c.h.b16 %v446
        %v666 = vunpack.c.l.b16 %v447
        %v667 = vunpack.c.h.b16 %v447
        %v668 = vunpack.c.l.b16 %v448
        %v669 = vunpack.c.h.b16 %v448
        %v670 = vunpack.c.l.b16 %v449
        %v671 = vunpack.c.h.b16 %v449
        %v672 = vunpack.c.l.b16 %v450
        %v673 = vunpack.c.h.b16 %v450
        %v674 = vunpack.c.l.b16 %v451
        %v675 = vunpack.c.h.b16 %v451
        %v676 = vunpack.c.l.b16 %v452
        %v677 = vunpack.c.h.b16 %v452
        %v678 = vunpack.c.l.b16 %v453
        %v679 = vunpack.c.h.b16 %v453
        %v680 = vunpack.c.l.b16 %v454
        %v681 = vunpack.c.h.b16 %v454
        %v682 = vunpack.c.l.b16 %v455
        %v683 = vunpack.c.h.b16 %v455
        %v684 = vunpack.c.l.b16 %v456
        %v685 = vunpack.c.h.b16 %v456
        %v686 = vunpack.c.l.b16 %v457
        %v687 = vunpack.c.h.b16 %v457
        %v688 = vunpack.c.l.b16 %v458
        %v689 = vunpack.c.h.b16 %v458
        %v690 = vunpack.c.l.b16 %v459
        %v691 = vunpack.c.h.b16 %v459
        %v692 = vunpack.c.l.b16 %v460
        %v693 = vunpack.c.h.b16 %v460
        %v694 = vunpack.c.l.b16 %v461
        %v695 = vunpack.c.h.b16 %v461
        %v696 = vunpack.c.l.b16 %v462
        %v697 = vunpack.c.h.b16 %v462
        %v698 = vpack.c.b16 %v578, %v570
        %v699 = vpack.c.b16 %v579, %v571
        %v700 = vpack.c.b16 %v580, %v572
        %v701 = vpack.c.b16 %v581, %v573
        %v702 = vpack.c.b16 %v582, %v574
        %v703 = vpack.c.b16 %v583, %v575
        %v704 = vpack.c.b16 %v584, %v576
        %v705 = vpack.c.b16 %v585, %v577
        %v706 = vpack.c.b16 %v594, %v586
        %v707 = vpack.c.b16 %v595, %v587
        %v708 = vpack.c.b16 %v596, %v588
        %v709 = vpack.c.b16 %v597, %v589
        %v710 = vpack.c.b16 %v598, %v590
        %v711 = vpack.c.b16 %v599, %v591
        %v712 = vpack.c.b16 %v600, %v592
        %v713 = vpack.c.b16 %v601, %v593
        %v714 = vpack.c.b16 %v610, %v602
        %v715 = vpack.c.b16 %v611, %v603
        %v716 = vpack.c.b16 %v612, %v604
        %v717 = vpack.c.b16 %v613, %v605
        %v718 = vpack.c.b16 %v614, %v606
        %v719 = vpack.c.b16 %v615, %v607
        %v720 = vpack.c.b16 %v616, %v608
        %v721 = vpack.c.b16 %v617, %v609
        %v722 = vpack.c.b16 %v626, %v618
        %v723 = vpack.c.b16 %v627, %v619
        %v724 = vpack.c.b16 %v628, %v620
        %v725 = vpack.c.b16 %v629, %v621
        %v726 = vpack.c.b16 %v630, %v622
        %v727 = vpack.c.b16 %v631, %v623
        %v728 = vpack.c.b16 %v632, %v624
        %v729 = vpack.c.b16 %v633, %v625
        %v730 = vpack.c.b16 %v642, %v634
        %v731 = vpack.c.b16 %v643, %v635
        %v732 = vpack.c.b16 %v644, %v636
        %v733 = vpack.c.b16 %v645, %v637
        %v734 = vpack.c.b16 %v646, %v638
        %v735 = vpack.c.b16 %v647, %v639
        %v736 = vpack.c.b16 %v648, %v640
        %v737 = vpack.c.b16 %v649, %v641
        %v738 = vpack.c.b16 %v658, %v650
        %v739 = vpack.c.b16 %v659, %v651
        %v740 = vpack.c.b16 %v660, %v652
        %v741 = vpack.c.b16 %v661, %v653
        %v742 = vpack.c.b16 %v662, %v654
        %v743 = vpack.c.b16 %v663, %v655
        %v744 = vpack.c.b16 %v664, %v656
        %v745 = vpack.c.b16 %v665, %v657
        %v746 = vpack.c.b16 %v674, %v666
        %v747 = vpack.c.b16 %v675, %v667
        %v748 = vpack.c.b16 %v676, %v668
        %v749 = vpack.c.b16 %v677, %v669
        %v750 = vpack.c.b16 %v678, %v670
        %v751 = vpack.c.b16 %v679, %v671
        %v752 = vpack.c.b16 %v680, %v672
        %v753 = vpack.c.b16 %v681, %v673
        %v754 = vpack.c.b16 %v690, %v682
        %v755 = vpack.c.b16 %v691, %v683
        %v756 = vpack.c.b16 %v692, %v684
        %v757 = vpack.c.b16 %v693, %v685
        %v758 = vpack.c.b16 %v694, %v686
        %v759 = vpack.c.b16 %v695, %v687
        %v760 = vpack.c.b16 %v696, %v688
        %v761 = vpack.c.b16 %v697, %v689
        %826 = vmatprep.subr.bf16.mxu0 %v699
        %827 = vmatpush1.bf16.msra.mxu0 %v698
        %828 = vmatprep.subr.bf16.mxu0 %v707
        %829 = vmatpush1.bf16.msra.mxu0 %v706
        %830 = vmatprep.subr.bf16.mxu0 %v715
        %831 = vmatpush1.bf16.msra.mxu0 %v714
        %832 = vmatprep.subr.bf16.mxu0 %v723
        %833 = vmatpush1.bf16.msra.mxu0 %v722
        %834 = vmatprep.subr.bf16.mxu0 %v731
        %835 = vmatpush1.bf16.msra.mxu0 %v730
        %836 = vmatprep.subr.bf16.mxu0 %v739
        %837 = vmatpush1.bf16.msra.mxu0 %v738
        %838 = vmatprep.subr.bf16.mxu0 %v747
        %839 = vmatpush1.bf16.msra.mxu0 %v746
        %840 = vmatprep.subr.bf16.mxu0 %v755
        %841 = vmatpush1.bf16.msra.mxu0 %v754
        %842 = vmatprep.subr.bf16.mxu0 0
        %843 = vmatpush1.bf16.msra.mxu0 0
        %844 = vmatprep.subr.bf16.mxu0 0
        %845 = vmatpush1.bf16.msra.mxu0 0
        %846 = vmatprep.subr.bf16.mxu0 0
        %847 = vmatpush1.bf16.msra.mxu0 0
        %848 = vmatprep.subr.bf16.mxu0 0
        %849 = vmatpush1.bf16.msra.mxu0 0
        %850 = vmatprep.subr.bf16.mxu0 0
        %851 = vmatpush1.bf16.msra.mxu0 0
        %852 = vmatprep.subr.bf16.mxu0 0
        %853 = vmatpush1.bf16.msra.mxu0 0
        %854 = vmatprep.subr.bf16.mxu0 0
        %855 = vmatpush1.bf16.msra.mxu0 0
        %856 = vmatprep.subr.bf16.mxu0 0
        %857 = vmatpush1.bf16.msra.mxu0 0
        %858 = vmatprep.mubr.bf16.mxu0 0
        %859 = vmatmul.mubr.bf16.gmra.mrb[0].mxu0 %v463
        %v860 = vpop.f32.mrb[0].mxu0
        %v861 = vadd.f32 %v469, %v860
        %v862 = vpop.f32.mrb[0].mxu0
        %v863 = vadd.f32 %v473, %v862
        %v864 = vpop.f32.mrb[0].mxu0
        %v865 = vadd.f32 %v469, %v864
        %v866 = vpop.f32.mrb[0].mxu0
        %v867 = vadd.f32 %v473, %v866
        %868 = vdwg.mxu0
        %869 = vmatprep.subr.bf16.mxu0 %v701
        %870 = vmatpush1.bf16.msra.mxu0 %v700
        %871 = vmatprep.subr.bf16.mxu0 %v709
        %872 = vmatpush1.bf16.msra.mxu0 %v708
        %873 = vmatprep.subr.bf16.mxu0 %v717
        %874 = vmatpush1.bf16.msra.mxu0 %v716
        %875 = vmatprep.subr.bf16.mxu0 %v725
        %876 = vmatpush1.bf16.msra.mxu0 %v724
        %877 = vmatprep.subr.bf16.mxu0 %v733
        %878 = vmatpush1.bf16.msra.mxu0 %v732
        %879 = vmatprep.subr.bf16.mxu0 %v741
        %880 = vmatpush1.bf16.msra.mxu0 %v740
        %881 = vmatprep.subr.bf16.mxu0 %v749
        %882 = vmatpush1.bf16.msra.mxu0 %v748
        %883 = vmatprep.subr.bf16.mxu0 %v757
        %884 = vmatpush1.bf16.msra.mxu0 %v756
        %885 = vmatprep.subr.bf16.mxu0 0
        %886 = vmatpush1.bf16.msra.mxu0 0
        %887 = vmatprep.subr.bf16.mxu0 0
        %888 = vmatpush1.bf16.msra.mxu0 0
        %889 = vmatprep.subr.bf16.mxu0 0
        %890 = vmatpush1.bf16.msra.mxu0 0
        %891 = vmatprep.subr.bf16.mxu0 0
        %892 = vmatpush1.bf16.msra.mxu0 0
        %893 = vmatprep.subr.bf16.mxu0 0
        %894 = vmatpush1.bf16.msra.mxu0 0
        %895 = vmatprep.subr.bf16.mxu0 0
        %896 = vmatpush1.bf16.msra.mxu0 0
        %897 = vmatprep.subr.bf16.mxu0 0
        %898 = vmatpush1.bf16.msra.mxu0 0
        %899 = vmatprep.subr.bf16.mxu0 0
        %900 = vmatpush1.bf16.msra.mxu0 0
        %901 = vmatprep.mubr.bf16.mxu0 0
        %902 = vmatmul.mubr.bf16.gmra.mrb[0].mxu0 %v463
        %v903 = vpop.f32.mrb[0].mxu0
        %v904 = vadd.f32 %v477, %v903
        %v905 = vpop.f32.mrb[0].mxu0
        %v906 = vadd.f32 %v481, %v905
        %v907 = vpop.f32.mrb[0].mxu0
        %v908 = vadd.f32 %v477, %v907
        %v909 = vpop.f32.mrb[0].mxu0
        %v910 = vadd.f32 %v481, %v909
        %911 = vdwg.mxu0
        %912 = vmatprep.subr.bf16.mxu0 %v703
        %913 = vmatpush1.bf16.msra.mxu0 %v702
        %914 = vmatprep.subr.bf16.mxu0 %v711
        %915 = vmatpush1.bf16.msra.mxu0 %v710
        %916 = vmatprep.subr.bf16.mxu0 %v719
        %917 = vmatpush1.bf16.msra.mxu0 %v718
        %918 = vmatprep.subr.bf16.mxu0 %v727
        %919 = vmatpush1.bf16.msra.mxu0 %v726
        %920 = vmatprep.subr.bf16.mxu0 %v735
        %921 = vmatpush1.bf16.msra.mxu0 %v734
        %922 = vmatprep.subr.bf16.mxu0 %v743
        %923 = vmatpush1.bf16.msra.mxu0 %v742
        %924 = vmatprep.subr.bf16.mxu0 %v751
        %925 = vmatpush1.bf16.msra.mxu0 %v750
        %926 = vmatprep.subr.bf16.mxu0 %v759
        %927 = vmatpush1.bf16.msra.mxu0 %v758
        %928 = vmatprep.subr.bf16.mxu0 0
        %929 = vmatpush1.bf16.msra.mxu0 0
        %930 = vmatprep.subr.bf16.mxu0 0
        %931 = vmatpush1.bf16.msra.mxu0 0
        %932 = vmatprep.subr.bf16.mxu0 0
        %933 = vmatpush1.bf16.msra.mxu0 0
        %934 = vmatprep.subr.bf16.mxu0 0
        %935 = vmatpush1.bf16.msra.mxu0 0
        %936 = vmatprep.subr.bf16.mxu0 0
        %937 = vmatpush1.bf16.msra.mxu0 0
        %938 = vmatprep.subr.bf16.mxu0 0
        %939 = vmatpush1.bf16.msra.mxu0 0
        %940 = vmatprep.subr.bf16.mxu0 0
        %941 = vmatpush1.bf16.msra.mxu0 0
        %942 = vmatprep.subr.bf16.mxu0 0
        %943 = vmatpush1.bf16.msra.mxu0 0
        %944 = vmatprep.mubr.bf16.mxu0 0
        %945 = vmatmul.mubr.bf16.gmra.mrb[0].mxu0 %v463
        %v946 = vpop.f32.mrb[0].mxu0
        %v947 = vadd.f32 %v485, %v946
        %v948 = vpop.f32.mrb[0].mxu0
        %v949 = vadd.f32 %v489, %v948
        %v950 = vpop.f32.mrb[0].mxu0
        %v951 = vadd.f32 %v485, %v950
        %v952 = vpop.f32.mrb[0].mxu0
        %v953 = vadd.f32 %v489, %v952
        %954 = vdwg.mxu0
        %955 = vmatprep.subr.bf16.mxu0 %v705
        %956 = vmatpush1.bf16.msra.mxu0 %v704
        %957 = vmatprep.subr.bf16.mxu0 %v713
        %958 = vmatpush1.bf16.msra.mxu0 %v712
        %959 = vmatprep.subr.bf16.mxu0 %v721
        %960 = vmatpush1.bf16.msra.mxu0 %v720
        %961 = vmatprep.subr.bf16.mxu0 %v729
        %962 = vmatpush1.bf16.msra.mxu0 %v728
        %963 = vmatprep.subr.bf16.mxu0 %v737
        %964 = vmatpush1.bf16.msra.mxu0 %v736
        %965 = vmatprep.subr.bf16.mxu0 %v745
        %966 = vmatpush1.bf16.msra.mxu0 %v744
        %967 = vmatprep.subr.bf16.mxu0 %v753
        %968 = vmatpush1.bf16.msra.mxu0 %v752
        %969 = vmatprep.subr.bf16.mxu0 %v761
        %970 = vmatpush1.bf16.msra.mxu0 %v760
        %971 = vmatprep.subr.bf16.mxu0 0
        %972 = vmatpush1.bf16.msra.mxu0 0
        %973 = vmatprep.subr.bf16.mxu0 0
        %974 = vmatpush1.bf16.msra.mxu0 0
        %975 = vmatprep.subr.bf16.mxu0 0
        %976 = vmatpush1.bf16.msra.mxu0 0
        %977 = vmatprep.subr.bf16.mxu0 0
        %978 = vmatpush1.bf16.msra.mxu0 0
        %979 = vmatprep.subr.bf16.mxu0 0
        %980 = vmatpush1.bf16.msra.mxu0 0
        %981 = vmatprep.subr.bf16.mxu0 0
        %982 = vmatpush1.bf16.msra.mxu0 0
        %983 = vmatprep.subr.bf16.mxu0 0
        %984 = vmatpush1.bf16.msra.mxu0 0
        %985 = vmatprep.subr.bf16.mxu0 0
        %986 = vmatpush1.bf16.msra.mxu0 0
        %987 = vmatprep.mubr.bf16.mxu0 0
        %988 = vmatmul.mubr.bf16.gmra.mrb[0].mxu0 %v463
        %v989 = vpop.f32.mrb[0].mxu0
        %v990 = vadd.f32 %v493, %v989
        %v991 = vpop.f32.mrb[0].mxu0
        %v992 = vadd.f32 %v497, %v991
        %v993 = vpop.f32.mrb[0].mxu0
        %v994 = vadd.f32 %v493, %v993
        %v995 = vpop.f32.mrb[0].mxu0
        %v996 = vadd.f32 %v497, %v995
        %997 = vdwg.mxu0
        %v998 = vmax.f32 %v861, 0.0
        %v999 = vmax.f32 %v863, 0.0
        %v1000 = vmax.f32 %v904, 0.0
        %v1001 = vmax.f32 %v906, 0.0
        %v1002 = vmax.f32 %v947, 0.0
        %v1003 = vmax.f32 %v949, 0.0
        %v1004 = vmax.f32 %v990, 0.0
        %v1005 = vmax.f32 %v992, 0.0
        %v1006 = vmax.f32 %v865, 0.0
        %v1007 = vmax.f32 %v867, 0.0
        %v1008 = vmax.f32 %v908, 0.0
        %v1009 = vmax.f32 %v910, 0.0
        %v1010 = vmax.f32 %v951, 0.0
        %v1011 = vmax.f32 %v953, 0.0
        %v1012 = vmax.f32 %v994, 0.0
        %v1013 = vmax.f32 %v996, 0.0
        %p1014 = scmp.eq.s32.totalorder %s26, 0
        // Predicated region
        $region45: #{tnet_forward.6} parent=39 // pred_check
          %p1015 = pneg %p1014
        $region46: #{tnet_forward.6} parent=39 // pred_check_branch
          %1017 = sbr.rel (%p1015) target = $region48
        $region47: #{tnet_forward.6} parent=39 // pred_region
          %1018 = vst [vmem:[%s363] sm:$0xff] 0.0
          %1019 = vst [vmem:[%s367] sm:$0xff] 0.0
          %1020 = vst [vmem:[%s371] sm:$0xff] -inf
          %1021 = vst [vmem:[%s375] sm:$0xff] inf
        $region48: #{tnet_forward.6} parent=39 // pred_fallthru
          _
        %v1022 = vld [vmem:[%s363] sm:$0xff]
        %v1023 = vadd.f32 %v998, %v1006
        %v1024 = vrot.slane %v1023, 4
        %v1025 = vadd.f32 %v1023, %v1024
        %v1026 = vrot.slane %v1025, 2
        %v1027 = vadd.f32 %v1025, %v1026
        %v1028 = vrot.slane %v1027, 1
        %v1029 = vadd.f32 %v1027, %v1028
        %v1030 = vadd.f32 %v999, %v1007
        %v1031 = vrot.slane %v1030, 4
        %v1032 = vadd.f32 %v1030, %v1031
        %v1033 = vrot.slane %v1032, 2
        %v1034 = vadd.f32 %v1032, %v1033
        %v1035 = vrot.slane %v1034, 1
        %v1036 = vadd.f32 %v1034, %v1035
        %v1037 = vadd.f32 %v1000, %v1008
        %v1038 = vrot.slane %v1037, 4
        %v1039 = vadd.f32 %v1037, %v1038
        %v1040 = vrot.slane %v1039, 2
        %v1041 = vadd.f32 %v1039, %v1040
        %v1042 = vrot.slane %v1041, 1
        %v1043 = vadd.f32 %v1041, %v1042
        %v1044 = vadd.f32 %v1001, %v1009
        %v1045 = vrot.slane %v1044, 4
        %v1046 = vadd.f32 %v1044, %v1045
        %v1047 = vrot.slane %v1046, 2
        %v1048 = vadd.f32 %v1046, %v1047
        %v1049 = vrot.slane %v1048, 1
        %v1050 = vadd.f32 %v1048, %v1049
        %v1051 = vadd.f32 %v1002, %v1010
        %v1052 = vrot.slane %v1051, 4
        %v1053 = vadd.f32 %v1051, %v1052
        %v1054 = vrot.slane %v1053, 2
        %v1055 = vadd.f32 %v1053, %v1054
        %v1056 = vrot.slane %v1055, 1
        %v1057 = vadd.f32 %v1055, %v1056
        %v1058 = vadd.f32 %v1003, %v1011
        %v1059 = vrot.slane %v1058, 4
        %v1060 = vadd.f32 %v1058, %v1059
        %v1061 = vrot.slane %v1060, 2
        %v1062 = vadd.f32 %v1060, %v1061
        %v1063 = vrot.slane %v1062, 1
        %v1064 = vadd.f32 %v1062, %v1063
        %v1065 = vadd.f32 %v1004, %v1012
        %v1066 = vrot.slane %v1065, 4
        %v1067 = vadd.f32 %v1065, %v1066
        %v1068 = vrot.slane %v1067, 2
        %v1069 = vadd.f32 %v1067, %v1068
        %v1070 = vrot.slane %v1069, 1
        %v1071 = vadd.f32 %v1069, %v1070
        %v1072 = vadd.f32 %v1005, %v1013
        %v1073 = vrot.slane %v1072, 4
        %v1074 = vadd.f32 %v1072, %v1073
        %v1075 = vrot.slane %v1074, 2
        %v1076 = vadd.f32 %v1074, %v1075
        %v1077 = vrot.slane %v1076, 1
        %v1078 = vadd.f32 %v1076, %v1077
        %v1087 = vcombine.low %v1029, %v1036
        %v1088 = vcombine.low %v1043, %v1050
        %v1089 = vcombine.low %v1057, %v1064
        %v1090 = vcombine.low %v1071, %v1078
        %v1092 = vunpack.c.l.s4 1966171168
        %v1093 = vunpack.c.0.s8 %v1092
        %v1094 = vlaneseq
        %v1095 = vshrl.u32 %v1094, 7
        %v1096 = vsub.s32 %v1093, %v1095
        %v1097 = vrot.slane %v1087, %v1096
        %v1099 = vunpack.c.l.s4 1966171168
        %v1100 = vunpack.c.0.s8 %v1099
        %v1101 = vlaneseq
        %v1102 = vshrl.u32 %v1101, 7
        %v1103 = vsub.s32 %v1100, %v1102
        %v1104 = vrot.slane %v1088, %v1103
        %v1106 = vunpack.c.l.s4 1966171168
        %v1107 = vunpack.c.0.s8 %v1106
        %v1108 = vlaneseq
        %v1109 = vshrl.u32 %v1108, 7
        %v1110 = vsub.s32 %v1107, %v1109
        %v1111 = vrot.slane %v1089, %v1110
        %v1113 = vunpack.c.l.s4 1966171168
        %v1114 = vunpack.c.0.s8 %v1113
        %v1115 = vlaneseq
        %v1116 = vshrl.u32 %v1115, 7
        %v1117 = vsub.s32 %v1114, %v1116
        %v1118 = vrot.slane %v1090, %v1117
        %v1119 = vcombine.low %v1097, %v1104
        %v1120 = vcombine.low %v1111, %v1118
        %v1122 = vunpack.c.l.s4 1966171168
        %v1123 = vunpack.c.0.s8 %v1122
        %v1124 = vlaneseq
        %v1125 = vshrl.u32 %v1124, 7
        %v1126 = vsub.s32 %v1123, %v1125
        %v1127 = vrot.slane %v1119, %v1126
        %v1129 = vunpack.c.l.s4 1966171168
        %v1130 = vunpack.c.0.s8 %v1129
        %v1131 = vlaneseq
        %v1132 = vshrl.u32 %v1131, 7
        %v1133 = vsub.s32 %v1130, %v1132
        %v1134 = vrot.slane %v1120, %v1133
        %v1135 = vcombine.low %v1127, %v1134
        %v1137 = vadd.f32 %v1022, %v1135
        %1138 = vst [vmem:[%s363] sm:$0xff] %v1137
        %v1139 = vld [vmem:[%s367] sm:$0xff]
        %v1140 = vmul.f32 %v998, %v998
        %v1141 = vmul.f32 %v999, %v999
        %v1142 = vmul.f32 %v1000, %v1000
        %v1143 = vmul.f32 %v1001, %v1001
        %v1144 = vmul.f32 %v1002, %v1002
        %v1145 = vmul.f32 %v1003, %v1003
        %v1146 = vmul.f32 %v1004, %v1004
        %v1147 = vmul.f32 %v1005, %v1005
        %v1148 = vmul.f32 %v1006, %v1006
        %v1149 = vmul.f32 %v1007, %v1007
        %v1150 = vmul.f32 %v1008, %v1008
        %v1151 = vmul.f32 %v1009, %v1009
        %v1152 = vmul.f32 %v1010, %v1010
        %v1153 = vmul.f32 %v1011, %v1011
        %v1154 = vmul.f32 %v1012, %v1012
        %v1155 = vmul.f32 %v1013, %v1013
        %v1156 = vadd.f32 %v1140, %v1148
        %v1157 = vrot.slane %v1156, 4
        %v1158 = vadd.f32 %v1156, %v1157
        %v1159 = vrot.slane %v1158, 2
        %v1160 = vadd.f32 %v1158, %v1159
        %v1161 = vrot.slane %v1160, 1
        %v1162 = vadd.f32 %v1160, %v1161
        %v1163 = vadd.f32 %v1141, %v1149
        %v1164 = vrot.slane %v1163, 4
        %v1165 = vadd.f32 %v1163, %v1164
        %v1166 = vrot.slane %v1165, 2
        %v1167 = vadd.f32 %v1165, %v1166
        %v1168 = vrot.slane %v1167, 1
        %v1169 = vadd.f32 %v1167, %v1168
        %v1170 = vadd.f32 %v1142, %v1150
        %v1171 = vrot.slane %v1170, 4
        %v1172 = vadd.f32 %v1170, %v1171
        %v1173 = vrot.slane %v1172, 2
        %v1174 = vadd.f32 %v1172, %v1173
        %v1175 = vrot.slane %v1174, 1
        %v1176 = vadd.f32 %v1174, %v1175
        %v1177 = vadd.f32 %v1143, %v1151
        %v1178 = vrot.slane %v1177, 4
        %v1179 = vadd.f32 %v1177, %v1178
        %v1180 = vrot.slane %v1179, 2
        %v1181 = vadd.f32 %v1179, %v1180
        %v1182 = vrot.slane %v1181, 1
        %v1183 = vadd.f32 %v1181, %v1182
        %v1184 = vadd.f32 %v1144, %v1152
        %v1185 = vrot.slane %v1184, 4
        %v1186 = vadd.f32 %v1184, %v1185
        %v1187 = vrot.slane %v1186, 2
        %v1188 = vadd.f32 %v1186, %v1187
        %v1189 = vrot.slane %v1188, 1
        %v1190 = vadd.f32 %v1188, %v1189
        %v1191 = vadd.f32 %v1145, %v1153
        %v1192 = vrot.slane %v1191, 4
        %v1193 = vadd.f32 %v1191, %v1192
        %v1194 = vrot.slane %v1193, 2
        %v1195 = vadd.f32 %v1193, %v1194
        %v1196 = vrot.slane %v1195, 1
        %v1197 = vadd.f32 %v1195, %v1196
        %v1198 = vadd.f32 %v1146, %v1154
        %v1199 = vrot.slane %v1198, 4
        %v1200 = vadd.f32 %v1198, %v1199
        %v1201 = vrot.slane %v1200, 2
        %v1202 = vadd.f32 %v1200, %v1201
        %v1203 = vrot.slane %v1202, 1
        %v1204 = vadd.f32 %v1202, %v1203
        %v1205 = vadd.f32 %v1147, %v1155
        %v1206 = vrot.slane %v1205, 4
        %v1207 = vadd.f32 %v1205, %v1206
        %v1208 = vrot.slane %v1207, 2
        %v1209 = vadd.f32 %v1207, %v1208
        %v1210 = vrot.slane %v1209, 1
        %v1211 = vadd.f32 %v1209, %v1210
        %v1220 = vcombine.low %v1162, %v1169
        %v1221 = vcombine.low %v1176, %v1183
        %v1222 = vcombine.low %v1190, %v1197
        %v1223 = vcombine.low %v1204, %v1211
        %v1225 = vunpack.c.l.s4 1966171168
        %v1226 = vunpack.c.0.s8 %v1225
        %v1227 = vlaneseq
        %v1228 = vshrl.u32 %v1227, 7
        %v1229 = vsub.s32 %v1226, %v1228
        %v1230 = vrot.slane %v1220, %v1229
        %v1232 = vunpack.c.l.s4 1966171168
        %v1233 = vunpack.c.0.s8 %v1232
        %v1234 = vlaneseq
        %v1235 = vshrl.u32 %v1234, 7
        %v1236 = vsub.s32 %v1233, %v1235
        %v1237 = vrot.slane %v1221, %v1236
        %v1239 = vunpack.c.l.s4 1966171168
        %v1240 = vunpack.c.0.s8 %v1239
        %v1241 = vlaneseq
        %v1242 = vshrl.u32 %v1241, 7
        %v1243 = vsub.s32 %v1240, %v1242
        %v1244 = vrot.slane %v1222, %v1243
        %v1246 = vunpack.c.l.s4 1966171168
        %v1247 = vunpack.c.0.s8 %v1246
        %v1248 = vlaneseq
        %v1249 = vshrl.u32 %v1248, 7
        %v1250 = vsub.s32 %v1247, %v1249
        %v1251 = vrot.slane %v1223, %v1250
        %v1252 = vcombine.low %v1230, %v1237
        %v1253 = vcombine.low %v1244, %v1251
        %v1255 = vunpack.c.l.s4 1966171168
        %v1256 = vunpack.c.0.s8 %v1255
        %v1257 = vlaneseq
        %v1258 = vshrl.u32 %v1257, 7
        %v1259 = vsub.s32 %v1256, %v1258
        %v1260 = vrot.slane %v1252, %v1259
        %v1262 = vunpack.c.l.s4 1966171168
        %v1263 = vunpack.c.0.s8 %v1262
        %v1264 = vlaneseq
        %v1265 = vshrl.u32 %v1264, 7
        %v1266 = vsub.s32 %v1263, %v1265
        %v1267 = vrot.slane %v1253, %v1266
        %v1268 = vcombine.low %v1260, %v1267
        %v1270 = vadd.f32 %v1139, %v1268
        %1271 = vst [vmem:[%s367] sm:$0xff] %v1270
        %v1272 = vld [vmem:[%s371] sm:$0xff]
        %v1273 = vmax.f32 %v998, %v1006
        %v1274 = vrot.slane %v1273, 4
        %v1275 = vmax.f32 %v1273, %v1274
        %v1276 = vrot.slane %v1275, 2
        %v1277 = vmax.f32 %v1275, %v1276
        %v1278 = vrot.slane %v1277, 1
        %v1279 = vmax.f32 %v1277, %v1278
        %v1280 = vmax.f32 %v999, %v1007
        %v1281 = vrot.slane %v1280, 4
        %v1282 = vmax.f32 %v1280, %v1281
        %v1283 = vrot.slane %v1282, 2
        %v1284 = vmax.f32 %v1282, %v1283
        %v1285 = vrot.slane %v1284, 1
        %v1286 = vmax.f32 %v1284, %v1285
        %v1287 = vmax.f32 %v1000, %v1008
        %v1288 = vrot.slane %v1287, 4
        %v1289 = vmax.f32 %v1287, %v1288
        %v1290 = vrot.slane %v1289, 2
        %v1291 = vmax.f32 %v1289, %v1290
        %v1292 = vrot.slane %v1291, 1
        %v1293 = vmax.f32 %v1291, %v1292
        %v1294 = vmax.f32 %v1001, %v1009
        %v1295 = vrot.slane %v1294, 4
        %v1296 = vmax.f32 %v1294, %v1295
        %v1297 = vrot.slane %v1296, 2
        %v1298 = vmax.f32 %v1296, %v1297
        %v1299 = vrot.slane %v1298, 1
        %v1300 = vmax.f32 %v1298, %v1299
        %v1301 = vmax.f32 %v1002, %v1010
        %v1302 = vrot.slane %v1301, 4
        %v1303 = vmax.f32 %v1301, %v1302
        %v1304 = vrot.slane %v1303, 2
        %v1305 = vmax.f32 %v1303, %v1304
        %v1306 = vrot.slane %v1305, 1
        %v1307 = vmax.f32 %v1305, %v1306
        %v1308 = vmax.f32 %v1003, %v1011
        %v1309 = vrot.slane %v1308, 4
        %v1310 = vmax.f32 %v1308, %v1309
        %v1311 = vrot.slane %v1310, 2
        %v1312 = vmax.f32 %v1310, %v1311
        %v1313 = vrot.slane %v1312, 1
        %v1314 = vmax.f32 %v1312, %v1313
        %v1315 = vmax.f32 %v1004, %v1012
        %v1316 = vrot.slane %v1315, 4
        %v1317 = vmax.f32 %v1315, %v1316
        %v1318 = vrot.slane %v1317, 2
        %v1319 = vmax.f32 %v1317, %v1318
        %v1320 = vrot.slane %v1319, 1
        %v1321 = vmax.f32 %v1319, %v1320
        %v1322 = vmax.f32 %v1005, %v1013
        %v1323 = vrot.slane %v1322, 4
        %v1324 = vmax.f32 %v1322, %v1323
        %v1325 = vrot.slane %v1324, 2
        %v1326 = vmax.f32 %v1324, %v1325
        %v1327 = vrot.slane %v1326, 1
        %v1328 = vmax.f32 %v1326, %v1327
        %v1337 = vcombine.low %v1279, %v1286
        %v1338 = vcombine.low %v1293, %v1300
        %v1339 = vcombine.low %v1307, %v1314
        %v1340 = vcombine.low %v1321, %v1328
        %v1342 = vunpack.c.l.s4 1966171168
        %v1343 = vunpack.c.0.s8 %v1342
        %v1344 = vlaneseq
        %v1345 = vshrl.u32 %v1344, 7
        %v1346 = vsub.s32 %v1343, %v1345
        %v1347 = vrot.slane %v1337, %v1346
        %v1349 = vunpack.c.l.s4 1966171168
        %v1350 = vunpack.c.0.s8 %v1349
        %v1351 = vlaneseq
        %v1352 = vshrl.u32 %v1351, 7
        %v1353 = vsub.s32 %v1350, %v1352
        %v1354 = vrot.slane %v1338, %v1353
        %v1356 = vunpack.c.l.s4 1966171168
        %v1357 = vunpack.c.0.s8 %v1356
        %v1358 = vlaneseq
        %v1359 = vshrl.u32 %v1358, 7
        %v1360 = vsub.s32 %v1357, %v1359
        %v1361 = vrot.slane %v1339, %v1360
        %v1363 = vunpack.c.l.s4 1966171168
        %v1364 = vunpack.c.0.s8 %v1363
        %v1365 = vlaneseq
        %v1366 = vshrl.u32 %v1365, 7
        %v1367 = vsub.s32 %v1364, %v1366
        %v1368 = vrot.slane %v1340, %v1367
        %v1369 = vcombine.low %v1347, %v1354
        %v1370 = vcombine.low %v1361, %v1368
        %v1372 = vunpack.c.l.s4 1966171168
        %v1373 = vunpack.c.0.s8 %v1372
        %v1374 = vlaneseq
        %v1375 = vshrl.u32 %v1374, 7
        %v1376 = vsub.s32 %v1373, %v1375
        %v1377 = vrot.slane %v1369, %v1376
        %v1379 = vunpack.c.l.s4 1966171168
        %v1380 = vunpack.c.0.s8 %v1379
        %v1381 = vlaneseq
        %v1382 = vshrl.u32 %v1381, 7
        %v1383 = vsub.s32 %v1380, %v1382
        %v1384 = vrot.slane %v1370, %v1383
        %v1385 = vcombine.low %v1377, %v1384
        %v1387 = vmax.f32 %v1272, %v1385
        %1388 = vst [vmem:[%s371] sm:$0xff] %v1387
        %v1389 = vld [vmem:[%s375] sm:$0xff]
        %v1390 = vmin.f32 %v998, %v1006
        %v1391 = vrot.slane %v1390, 4
        %v1392 = vmin.f32 %v1390, %v1391
        %v1393 = vrot.slane %v1392, 2
        %v1394 = vmin.f32 %v1392, %v1393
        %v1395 = vrot.slane %v1394, 1
        %v1396 = vmin.f32 %v1394, %v1395
        %v1397 = vmin.f32 %v999, %v1007
        %v1398 = vrot.slane %v1397, 4
        %v1399 = vmin.f32 %v1397, %v1398
        %v1400 = vrot.slane %v1399, 2
        %v1401 = vmin.f32 %v1399, %v1400
        %v1402 = vrot.slane %v1401, 1
        %v1403 = vmin.f32 %v1401, %v1402
        %v1404 = vmin.f32 %v1000, %v1008
        %v1405 = vrot.slane %v1404, 4
        %v1406 = vmin.f32 %v1404, %v1405
        %v1407 = vrot.slane %v1406, 2
        %v1408 = vmin.f32 %v1406, %v1407
        %v1409 = vrot.slane %v1408, 1
        %v1410 = vmin.f32 %v1408, %v1409
        %v1411 = vmin.f32 %v1001, %v1009
        %v1412 = vrot.slane %v1411, 4
        %v1413 = vmin.f32 %v1411, %v1412
        %v1414 = vrot.slane %v1413, 2
        %v1415 = vmin.f32 %v1413, %v1414
        %v1416 = vrot.slane %v1415, 1
        %v1417 = vmin.f32 %v1415, %v1416
        %v1418 = vmin.f32 %v1002, %v1010
        %v1419 = vrot.slane %v1418, 4
        %v1420 = vmin.f32 %v1418, %v1419
        %v1421 = vrot.slane %v1420, 2
        %v1422 = vmin.f32 %v1420, %v1421
        %v1423 = vrot.slane %v1422, 1
        %v1424 = vmin.f32 %v1422, %v1423
        %v1425 = vmin.f32 %v1003, %v1011
        %v1426 = vrot.slane %v1425, 4
        %v1427 = vmin.f32 %v1425, %v1426
        %v1428 = vrot.slane %v1427, 2
        %v1429 = vmin.f32 %v1427, %v1428
        %v1430 = vrot.slane %v1429, 1
        %v1431 = vmin.f32 %v1429, %v1430
        %v1432 = vmin.f32 %v1004, %v1012
        %v1433 = vrot.slane %v1432, 4
        %v1434 = vmin.f32 %v1432, %v1433
        %v1435 = vrot.slane %v1434, 2
        %v1436 = vmin.f32 %v1434, %v1435
        %v1437 = vrot.slane %v1436, 1
        %v1438 = vmin.f32 %v1436, %v1437
        %v1439 = vmin.f32 %v1005, %v1013
        %v1440 = vrot.slane %v1439, 4
        %v1441 = vmin.f32 %v1439, %v1440
        %v1442 = vrot.slane %v1441, 2
        %v1443 = vmin.f32 %v1441, %v1442
        %v1444 = vrot.slane %v1443, 1
        %v1445 = vmin.f32 %v1443, %v1444
        %v1454 = vcombine.low %v1396, %v1403
        %v1455 = vcombine.low %v1410, %v1417
        %v1456 = vcombine.low %v1424, %v1431
        %v1457 = vcombine.low %v1438, %v1445
        %v1459 = vunpack.c.l.s4 1966171168
        %v1460 = vunpack.c.0.s8 %v1459
        %v1461 = vlaneseq
        %v1462 = vshrl.u32 %v1461, 7
        %v1463 = vsub.s32 %v1460, %v1462
        %v1464 = vrot.slane %v1454, %v1463
        %v1466 = vunpack.c.l.s4 1966171168
        %v1467 = vunpack.c.0.s8 %v1466
        %v1468 = vlaneseq
        %v1469 = vshrl.u32 %v1468, 7
        %v1470 = vsub.s32 %v1467, %v1469
        %v1471 = vrot.slane %v1455, %v1470
        %v1473 = vunpack.c.l.s4 1966171168
        %v1474 = vunpack.c.0.s8 %v1473
        %v1475 = vlaneseq
        %v1476 = vshrl.u32 %v1475, 7
        %v1477 = vsub.s32 %v1474, %v1476
        %v1478 = vrot.slane %v1456, %v1477
        %v1480 = vunpack.c.l.s4 1966171168
        %v1481 = vunpack.c.0.s8 %v1480
        %v1482 = vlaneseq
        %v1483 = vshrl.u32 %v1482, 7
        %v1484 = vsub.s32 %v1481, %v1483
        %v1485 = vrot.slane %v1457, %v1484
        %v1486 = vcombine.low %v1464, %v1471
        %v1487 = vcombine.low %v1478, %v1485
        %v1489 = vunpack.c.l.s4 1966171168
        %v1490 = vunpack.c.0.s8 %v1489
        %v1491 = vlaneseq
        %v1492 = vshrl.u32 %v1491, 7
        %v1493 = vsub.s32 %v1490, %v1492
        %v1494 = vrot.slane %v1486, %v1493
        %v1496 = vunpack.c.l.s4 1966171168
        %v1497 = vunpack.c.0.s8 %v1496
        %v1498 = vlaneseq
        %v1499 = vshrl.u32 %v1498, 7
        %v1500 = vsub.s32 %v1497, %v1499
        %v1501 = vrot.slane %v1487, %v1500
        %v1502 = vcombine.low %v1494, %v1501
        %v1504 = vmin.f32 %v1389, %v1502
        %1505 = vst [vmem:[%s375] sm:$0xff] %v1504
        %p1506 = scmp.lt.s32.totalorder %s25, 1
        %s1507 = scalar_select %p1506, %s25, 1
        %s1508 = smul.addr %s1507, 8
        %s1509 = scalar_lea.vmem %s5, %s1508
        %p1510 = scmp.lt.s32.totalorder %s25, 1
        %s1511 = scalar_select %p1510, %s25, 1
        %s1512 = smul.addr %s1511, 8
        %s1513 = scalar_lea.vmem %s6, %s1512
        %p1514 = scmp.lt.s32.totalorder %s25, 1
        %s1515 = scalar_select %p1514, %s25, 1
        %s1516 = smul.addr %s1515, 8
        %s1517 = scalar_lea.vmem %s7, %s1516
        %p1518 = scmp.lt.s32.totalorder %s25, 1
        %s1519 = scalar_select %p1518, %s25, 1
        %s1520 = smul.addr %s1519, 8
        %s1521 = scalar_lea.vmem %s8, %s1520
        // Predicated region
        $region49: #{tnet_forward.6} parent=39 // pred_check
          %p1522 = pneg %p163
        $region50: #{tnet_forward.6} parent=39 // pred_check_branch
          %1524 = sbr.rel (%p1522) target = $region52
        $region51: #{tnet_forward.6} parent=39 // pred_region
          _
        $region52: #{tnet_forward.6} parent=39 // pred_fallthru
          _
        // Predicated region
        $region53: #{tnet_forward.6} parent=39 // pred_check
          %p1525 = pneg %p189
        $region54: #{tnet_forward.6} parent=39 // pred_check_branch
          %1527 = sbr.rel (%p1525) target = $region56
        $region55: #{tnet_forward.6} parent=39 // pred_region
          _
        $region56: #{tnet_forward.6} parent=39 // pred_fallthru
          _
        // Predicated region
        $region57: #{tnet_forward.6} parent=39 // pred_check
          %p1528 = pneg %p215
        $region58: #{tnet_forward.6} parent=39 // pred_check_branch
          %1530 = sbr.rel (%p1528) target = $region60
        $region59: #{tnet_forward.6} parent=39 // pred_region
          _
        $region60: #{tnet_forward.6} parent=39 // pred_fallthru
          _
        // Predicated region
        $region61: #{tnet_forward.6} parent=39 // pred_check
          %p1531 = pneg %p241
        $region62: #{tnet_forward.6} parent=39 // pred_check_branch
          %1533 = sbr.rel (%p1531) target = $region64
        $region63: #{tnet_forward.6} parent=39 // pred_region
          _
        $region64: #{tnet_forward.6} parent=39 // pred_fallthru
          _
      $region40: #{tnet_forward.6} parent=5 // pred_fallthru
        _
      %p1534 = scmp.le.s32.totalorder 2, %s16
      // Predicated region
      $region65: #{tnet_forward.6} parent=5 // pred_check
        %p1535 = pneg %p1534
      $region66: #{tnet_forward.6} parent=5 // pred_check_branch
        %1537 = sbr.rel (%p1535) target = $region68
      $region67: #{tnet_forward.6} parent=5 // pred_region
        %s1538 = ssub.s32 %s16, 2
        // Predicated region
        $region69: #{tnet_forward.6} parent=67 // pred_check
          %p1539 = pneg %p169
        $region70: #{tnet_forward.6} parent=67 // pred_check_branch
          %1541 = sbr.rel (%p1539) target = $region72
        $region71: #{tnet_forward.6} parent=67 // pred_region
          %p1542 = scmp.lt.s32.totalorder %s27, 1
          %s1543 = scalar_select %p1542, %s27, 1
          %s1544 = smul.addr %s1543, 8
          %s1545 = scalar_lea.vmem %s5, %s1544
        $region72: #{tnet_forward.6} parent=67 // pred_fallthru
          _
        // Predicated region
        $region73: #{tnet_forward.6} parent=67 // pred_check
          %p1546 = pneg %p195
        $region74: #{tnet_forward.6} parent=67 // pred_check_branch
          %1548 = sbr.rel (%p1546) target = $region76
        $region75: #{tnet_forward.6} parent=67 // pred_region
          %p1549 = scmp.lt.s32.totalorder %s27, 1
          %s1550 = scalar_select %p1549, %s27, 1
          %s1551 = smul.addr %s1550, 8
          %s1552 = scalar_lea.vmem %s6, %s1551
        $region76: #{tnet_forward.6} parent=67 // pred_fallthru
          _
        // Predicated region
        $region77: #{tnet_forward.6} parent=67 // pred_check
          %p1553 = pneg %p221
        $region78: #{tnet_forward.6} parent=67 // pred_check_branch
          %1555 = sbr.rel (%p1553) target = $region80
        $region79: #{tnet_forward.6} parent=67 // pred_region
          %p1556 = scmp.lt.s32.totalorder %s27, 1
          %s1557 = scalar_select %p1556, %s27, 1
          %s1558 = smul.addr %s1557, 8
          %s1559 = scalar_lea.vmem %s7, %s1558
        $region80: #{tnet_forward.6} parent=67 // pred_fallthru
          _
        // Predicated region
        $region81: #{tnet_forward.6} parent=67 // pred_check
          %p1560 = pneg %p247
        $region82: #{tnet_forward.6} parent=67 // pred_check_branch
          %1562 = sbr.rel (%p1560) target = $region84
        $region83: #{tnet_forward.6} parent=67 // pred_region
          %p1563 = scmp.lt.s32.totalorder %s27, 1
          %s1564 = scalar_select %p1563, %s27, 1
          %s1565 = smul.addr %s1564, 8
          %s1566 = scalar_lea.vmem %s8, %s1565
        $region84: #{tnet_forward.6} parent=67 // pred_fallthru
          _
      $region68: #{tnet_forward.6} parent=5 // pred_fallthru
        _
    $region6: #{tnet_forward.6} parent=1 // loop_footer
      %s20 = sadd.s32 1, %s16
    $region7: #{tnet_forward.6} parent=1 // loop_footer_branch
      %15 = sbr.rel target = $region3
    $region8: #{tnet_forward.6} parent=1 // loop_exit
      _
    %1567 = vsyncpa [#allocation3], 1
    %s1568 = scalar_lea.sflag [#allocation3], 1
    %1569 = vsyncpa %s1568, 1

// kernel: tnet_forward.7
$region0: #{tnet_forward.7}
  #allocation0 [shape = 'u32[]', space=smem, size = 0x4, offset = 0x4, fixed_abs, tag = 'smem constant byte address 0x4 - core index']
  #allocation1 [shape = 'u32[144,128]{1,0:T(1,128)}', space=vmem, size = 0x12000, scoped, tag = 'internal scratch']
  %s0 = inlined_call_operand.vmem [shape: f32[2,1024], index: 0, kind: input, shape index: {}]
  %s1 = inlined_call_operand.vmem [shape: f32[2,1024], index: 1, kind: input, shape index: {}]
  %s2 = inlined_call_operand.vmem [shape: f32[1,1024], index: 2, kind: input, shape index: {}]
  %s3 = inlined_call_operand.vmem [shape: f32[1,1024], index: 3, kind: input, shape index: {}]
  %s4 = inlined_call_operand.vmem [shape: bf16[1024,512], index: 4, kind: input, shape index: {}]
  %s5 = inlined_call_operand.vmem [shape: f32[1,512], index: 5, kind: input, shape index: {}]
  %s6 = inlined_call_operand.vmem [shape: f32[1,512], index: 6, kind: input, shape index: {}]
  %s7 = inlined_call_operand.vmem [shape: f32[1,512], index: 7, kind: input, shape index: {}]
  %s8 = inlined_call_operand.vmem [shape: bf16[512,256], index: 8, kind: input, shape index: {}]
  %s9 = inlined_call_operand.vmem [shape: f32[1,256], index: 9, kind: input, shape index: {}]
  %s10 = inlined_call_operand.vmem [shape: f32[1,256], index: 10, kind: input, shape index: {}]
  %s11 = inlined_call_operand.vmem [shape: f32[1,256], index: 11, kind: input, shape index: {}]
  %s12 = inlined_call_operand.vmem [shape: bf16[256,128], index: 12, kind: input, shape index: {}]
  %s13 = inlined_call_operand.vmem [shape: f32[1,128], index: 13, kind: input, shape index: {}]
  %s14 = inlined_call_operand.vmem [shape: f32[2,128], index: 14, kind: output, shape index: {}]
  %s15 = sld [smem:[#allocation0]]
  $region66: #{tnet_forward.7} parent=0
    _
  %s17 = ssub.s32 1, %s15
  %s18 = scalar_select 0, %s17, %s15
  // Predicated region
  $region2: #{tnet_forward.7} parent=0 // pred_check
    _
  $region3: #{tnet_forward.7} parent=0 // pred_check_branch
    %20 = sbr.rel (0) target = $region5
  $region4: #{tnet_forward.7} parent=0 // pred_region
    _
  $region5: #{tnet_forward.7} parent=0 // pred_fallthru
    _
  // Predicated region
  $region6: #{tnet_forward.7} parent=0 // pred_check
    _
  $region7: #{tnet_forward.7} parent=0 // pred_check_branch
    %22 = sbr.rel (0) target = $region9
  $region8: #{tnet_forward.7} parent=0 // pred_region
    _
  $region9: #{tnet_forward.7} parent=0 // pred_fallthru
    _
  // Predicated region
  $region10: #{tnet_forward.7} parent=0 // pred_check
    _
  $region11: #{tnet_forward.7} parent=0 // pred_check_branch
    %24 = sbr.rel (0) target = $region13
  $region12: #{tnet_forward.7} parent=0 // pred_region
    _
  $region13: #{tnet_forward.7} parent=0 // pred_fallthru
    _
  // Predicated region
  $region14: #{tnet_forward.7} parent=0 // pred_check
    _
  $region15: #{tnet_forward.7} parent=0 // pred_check_branch
    %26 = sbr.rel (0) target = $region17
  $region16: #{tnet_forward.7} parent=0 // pred_region
    _
  $region17: #{tnet_forward.7} parent=0 // pred_fallthru
    _
  // Predicated region
  $region18: #{tnet_forward.7} parent=0 // pred_check
    _
  $region19: #{tnet_forward.7} parent=0 // pred_check_branch
    %28 = sbr.rel (0) target = $region21
  $region20: #{tnet_forward.7} parent=0 // pred_region
    _
  $region21: #{tnet_forward.7} parent=0 // pred_fallthru
    _
  // Predicated region
  $region22: #{tnet_forward.7} parent=0 // pred_check
    _
  $region23: #{tnet_forward.7} parent=0 // pred_check_branch
    %30 = sbr.rel (0) target = $region25
  $region24: #{tnet_forward.7} parent=0 // pred_region
    _
  $region25: #{tnet_forward.7} parent=0 // pred_fallthru
    _
  // Predicated region
  $region26: #{tnet_forward.7} parent=0 // pred_check
    _
  $region27: #{tnet_forward.7} parent=0 // pred_check_branch
    %32 = sbr.rel (0) target = $region29
  $region28: #{tnet_forward.7} parent=0 // pred_region
    _
  $region29: #{tnet_forward.7} parent=0 // pred_fallthru
    _
  // Predicated region
  $region30: #{tnet_forward.7} parent=0 // pred_check
    _
  $region31: #{tnet_forward.7} parent=0 // pred_check_branch
    %34 = sbr.rel (0) target = $region33
  $region32: #{tnet_forward.7} parent=0 // pred_region
    _
  $region33: #{tnet_forward.7} parent=0 // pred_fallthru
    _
  // Predicated region
  $region34: #{tnet_forward.7} parent=0 // pred_check
    _
  $region35: #{tnet_forward.7} parent=0 // pred_check_branch
    %36 = sbr.rel (0) target = $region37
  $region36: #{tnet_forward.7} parent=0 // pred_region
    _
  $region37: #{tnet_forward.7} parent=0 // pred_fallthru
    _
  // Predicated region
  $region38: #{tnet_forward.7} parent=0 // pred_check
    _
  $region39: #{tnet_forward.7} parent=0 // pred_check_branch
    %38 = sbr.rel (0) target = $region41
  $region40: #{tnet_forward.7} parent=0 // pred_region
    _
  $region41: #{tnet_forward.7} parent=0 // pred_fallthru
    _
  // Predicated region
  $region42: #{tnet_forward.7} parent=0 // pred_check
    _
  $region43: #{tnet_forward.7} parent=0 // pred_check_branch
    %40 = sbr.rel (0) target = $region45
  $region44: #{tnet_forward.7} parent=0 // pred_region
    _
  $region45: #{tnet_forward.7} parent=0 // pred_fallthru
    _
  // Predicated region
  $region46: #{tnet_forward.7} parent=0 // pred_check
    _
  $region47: #{tnet_forward.7} parent=0 // pred_check_branch
    %42 = sbr.rel (0) target = $region49
  $region48: #{tnet_forward.7} parent=0 // pred_region
    _
  $region49: #{tnet_forward.7} parent=0 // pred_fallthru
    _
  // Predicated region
  $region50: #{tnet_forward.7} parent=0 // pred_check
    _
  $region51: #{tnet_forward.7} parent=0 // pred_check_branch
    %44 = sbr.rel (0) target = $region53
  $region52: #{tnet_forward.7} parent=0 // pred_region
    _
  $region53: #{tnet_forward.7} parent=0 // pred_fallthru
    _
  // Predicated region
  $region54: #{tnet_forward.7} parent=0 // pred_check
    _
  $region55: #{tnet_forward.7} parent=0 // pred_check_branch
    %46 = sbr.rel (0) target = $region57
  $region56: #{tnet_forward.7} parent=0 // pred_region
    _
  $region57: #{tnet_forward.7} parent=0 // pred_fallthru
    _
  %v48 = vld [vmem:[%s2] sm:$0xff]
  %v49 = vld [vmem:[%s3] sm:$0xff]
  %vm50 = vcmp.ge.f32.partialorder %v48, 0.0
  %v51 = vld [vmem:[%s0] sm:$0xff]
  %v52 = vld [vmem:[%s0 + $0x8] sm:$0xff]
  %v53 = vld [vmem:[%s1] sm:$0xff]
  %v54 = vld [vmem:[%s1 + $0x8] sm:$0xff]
  %v55 = vsel %vm50, 1, 0
  %v56 = vlaneseq
  %v57 = vshrl.u32 %v56, 7
  %v58 = vsub.s32 0, %v57
  %v59 = vrot.slane %v55, %v58
  %v60 = vlaneseq
  %v61 = vshrl.u32 %v60, 7
  %v62 = vsub.s32 1, %v61
  %v63 = vrot.slane %v55, %v62
  %v64 = vlaneseq
  %v65 = vshrl.u32 %v64, 7
  %v66 = vsub.s32 2, %v65
  %v67 = vrot.slane %v55, %v66
  %v68 = vlaneseq
  %v69 = vshrl.u32 %v68, 7
  %v70 = vsub.s32 3, %v69
  %v71 = vrot.slane %v55, %v70
  %v72 = vlaneseq
  %v73 = vshrl.u32 %v72, 7
  %v74 = vsub.s32 4, %v73
  %v75 = vrot.slane %v55, %v74
  %v76 = vlaneseq
  %v77 = vshrl.u32 %v76, 7
  %v78 = vsub.s32 5, %v77
  %v79 = vrot.slane %v55, %v78
  %v80 = vlaneseq
  %v81 = vshrl.u32 %v80, 7
  %v82 = vsub.s32 6, %v81
  %v83 = vrot.slane %v55, %v82
  %v84 = vlaneseq
  %v85 = vshrl.u32 %v84, 7
  %v86 = vsub.s32 7, %v85
  %v87 = vrot.slane %v55, %v86
  %vm88 = vcmp.eq.s32.totalorder %v59, 1
  %vm89 = vcmp.eq.s32.totalorder %v63, 1
  %vm90 = vcmp.eq.s32.totalorder %v67, 1
  %vm91 = vcmp.eq.s32.totalorder %v71, 1
  %vm92 = vcmp.eq.s32.totalorder %v75, 1
  %vm93 = vcmp.eq.s32.totalorder %v79, 1
  %vm94 = vcmp.eq.s32.totalorder %v83, 1
  %vm95 = vcmp.eq.s32.totalorder %v87, 1
  %v98 = vcombine.high %v51, %v51
  %v100 = vunpack.c.l.s4 1983009808
  %v101 = vunpack.c.0.s8 %v100
  %v102 = vlaneseq
  %v103 = vshrl.u32 %v102, 7
  %v104 = vsub.s32 %v101, %v103
  %v105 = vrot.slane %v51, %v104
  %v107 = vunpack.c.l.s4 1983009808
  %v108 = vunpack.c.0.s8 %v107
  %v109 = vlaneseq
  %v110 = vshrl.u32 %v109, 7
  %v111 = vsub.s32 %v108, %v110
  %v112 = vrot.slane %v98, %v111
  %v113 = vcombine.high %v105, %v105
  %v114 = vcombine.high %v112, %v112
  %v115 = vcombine.high %v52, %v52
  %v117 = vunpack.c.l.s4 1983009808
  %v118 = vunpack.c.0.s8 %v117
  %v119 = vlaneseq
  %v120 = vshrl.u32 %v119, 7
  %v121 = vsub.s32 %v118, %v120
  %v122 = vrot.slane %v52, %v121
  %v124 = vunpack.c.l.s4 1983009808
  %v125 = vunpack.c.0.s8 %v124
  %v126 = vlaneseq
  %v127 = vshrl.u32 %v126, 7
  %v128 = vsub.s32 %v125, %v127
  %v129 = vrot.slane %v115, %v128
  %v130 = vcombine.high %v122, %v122
  %v131 = vcombine.high %v129, %v129
  %v142 = vcombine.high %v53, %v53
  %v144 = vunpack.c.l.s4 1983009808
  %v145 = vunpack.c.0.s8 %v144
  %v146 = vlaneseq
  %v147 = vshrl.u32 %v146, 7
  %v148 = vsub.s32 %v145, %v147
  %v149 = vrot.slane %v53, %v148
  %v151 = vunpack.c.l.s4 1983009808
  %v152 = vunpack.c.0.s8 %v151
  %v153 = vlaneseq
  %v154 = vshrl.u32 %v153, 7
  %v155 = vsub.s32 %v152, %v154
  %v156 = vrot.slane %v142, %v155
  %v157 = vcombine.high %v149, %v149
  %v158 = vcombine.high %v156, %v156
  %v159 = vcombine.high %v54, %v54
  %v161 = vunpack.c.l.s4 1983009808
  %v162 = vunpack.c.0.s8 %v161
  %v163 = vlaneseq
  %v164 = vshrl.u32 %v163, 7
  %v165 = vsub.s32 %v162, %v164
  %v166 = vrot.slane %v54, %v165
  %v168 = vunpack.c.l.s4 1983009808
  %v169 = vunpack.c.0.s8 %v168
  %v170 = vlaneseq
  %v171 = vshrl.u32 %v170, 7
  %v172 = vsub.s32 %v169, %v171
  %v173 = vrot.slane %v159, %v172
  %v174 = vcombine.high %v166, %v166
  %v175 = vcombine.high %v173, %v173
  %v184 = vsel %vm88, %v105, %v149
  %v185 = vsel %vm89, %v113, %v157
  %v186 = vsel %vm90, %v112, %v156
  %v187 = vsel %vm91, %v114, %v158
  %v188 = vsel %vm92, %v122, %v166
  %v189 = vsel %vm93, %v130, %v174
  %v190 = vsel %vm94, %v129, %v173
  %v191 = vsel %vm95, %v131, %v175
  %v193 = vlaneseq
  %v194 = vshrl.u32 %v193, 7
  %v195 = vsub.s32 0, %v194
  %v196 = vrot.slane %v48, %v195
  %v197 = vlaneseq
  %v198 = vshrl.u32 %v197, 7
  %v199 = vsub.s32 1, %v198
  %v200 = vrot.slane %v48, %v199
  %v201 = vlaneseq
  %v202 = vshrl.u32 %v201, 7
  %v203 = vsub.s32 2, %v202
  %v204 = vrot.slane %v48, %v203
  %v205 = vlaneseq
  %v206 = vshrl.u32 %v205, 7
  %v207 = vsub.s32 3, %v206
  %v208 = vrot.slane %v48, %v207
  %v209 = vlaneseq
  %v210 = vshrl.u32 %v209, 7
  %v211 = vsub.s32 4, %v210
  %v212 = vrot.slane %v48, %v211
  %v213 = vlaneseq
  %v214 = vshrl.u32 %v213, 7
  %v215 = vsub.s32 5, %v214
  %v216 = vrot.slane %v48, %v215
  %v217 = vlaneseq
  %v218 = vshrl.u32 %v217, 7
  %v219 = vsub.s32 6, %v218
  %v220 = vrot.slane %v48, %v219
  %v221 = vlaneseq
  %v222 = vshrl.u32 %v221, 7
  %v223 = vsub.s32 7, %v222
  %v224 = vrot.slane %v48, %v223
  %v233 = vmul.f32 %v184, %v196
  %v234 = vmul.f32 %v185, %v200
  %v235 = vmul.f32 %v186, %v204
  %v236 = vmul.f32 %v187, %v208
  %v237 = vmul.f32 %v188, %v212
  %v238 = vmul.f32 %v189, %v216
  %v239 = vmul.f32 %v190, %v220
  %v240 = vmul.f32 %v191, %v224
  %v242 = vlaneseq
  %v243 = vshrl.u32 %v242, 7
  %v244 = vsub.s32 0, %v243
  %v245 = vrot.slane %v49, %v244
  %v246 = vlaneseq
  %v247 = vshrl.u32 %v246, 7
  %v248 = vsub.s32 1, %v247
  %v249 = vrot.slane %v49, %v248
  %v250 = vlaneseq
  %v251 = vshrl.u32 %v250, 7
  %v252 = vsub.s32 2, %v251
  %v253 = vrot.slane %v49, %v252
  %v254 = vlaneseq
  %v255 = vshrl.u32 %v254, 7
  %v256 = vsub.s32 3, %v255
  %v257 = vrot.slane %v49, %v256
  %v258 = vlaneseq
  %v259 = vshrl.u32 %v258, 7
  %v260 = vsub.s32 4, %v259
  %v261 = vrot.slane %v49, %v260
  %v262 = vlaneseq
  %v263 = vshrl.u32 %v262, 7
  %v264 = vsub.s32 5, %v263
  %v265 = vrot.slane %v49, %v264
  %v266 = vlaneseq
  %v267 = vshrl.u32 %v266, 7
  %v268 = vsub.s32 6, %v267
  %v269 = vrot.slane %v49, %v268
  %v270 = vlaneseq
  %v271 = vshrl.u32 %v270, 7
  %v272 = vsub.s32 7, %v271
  %v273 = vrot.slane %v49, %v272
  %v282 = vadd.f32 %v233, %v245
  %v283 = vadd.f32 %v234, %v249
  %v284 = vadd.f32 %v235, %v253
  %v285 = vadd.f32 %v236, %v257
  %v286 = vadd.f32 %v237, %v261
  %v287 = vadd.f32 %v238, %v265
  %v288 = vadd.f32 %v239, %v269
  %v289 = vadd.f32 %v240, %v273
  %v290 = vld [vmem:[%s4] sm:$0xff]
  %v291 = vld [vmem:[%s4 + $0x8] sm:$0xff]
  %v292 = vld [vmem:[%s4 + $0x10] sm:$0xff]
  %v293 = vld [vmem:[%s4 + $0x18] sm:$0xff]
  %v294 = vld [vmem:[%s4 + $0x20] sm:$0xff]
  %v295 = vld [vmem:[%s4 + $0x28] sm:$0xff]
  %v296 = vld [vmem:[%s4 + $0x30] sm:$0xff]
  %v297 = vld [vmem:[%s4 + $0x38] sm:$0xff]
  %v298 = vld [vmem:[%s4 + $0x40] sm:$0xff]
  %v299 = vld [vmem:[%s4 + $0x48] sm:$0xff]
  %v300 = vld [vmem:[%s4 + $0x50] sm:$0xff]
  %v301 = vld [vmem:[%s4 + $0x58] sm:$0xff]
  %v302 = vld [vmem:[%s4 + $0x60] sm:$0xff]
  %v303 = vld [vmem:[%s4 + $0x68] sm:$0xff]
  %v304 = vld [vmem:[%s4 + $0x70] sm:$0xff]
  %v305 = vld [vmem:[%s4 + $0x78] sm:$0xff]
  %v306 = vld [vmem:[%s4 + $0x80] sm:$0xff]
  %v307 = vld [vmem:[%s4 + $0x88] sm:$0xff]
  %v308 = vld [vmem:[%s4 + $0x90] sm:$0xff]
  %v309 = vld [vmem:[%s4 + $0x98] sm:$0xff]
  %v310 = vld [vmem:[%s4 + $0xa0] sm:$0xff]
  %v311 = vld [vmem:[%s4 + $0xa8] sm:$0xff]
  %v312 = vld [vmem:[%s4 + $0xb0] sm:$0xff]
  %v313 = vld [vmem:[%s4 + $0xb8] sm:$0xff]
  %v314 = vld [vmem:[%s4 + $0xc0] sm:$0xff]
  %v315 = vld [vmem:[%s4 + $0xc8] sm:$0xff]
  %v316 = vld [vmem:[%s4 + $0xd0] sm:$0xff]
  %v317 = vld [vmem:[%s4 + $0xd8] sm:$0xff]
  %v318 = vld [vmem:[%s4 + $0xe0] sm:$0xff]
  %v319 = vld [vmem:[%s4 + $0xe8] sm:$0xff]
  %v320 = vld [vmem:[%s4 + $0xf0] sm:$0xff]
  %v321 = vld [vmem:[%s4 + $0xf8] sm:$0xff]
  %v322 = vld [vmem:[%s4 + $0x100] sm:$0xff]
  %v323 = vld [vmem:[%s4 + $0x108] sm:$0xff]
  %v324 = vld [vmem:[%s4 + $0x110] sm:$0xff]
  %v325 = vld [vmem:[%s4 + $0x118] sm:$0xff]
  %v326 = vld [vmem:[%s4 + $0x120] sm:$0xff]
  %v327 = vld [vmem:[%s4 + $0x128] sm:$0xff]
  %v328 = vld [vmem:[%s4 + $0x130] sm:$0xff]
  %v329 = vld [vmem:[%s4 + $0x138] sm:$0xff]
  %v330 = vld [vmem:[%s4 + $0x140] sm:$0xff]
  %v331 = vld [vmem:[%s4 + $0x148] sm:$0xff]
  %v332 = vld [vmem:[%s4 + $0x150] sm:$0xff]
  %v333 = vld [vmem:[%s4 + $0x158] sm:$0xff]
  %v334 = vld [vmem:[%s4 + $0x160] sm:$0xff]
  %v335 = vld [vmem:[%s4 + $0x168] sm:$0xff]
  %v336 = vld [vmem:[%s4 + $0x170] sm:$0xff]
  %v337 = vld [vmem:[%s4 + $0x178] sm:$0xff]
  %v338 = vld [vmem:[%s4 + $0x180] sm:$0xff]
  %v339 = vld [vmem:[%s4 + $0x188] sm:$0xff]
  %v340 = vld [vmem:[%s4 + $0x190] sm:$0xff]
  %v341 = vld [vmem:[%s4 + $0x198] sm:$0xff]
  %v342 = vld [vmem:[%s4 + $0x1a0] sm:$0xff]
  %v343 = vld [vmem:[%s4 + $0x1a8] sm:$0xff]
  %v344 = vld [vmem:[%s4 + $0x1b0] sm:$0xff]
  %v345 = vld [vmem:[%s4 + $0x1b8] sm:$0xff]
  %v346 = vld [vmem:[%s4 + $0x1c0] sm:$0xff]
  %v347 = vld [vmem:[%s4 + $0x1c8] sm:$0xff]
  %v348 = vld [vmem:[%s4 + $0x1d0] sm:$0xff]
  %v349 = vld [vmem:[%s4 + $0x1d8] sm:$0xff]
  %v350 = vld [vmem:[%s4 + $0x1e0] sm:$0xff]
  %v351 = vld [vmem:[%s4 + $0x1e8] sm:$0xff]
  %v352 = vld [vmem:[%s4 + $0x1f0] sm:$0xff]
  %v353 = vld [vmem:[%s4 + $0x1f8] sm:$0xff]
  %v354 = vld [vmem:[%s4 + $0x200] sm:$0xff]
  %v355 = vld [vmem:[%s4 + $0x208] sm:$0xff]
  %v356 = vld [vmem:[%s4 + $0x210] sm:$0xff]
  %v357 = vld [vmem:[%s4 + $0x218] sm:$0xff]
  %v358 = vld [vmem:[%s4 + $0x220] sm:$0xff]
  %v359 = vld [vmem:[%s4 + $0x228] sm:$0xff]
  %v360 = vld [vmem:[%s4 + $0x230] sm:$0xff]
  %v361 = vld [vmem:[%s4 + $0x238] sm:$0xff]
  %v362 = vld [vmem:[%s4 + $0x240] sm:$0xff]
  %v363 = vld [vmem:[%s4 + $0x248] sm:$0xff]
  %v364 = vld [vmem:[%s4 + $0x250] sm:$0xff]
  %v365 = vld [vmem:[%s4 + $0x258] sm:$0xff]
  %v366 = vld [vmem:[%s4 + $0x260] sm:$0xff]
  %v367 = vld [vmem:[%s4 + $0x268] sm:$0xff]
  %v368 = vld [vmem:[%s4 + $0x270] sm:$0xff]
  %v369 = vld [vmem:[%s4 + $0x278] sm:$0xff]
  %v370 = vld [vmem:[%s4 + $0x280] sm:$0xff]
  %v371 = vld [vmem:[%s4 + $0x288] sm:$0xff]
  %v372 = vld [vmem:[%s4 + $0x290] sm:$0xff]
  %v373 = vld [vmem:[%s4 + $0x298] sm:$0xff]
  %v374 = vld [vmem:[%s4 + $0x2a0] sm:$0xff]
  %v375 = vld [vmem:[%s4 + $0x2a8] sm:$0xff]
  %v376 = vld [vmem:[%s4 + $0x2b0] sm:$0xff]
  %v377 = vld [vmem:[%s4 + $0x2b8] sm:$0xff]
  %v378 = vld [vmem:[%s4 + $0x2c0] sm:$0xff]
  %v379 = vld [vmem:[%s4 + $0x2c8] sm:$0xff]
  %v380 = vld [vmem:[%s4 + $0x2d0] sm:$0xff]
  %v381 = vld [vmem:[%s4 + $0x2d8] sm:$0xff]
  %v382 = vld [vmem:[%s4 + $0x2e0] sm:$0xff]
  %v383 = vld [vmem:[%s4 + $0x2e8] sm:$0xff]
  %v384 = vld [vmem:[%s4 + $0x2f0] sm:$0xff]
  %v385 = vld [vmem:[%s4 + $0x2f8] sm:$0xff]
  %v386 = vld [vmem:[%s4 + $0x300] sm:$0xff]
  %v387 = vld [vmem:[%s4 + $0x308] sm:$0xff]
  %v388 = vld [vmem:[%s4 + $0x310] sm:$0xff]
  %v389 = vld [vmem:[%s4 + $0x318] sm:$0xff]
  %v390 = vld [vmem:[%s4 + $0x320] sm:$0xff]
  %v391 = vld [vmem:[%s4 + $0x328] sm:$0xff]
  %v392 = vld [vmem:[%s4 + $0x330] sm:$0xff]
  %v393 = vld [vmem:[%s4 + $0x338] sm:$0xff]
  %v394 = vld [vmem:[%s4 + $0x340] sm:$0xff]
  %v395 = vld [vmem:[%s4 + $0x348] sm:$0xff]
  %v396 = vld [vmem:[%s4 + $0x350] sm:$0xff]
  %v397 = vld [vmem:[%s4 + $0x358] sm:$0xff]
  %v398 = vld [vmem:[%s4 + $0x360] sm:$0xff]
  %v399 = vld [vmem:[%s4 + $0x368] sm:$0xff]
  %v400 = vld [vmem:[%s4 + $0x370] sm:$0xff]
  %v401 = vld [vmem:[%s4 + $0x378] sm:$0xff]
  %v402 = vld [vmem:[%s4 + $0x380] sm:$0xff]
  %v403 = vld [vmem:[%s4 + $0x388] sm:$0xff]
  %v404 = vld [vmem:[%s4 + $0x390] sm:$0xff]
  %v405 = vld [vmem:[%s4 + $0x398] sm:$0xff]
  %v406 = vld [vmem:[%s4 + $0x3a0] sm:$0xff]
  %v407 = vld [vmem:[%s4 + $0x3a8] sm:$0xff]
  %v408 = vld [vmem:[%s4 + $0x3b0] sm:$0xff]
  %v409 = vld [vmem:[%s4 + $0x3b8] sm:$0xff]
  %v410 = vld [vmem:[%s4 + $0x3c0] sm:$0xff]
  %v411 = vld [vmem:[%s4 + $0x3c8] sm:$0xff]
  %v412 = vld [vmem:[%s4 + $0x3d0] sm:$0xff]
  %v413 = vld [vmem:[%s4 + $0x3d8] sm:$0xff]
  %v414 = vld [vmem:[%s4 + $0x3e0] sm:$0xff]
  %v415 = vld [vmem:[%s4 + $0x3e8] sm:$0xff]
  %v416 = vld [vmem:[%s4 + $0x3f0] sm:$0xff]
  %v417 = vld [vmem:[%s4 + $0x3f8] sm:$0xff]
  %v418 = vld [vmem:[%s4 + $0x400] sm:$0xff]
  %v419 = vld [vmem:[%s4 + $0x408] sm:$0xff]
  %v420 = vld [vmem:[%s4 + $0x410] sm:$0xff]
  %v421 = vld [vmem:[%s4 + $0x418] sm:$0xff]
  %v422 = vld [vmem:[%s4 + $0x420] sm:$0xff]
  %v423 = vld [vmem:[%s4 + $0x428] sm:$0xff]
  %v424 = vld [vmem:[%s4 + $0x430] sm:$0xff]
  %v425 = vld [vmem:[%s4 + $0x438] sm:$0xff]
  %v426 = vld [vmem:[%s4 + $0x440] sm:$0xff]
  %v427 = vld [vmem:[%s4 + $0x448] sm:$0xff]
  %v428 = vld [vmem:[%s4 + $0x450] sm:$0xff]
  %v429 = vld [vmem:[%s4 + $0x458] sm:$0xff]
  %v430 = vld [vmem:[%s4 + $0x460] sm:$0xff]
  %v431 = vld [vmem:[%s4 + $0x468] sm:$0xff]
  %v432 = vld [vmem:[%s4 + $0x470] sm:$0xff]
  %v433 = vld [vmem:[%s4 + $0x478] sm:$0xff]
  %v434 = vld [vmem:[%s4 + $0x480] sm:$0xff]
  %v435 = vld [vmem:[%s4 + $0x488] sm:$0xff]
  %v436 = vld [vmem:[%s4 + $0x490] sm:$0xff]
  %v437 = vld [vmem:[%s4 + $0x498] sm:$0xff]
  %v438 = vld [vmem:[%s4 + $0x4a0] sm:$0xff]
  %v439 = vld [vmem:[%s4 + $0x4a8] sm:$0xff]
  %v440 = vld [vmem:[%s4 + $0x4b0] sm:$0xff]
  %v441 = vld [vmem:[%s4 + $0x4b8] sm:$0xff]
  %v442 = vld [vmem:[%s4 + $0x4c0] sm:$0xff]
  %v443 = vld [vmem:[%s4 + $0x4c8] sm:$0xff]
  %v444 = vld [vmem:[%s4 + $0x4d0] sm:$0xff]
  %v445 = vld [vmem:[%s4 + $0x4d8] sm:$0xff]
  %v446 = vld [vmem:[%s4 + $0x4e0] sm:$0xff]
  %v447 = vld [vmem:[%s4 + $0x4e8] sm:$0xff]
  %v448 = vld [vmem:[%s4 + $0x4f0] sm:$0xff]
  %v449 = vld [vmem:[%s4 + $0x4f8] sm:$0xff]
  %v450 = vld [vmem:[%s4 + $0x500] sm:$0xff]
  %v451 = vld [vmem:[%s4 + $0x508] sm:$0xff]
  %v452 = vld [vmem:[%s4 + $0x510] sm:$0xff]
  %v453 = vld [vmem:[%s4 + $0x518] sm:$0xff]
  %v454 = vld [vmem:[%s4 + $0x520] sm:$0xff]
  %v455 = vld [vmem:[%s4 + $0x528] sm:$0xff]
  %v456 = vld [vmem:[%s4 + $0x530] sm:$0xff]
  %v457 = vld [vmem:[%s4 + $0x538] sm:$0xff]
  %v458 = vld [vmem:[%s4 + $0x540] sm:$0xff]
  %v459 = vld [vmem:[%s4 + $0x548] sm:$0xff]
  %v460 = vld [vmem:[%s4 + $0x550] sm:$0xff]
  %v461 = vld [vmem:[%s4 + $0x558] sm:$0xff]
  %v462 = vld [vmem:[%s4 + $0x560] sm:$0xff]
  %v463 = vld [vmem:[%s4 + $0x568] sm:$0xff]
  %v464 = vld [vmem:[%s4 + $0x570] sm:$0xff]
  %v465 = vld [vmem:[%s4 + $0x578] sm:$0xff]
  %v466 = vld [vmem:[%s4 + $0x580] sm:$0xff]
  %v467 = vld [vmem:[%s4 + $0x588] sm:$0xff]
  %v468 = vld [vmem:[%s4 + $0x590] sm:$0xff]
  %v469 = vld [vmem:[%s4 + $0x598] sm:$0xff]
  %v470 = vld [vmem:[%s4 + $0x5a0] sm:$0xff]
  %v471 = vld [vmem:[%s4 + $0x5a8] sm:$0xff]
  %v472 = vld [vmem:[%s4 + $0x5b0] sm:$0xff]
  %v473 = vld [vmem:[%s4 + $0x5b8] sm:$0xff]
  %v474 = vld [vmem:[%s4 + $0x5c0] sm:$0xff]
  %v475 = vld [vmem:[%s4 + $0x5c8] sm:$0xff]
  %v476 = vld [vmem:[%s4 + $0x5d0] sm:$0xff]
  %v477 = vld [vmem:[%s4 + $0x5d8] sm:$0xff]
  %v478 = vld [vmem:[%s4 + $0x5e0] sm:$0xff]
  %v479 = vld [vmem:[%s4 + $0x5e8] sm:$0xff]
  %v480 = vld [vmem:[%s4 + $0x5f0] sm:$0xff]
  %v481 = vld [vmem:[%s4 + $0x5f8] sm:$0xff]
  %v482 = vld [vmem:[%s4 + $0x600] sm:$0xff]
  %v483 = vld [vmem:[%s4 + $0x608] sm:$0xff]
  %v484 = vld [vmem:[%s4 + $0x610] sm:$0xff]
  %v485 = vld [vmem:[%s4 + $0x618] sm:$0xff]
  %v486 = vld [vmem:[%s4 + $0x620] sm:$0xff]
  %v487 = vld [vmem:[%s4 + $0x628] sm:$0xff]
  %v488 = vld [vmem:[%s4 + $0x630] sm:$0xff]
  %v489 = vld [vmem:[%s4 + $0x638] sm:$0xff]
  %v490 = vld [vmem:[%s4 + $0x640] sm:$0xff]
  %v491 = vld [vmem:[%s4 + $0x648] sm:$0xff]
  %v492 = vld [vmem:[%s4 + $0x650] sm:$0xff]
  %v493 = vld [vmem:[%s4 + $0x658] sm:$0xff]
  %v494 = vld [vmem:[%s4 + $0x660] sm:$0xff]
  %v495 = vld [vmem:[%s4 + $0x668] sm:$0xff]
  %v496 = vld [vmem:[%s4 + $0x670] sm:$0xff]
  %v497 = vld [vmem:[%s4 + $0x678] sm:$0xff]
  %v498 = vld [vmem:[%s4 + $0x680] sm:$0xff]
  %v499 = vld [vmem:[%s4 + $0x688] sm:$0xff]
  %v500 = vld [vmem:[%s4 + $0x690] sm:$0xff]
  %v501 = vld [vmem:[%s4 + $0x698] sm:$0xff]
  %v502 = vld [vmem:[%s4 + $0x6a0] sm:$0xff]
  %v503 = vld [vmem:[%s4 + $0x6a8] sm:$0xff]
  %v504 = vld [vmem:[%s4 + $0x6b0] sm:$0xff]
  %v505 = vld [vmem:[%s4 + $0x6b8] sm:$0xff]
  %v506 = vld [vmem:[%s4 + $0x6c0] sm:$0xff]
  %v507 = vld [vmem:[%s4 + $0x6c8] sm:$0xff]
  %v508 = vld [vmem:[%s4 + $0x6d0] sm:$0xff]
  %v509 = vld [vmem:[%s4 + $0x6d8] sm:$0xff]
  %v510 = vld [vmem:[%s4 + $0x6e0] sm:$0xff]
  %v511 = vld [vmem:[%s4 + $0x6e8] sm:$0xff]
  %v512 = vld [vmem:[%s4 + $0x6f0] sm:$0xff]
  %v513 = vld [vmem:[%s4 + $0x6f8] sm:$0xff]
  %v514 = vld [vmem:[%s4 + $0x700] sm:$0xff]
  %v515 = vld [vmem:[%s4 + $0x708] sm:$0xff]
  %v516 = vld [vmem:[%s4 + $0x710] sm:$0xff]
  %v517 = vld [vmem:[%s4 + $0x718] sm:$0xff]
  %v518 = vld [vmem:[%s4 + $0x720] sm:$0xff]
  %v519 = vld [vmem:[%s4 + $0x728] sm:$0xff]
  %v520 = vld [vmem:[%s4 + $0x730] sm:$0xff]
  %v521 = vld [vmem:[%s4 + $0x738] sm:$0xff]
  %v522 = vld [vmem:[%s4 + $0x740] sm:$0xff]
  %v523 = vld [vmem:[%s4 + $0x748] sm:$0xff]
  %v524 = vld [vmem:[%s4 + $0x750] sm:$0xff]
  %v525 = vld [vmem:[%s4 + $0x758] sm:$0xff]
  %v526 = vld [vmem:[%s4 + $0x760] sm:$0xff]
  %v527 = vld [vmem:[%s4 + $0x768] sm:$0xff]
  %v528 = vld [vmem:[%s4 + $0x770] sm:$0xff]
  %v529 = vld [vmem:[%s4 + $0x778] sm:$0xff]
  %v530 = vld [vmem:[%s4 + $0x780] sm:$0xff]
  %v531 = vld [vmem:[%s4 + $0x788] sm:$0xff]
  %v532 = vld [vmem:[%s4 + $0x790] sm:$0xff]
  %v533 = vld [vmem:[%s4 + $0x798] sm:$0xff]
  %v534 = vld [vmem:[%s4 + $0x7a0] sm:$0xff]
  %v535 = vld [vmem:[%s4 + $0x7a8] sm:$0xff]
  %v536 = vld [vmem:[%s4 + $0x7b0] sm:$0xff]
  %v537 = vld [vmem:[%s4 + $0x7b8] sm:$0xff]
  %v538 = vld [vmem:[%s4 + $0x7c0] sm:$0xff]
  %v539 = vld [vmem:[%s4 + $0x7c8] sm:$0xff]
  %v540 = vld [vmem:[%s4 + $0x7d0] sm:$0xff]
  %v541 = vld [vmem:[%s4 + $0x7d8] sm:$0xff]
  %v542 = vld [vmem:[%s4 + $0x7e0] sm:$0xff]
  %v543 = vld [vmem:[%s4 + $0x7e8] sm:$0xff]
  %v544 = vld [vmem:[%s4 + $0x7f0] sm:$0xff]
  %v545 = vld [vmem:[%s4 + $0x7f8] sm:$0xff]
  %v546 = vpack.c.bf16 %v282, %v282
  %v547 = vpack.c.bf16 %v283, %v283
  %v548 = vpack.c.bf16 %v284, %v284
  %v549 = vpack.c.bf16 %v285, %v285
  %v550 = vpack.c.bf16 %v286, %v286
  %v551 = vpack.c.bf16 %v287, %v287
  %v552 = vpack.c.bf16 %v288, %v288
  %v553 = vpack.c.bf16 %v289, %v289
  %v554 = vld [vmem:[%s5] sm:$0xf]
  %v556 = vlaneseq
  %v557 = vshrl.u32 %v556, 7
  %v558 = vsub.s32 0, %v557
  %v559 = vrot.slane %v554, %v558
  %v560 = vlaneseq
  %v561 = vshrl.u32 %v560, 7
  %v562 = vsub.s32 1, %v561
  %v563 = vrot.slane %v554, %v562
  %v564 = vlaneseq
  %v565 = vshrl.u32 %v564, 7
  %v566 = vsub.s32 2, %v565
  %v567 = vrot.slane %v554, %v566
  %v568 = vlaneseq
  %v569 = vshrl.u32 %v568, 7
  %v570 = vsub.s32 3, %v569
  %v571 = vrot.slane %v554, %v570
  %v832 = vunpack.c.l.b16 %v290
  %v833 = vunpack.c.h.b16 %v290
  %v834 = vunpack.c.l.b16 %v291
  %v835 = vunpack.c.h.b16 %v291
  %v836 = vunpack.c.l.b16 %v292
  %v837 = vunpack.c.h.b16 %v292
  %v838 = vunpack.c.l.b16 %v293
  %v839 = vunpack.c.h.b16 %v293
  %v840 = vunpack.c.l.b16 %v294
  %v841 = vunpack.c.h.b16 %v294
  %v842 = vunpack.c.l.b16 %v295
  %v843 = vunpack.c.h.b16 %v295
  %v844 = vunpack.c.l.b16 %v296
  %v845 = vunpack.c.h.b16 %v296
  %v846 = vunpack.c.l.b16 %v297
  %v847 = vunpack.c.h.b16 %v297
  %v848 = vunpack.c.l.b16 %v298
  %v849 = vunpack.c.h.b16 %v298
  %v850 = vunpack.c.l.b16 %v299
  %v851 = vunpack.c.h.b16 %v299
  %v852 = vunpack.c.l.b16 %v300
  %v853 = vunpack.c.h.b16 %v300
  %v854 = vunpack.c.l.b16 %v301
  %v855 = vunpack.c.h.b16 %v301
  %v856 = vunpack.c.l.b16 %v302
  %v857 = vunpack.c.h.b16 %v302
  %v858 = vunpack.c.l.b16 %v303
  %v859 = vunpack.c.h.b16 %v303
  %v860 = vunpack.c.l.b16 %v304
  %v861 = vunpack.c.h.b16 %v304
  %v862 = vunpack.c.l.b16 %v305
  %v863 = vunpack.c.h.b16 %v305
  %v864 = vunpack.c.l.b16 %v306
  %v865 = vunpack.c.h.b16 %v306
  %v866 = vunpack.c.l.b16 %v307
  %v867 = vunpack.c.h.b16 %v307
  %v868 = vunpack.c.l.b16 %v308
  %v869 = vunpack.c.h.b16 %v308
  %v870 = vunpack.c.l.b16 %v309
  %v871 = vunpack.c.h.b16 %v309
  %v872 = vunpack.c.l.b16 %v310
  %v873 = vunpack.c.h.b16 %v310
  %v874 = vunpack.c.l.b16 %v311
  %v875 = vunpack.c.h.b16 %v311
  %v876 = vunpack.c.l.b16 %v312
  %v877 = vunpack.c.h.b16 %v312
  %v878 = vunpack.c.l.b16 %v313
  %v879 = vunpack.c.h.b16 %v313
  %v880 = vunpack.c.l.b16 %v314
  %v881 = vunpack.c.h.b16 %v314
  %v882 = vunpack.c.l.b16 %v315
  %v883 = vunpack.c.h.b16 %v315
  %v884 = vunpack.c.l.b16 %v316
  %v885 = vunpack.c.h.b16 %v316
  %v886 = vunpack.c.l.b16 %v317
  %v887 = vunpack.c.h.b16 %v317
  %v888 = vunpack.c.l.b16 %v318
  %v889 = vunpack.c.h.b16 %v318
  %v890 = vunpack.c.l.b16 %v319
  %v891 = vunpack.c.h.b16 %v319
  %v892 = vunpack.c.l.b16 %v320
  %v893 = vunpack.c.h.b16 %v320
  %v894 = vunpack.c.l.b16 %v321
  %v895 = vunpack.c.h.b16 %v321
  %v896 = vunpack.c.l.b16 %v322
  %v897 = vunpack.c.h.b16 %v322
  %v898 = vunpack.c.l.b16 %v323
  %v899 = vunpack.c.h.b16 %v323
  %v900 = vunpack.c.l.b16 %v324
  %v901 = vunpack.c.h.b16 %v324
  %v902 = vunpack.c.l.b16 %v325
  %v903 = vunpack.c.h.b16 %v325
  %v904 = vunpack.c.l.b16 %v326
  %v905 = vunpack.c.h.b16 %v326
  %v906 = vunpack.c.l.b16 %v327
  %v907 = vunpack.c.h.b16 %v327
  %v908 = vunpack.c.l.b16 %v328
  %v909 = vunpack.c.h.b16 %v328
  %v910 = vunpack.c.l.b16 %v329
  %v911 = vunpack.c.h.b16 %v329
  %v912 = vunpack.c.l.b16 %v330
  %v913 = vunpack.c.h.b16 %v330
  %v914 = vunpack.c.l.b16 %v331
  %v915 = vunpack.c.h.b16 %v331
  %v916 = vunpack.c.l.b16 %v332
  %v917 = vunpack.c.h.b16 %v332
  %v918 = vunpack.c.l.b16 %v333
  %v919 = vunpack.c.h.b16 %v333
  %v920 = vunpack.c.l.b16 %v334
  %v921 = vunpack.c.h.b16 %v334
  %v922 = vunpack.c.l.b16 %v335
  %v923 = vunpack.c.h.b16 %v335
  %v924 = vunpack.c.l.b16 %v336
  %v925 = vunpack.c.h.b16 %v336
  %v926 = vunpack.c.l.b16 %v337
  %v927 = vunpack.c.h.b16 %v337
  %v928 = vunpack.c.l.b16 %v338
  %v929 = vunpack.c.h.b16 %v338
  %v930 = vunpack.c.l.b16 %v339
  %v931 = vunpack.c.h.b16 %v339
  %v932 = vunpack.c.l.b16 %v340
  %v933 = vunpack.c.h.b16 %v340
  %v934 = vunpack.c.l.b16 %v341
  %v935 = vunpack.c.h.b16 %v341
  %v936 = vunpack.c.l.b16 %v342
  %v937 = vunpack.c.h.b16 %v342
  %v938 = vunpack.c.l.b16 %v343
  %v939 = vunpack.c.h.b16 %v343
  %v940 = vunpack.c.l.b16 %v344
  %v941 = vunpack.c.h.b16 %v344
  %v942 = vunpack.c.l.b16 %v345
  %v943 = vunpack.c.h.b16 %v345
  %v944 = vunpack.c.l.b16 %v346
  %v945 = vunpack.c.h.b16 %v346
  %v946 = vunpack.c.l.b16 %v347
  %v947 = vunpack.c.h.b16 %v347
  %v948 = vunpack.c.l.b16 %v348
  %v949 = vunpack.c.h.b16 %v348
  %v950 = vunpack.c.l.b16 %v349
  %v951 = vunpack.c.h.b16 %v349
  %v952 = vunpack.c.l.b16 %v350
  %v953 = vunpack.c.h.b16 %v350
  %v954 = vunpack.c.l.b16 %v351
  %v955 = vunpack.c.h.b16 %v351
  %v956 = vunpack.c.l.b16 %v352
  %v957 = vunpack.c.h.b16 %v352
  %v958 = vunpack.c.l.b16 %v353
  %v959 = vunpack.c.h.b16 %v353
  %v960 = vunpack.c.l.b16 %v354
  %v961 = vunpack.c.h.b16 %v354
  %v962 = vunpack.c.l.b16 %v355
  %v963 = vunpack.c.h.b16 %v355
  %v964 = vunpack.c.l.b16 %v356
  %v965 = vunpack.c.h.b16 %v356
  %v966 = vunpack.c.l.b16 %v357
  %v967 = vunpack.c.h.b16 %v357
  %v968 = vunpack.c.l.b16 %v358
  %v969 = vunpack.c.h.b16 %v358
  %v970 = vunpack.c.l.b16 %v359
  %v971 = vunpack.c.h.b16 %v359
  %v972 = vunpack.c.l.b16 %v360
  %v973 = vunpack.c.h.b16 %v360
  %v974 = vunpack.c.l.b16 %v361
  %v975 = vunpack.c.h.b16 %v361
  %v976 = vunpack.c.l.b16 %v362
  %v977 = vunpack.c.h.b16 %v362
  %v978 = vunpack.c.l.b16 %v363
  %v979 = vunpack.c.h.b16 %v363
  %v980 = vunpack.c.l.b16 %v364
  %v981 = vunpack.c.h.b16 %v364
  %v982 = vunpack.c.l.b16 %v365
  %v983 = vunpack.c.h.b16 %v365
  %v984 = vunpack.c.l.b16 %v366
  %v985 = vunpack.c.h.b16 %v366
  %v986 = vunpack.c.l.b16 %v367
  %v987 = vunpack.c.h.b16 %v367
  %v988 = vunpack.c.l.b16 %v368
  %v989 = vunpack.c.h.b16 %v368
  %v990 = vunpack.c.l.b16 %v369
  %v991 = vunpack.c.h.b16 %v369
  %v992 = vunpack.c.l.b16 %v370
  %v993 = vunpack.c.h.b16 %v370
  %v994 = vunpack.c.l.b16 %v371
  %v995 = vunpack.c.h.b16 %v371
  %v996 = vunpack.c.l.b16 %v372
  %v997 = vunpack.c.h.b16 %v372
  %v998 = vunpack.c.l.b16 %v373
  %v999 = vunpack.c.h.b16 %v373
  %v1000 = vunpack.c.l.b16 %v374
  %v1001 = vunpack.c.h.b16 %v374
  %v1002 = vunpack.c.l.b16 %v375
  %v1003 = vunpack.c.h.b16 %v375
  %v1004 = vunpack.c.l.b16 %v376
  %v1005 = vunpack.c.h.b16 %v376
  %v1006 = vunpack.c.l.b16 %v377
  %v1007 = vunpack.c.h.b16 %v377
  %v1008 = vunpack.c.l.b16 %v378
  %v1009 = vunpack.c.h.b16 %v378
  %v1010 = vunpack.c.l.b16 %v379
  %v1011 = vunpack.c.h.b16 %v379
  %v1012 = vunpack.c.l.b16 %v380
  %v1013 = vunpack.c.h.b16 %v380
  %v1014 = vunpack.c.l.b16 %v381
  %v1015 = vunpack.c.h.b16 %v381
  %v1016 = vunpack.c.l.b16 %v382
  %v1017 = vunpack.c.h.b16 %v382
  %v1018 = vunpack.c.l.b16 %v383
  %v1019 = vunpack.c.h.b16 %v383
  %v1020 = vunpack.c.l.b16 %v384
  %v1021 = vunpack.c.h.b16 %v384
  %v1022 = vunpack.c.l.b16 %v385
  %v1023 = vunpack.c.h.b16 %v385
  %v1024 = vunpack.c.l.b16 %v386
  %v1025 = vunpack.c.h.b16 %v386
  %v1026 = vunpack.c.l.b16 %v387
  %v1027 = vunpack.c.h.b16 %v387
  %v1028 = vunpack.c.l.b16 %v388
  %v1029 = vunpack.c.h.b16 %v388
  %v1030 = vunpack.c.l.b16 %v389
  %v1031 = vunpack.c.h.b16 %v389
  %v1032 = vunpack.c.l.b16 %v390
  %v1033 = vunpack.c.h.b16 %v390
  %v1034 = vunpack.c.l.b16 %v391
  %v1035 = vunpack.c.h.b16 %v391
  %v1036 = vunpack.c.l.b16 %v392
  %v1037 = vunpack.c.h.b16 %v392
  %v1038 = vunpack.c.l.b16 %v393
  %v1039 = vunpack.c.h.b16 %v393
  %v1040 = vunpack.c.l.b16 %v394
  %v1041 = vunpack.c.h.b16 %v394
  %v1042 = vunpack.c.l.b16 %v395
  %v1043 = vunpack.c.h.b16 %v395
  %v1044 = vunpack.c.l.b16 %v396
  %v1045 = vunpack.c.h.b16 %v396
  %v1046 = vunpack.c.l.b16 %v397
  %v1047 = vunpack.c.h.b16 %v397
  %v1048 = vunpack.c.l.b16 %v398
  %v1049 = vunpack.c.h.b16 %v398
  %v1050 = vunpack.c.l.b16 %v399
  %v1051 = vunpack.c.h.b16 %v399
  %v1052 = vunpack.c.l.b16 %v400
  %v1053 = vunpack.c.h.b16 %v400
  %v1054 = vunpack.c.l.b16 %v401
  %v1055 = vunpack.c.h.b16 %v401
  %v1056 = vunpack.c.l.b16 %v402
  %v1057 = vunpack.c.h.b16 %v402
  %v1058 = vunpack.c.l.b16 %v403
  %v1059 = vunpack.c.h.b16 %v403
  %v1060 = vunpack.c.l.b16 %v404
  %v1061 = vunpack.c.h.b16 %v404
  %v1062 = vunpack.c.l.b16 %v405
  %v1063 = vunpack.c.h.b16 %v405
  %v1064 = vunpack.c.l.b16 %v406
  %v1065 = vunpack.c.h.b16 %v406
  %v1066 = vunpack.c.l.b16 %v407
  %v1067 = vunpack.c.h.b16 %v407
  %v1068 = vunpack.c.l.b16 %v408
  %v1069 = vunpack.c.h.b16 %v408
  %v1070 = vunpack.c.l.b16 %v409
  %v1071 = vunpack.c.h.b16 %v409
  %v1072 = vunpack.c.l.b16 %v410
  %v1073 = vunpack.c.h.b16 %v410
  %v1074 = vunpack.c.l.b16 %v411
  %v1075 = vunpack.c.h.b16 %v411
  %v1076 = vunpack.c.l.b16 %v412
  %v1077 = vunpack.c.h.b16 %v412
  %v1078 = vunpack.c.l.b16 %v413
  %v1079 = vunpack.c.h.b16 %v413
  %v1080 = vunpack.c.l.b16 %v414
  %v1081 = vunpack.c.h.b16 %v414
  %v1082 = vunpack.c.l.b16 %v415
  %v1083 = vunpack.c.h.b16 %v415
  %v1084 = vunpack.c.l.b16 %v416
  %v1085 = vunpack.c.h.b16 %v416
  %v1086 = vunpack.c.l.b16 %v417
  %v1087 = vunpack.c.h.b16 %v417
  %v1088 = vunpack.c.l.b16 %v418
  %v1089 = vunpack.c.h.b16 %v418
  %v1090 = vunpack.c.l.b16 %v419
  %v1091 = vunpack.c.h.b16 %v419
  %v1092 = vunpack.c.l.b16 %v420
  %v1093 = vunpack.c.h.b16 %v420
  %v1094 = vunpack.c.l.b16 %v421
  %v1095 = vunpack.c.h.b16 %v421
  %v1096 = vunpack.c.l.b16 %v422
  %v1097 = vunpack.c.h.b16 %v422
  %v1098 = vunpack.c.l.b16 %v423
  %v1099 = vunpack.c.h.b16 %v423
  %v1100 = vunpack.c.l.b16 %v424
  %v1101 = vunpack.c.h.b16 %v424
  %v1102 = vunpack.c.l.b16 %v425
  %v1103 = vunpack.c.h.b16 %v425
  %v1104 = vunpack.c.l.b16 %v426
  %v1105 = vunpack.c.h.b16 %v426
  %v1106 = vunpack.c.l.b16 %v427
  %v1107 = vunpack.c.h.b16 %v427
  %v1108 = vunpack.c.l.b16 %v428
  %v1109 = vunpack.c.h.b16 %v428
  %v1110 = vunpack.c.l.b16 %v429
  %v1111 = vunpack.c.h.b16 %v429
  %v1112 = vunpack.c.l.b16 %v430
  %v1113 = vunpack.c.h.b16 %v430
  %v1114 = vunpack.c.l.b16 %v431
  %v1115 = vunpack.c.h.b16 %v431
  %v1116 = vunpack.c.l.b16 %v432
  %v1117 = vunpack.c.h.b16 %v432
  %v1118 = vunpack.c.l.b16 %v433
  %v1119 = vunpack.c.h.b16 %v433
  %v1120 = vunpack.c.l.b16 %v434
  %v1121 = vunpack.c.h.b16 %v434
  %v1122 = vunpack.c.l.b16 %v435
  %v1123 = vunpack.c.h.b16 %v435
  %v1124 = vunpack.c.l.b16 %v436
  %v1125 = vunpack.c.h.b16 %v436
  %v1126 = vunpack.c.l.b16 %v437
  %v1127 = vunpack.c.h.b16 %v437
  %v1128 = vunpack.c.l.b16 %v438
  %v1129 = vunpack.c.h.b16 %v438
  %v1130 = vunpack.c.l.b16 %v439
  %v1131 = vunpack.c.h.b16 %v439
  %v1132 = vunpack.c.l.b16 %v440
  %v1133 = vunpack.c.h.b16 %v440
  %v1134 = vunpack.c.l.b16 %v441
  %v1135 = vunpack.c.h.b16 %v441
  %v1136 = vunpack.c.l.b16 %v442
  %v1137 = vunpack.c.h.b16 %v442
  %v1138 = vunpack.c.l.b16 %v443
  %v1139 = vunpack.c.h.b16 %v443
  %v1140 = vunpack.c.l.b16 %v444
  %v1141 = vunpack.c.h.b16 %v444
  %v1142 = vunpack.c.l.b16 %v445
  %v1143 = vunpack.c.h.b16 %v445
  %v1144 = vunpack.c.l.b16 %v446
  %v1145 = vunpack.c.h.b16 %v446
  %v1146 = vunpack.c.l.b16 %v447
  %v1147 = vunpack.c.h.b16 %v447
  %v1148 = vunpack.c.l.b16 %v448
  %v1149 = vunpack.c.h.b16 %v448
  %v1150 = vunpack.c.l.b16 %v449
  %v1151 = vunpack.c.h.b16 %v449
  %v1152 = vunpack.c.l.b16 %v450
  %v1153 = vunpack.c.h.b16 %v450
  %v1154 = vunpack.c.l.b16 %v451
  %v1155 = vunpack.c.h.b16 %v451
  %v1156 = vunpack.c.l.b16 %v452
  %v1157 = vunpack.c.h.b16 %v452
  %v1158 = vunpack.c.l.b16 %v453
  %v1159 = vunpack.c.h.b16 %v453
  %v1160 = vunpack.c.l.b16 %v454
  %v1161 = vunpack.c.h.b16 %v454
  %v1162 = vunpack.c.l.b16 %v455
  %v1163 = vunpack.c.h.b16 %v455
  %v1164 = vunpack.c.l.b16 %v456
  %v1165 = vunpack.c.h.b16 %v456
  %v1166 = vunpack.c.l.b16 %v457
  %v1167 = vunpack.c.h.b16 %v457
  %v1168 = vunpack.c.l.b16 %v458
  %v1169 = vunpack.c.h.b16 %v458
  %v1170 = vunpack.c.l.b16 %v459
  %v1171 = vunpack.c.h.b16 %v459
  %v1172 = vunpack.c.l.b16 %v460
  %v1173 = vunpack.c.h.b16 %v460
  %v1174 = vunpack.c.l.b16 %v461
  %v1175 = vunpack.c.h.b16 %v461
  %v1176 = vunpack.c.l.b16 %v462
  %v1177 = vunpack.c.h.b16 %v462
  %v1178 = vunpack.c.l.b16 %v463
  %v1179 = vunpack.c.h.b16 %v463
  %v1180 = vunpack.c.l.b16 %v464
  %v1181 = vunpack.c.h.b16 %v464
  %v1182 = vunpack.c.l.b16 %v465
  %v1183 = vunpack.c.h.b16 %v465
  %v1184 = vunpack.c.l.b16 %v466
  %v1185 = vunpack.c.h.b16 %v466
  %v1186 = vunpack.c.l.b16 %v467
  %v1187 = vunpack.c.h.b16 %v467
  %v1188 = vunpack.c.l.b16 %v468
  %v1189 = vunpack.c.h.b16 %v468
  %v1190 = vunpack.c.l.b16 %v469
  %v1191 = vunpack.c.h.b16 %v469
  %v1192 = vunpack.c.l.b16 %v470
  %v1193 = vunpack.c.h.b16 %v470
  %v1194 = vunpack.c.l.b16 %v471
  %v1195 = vunpack.c.h.b16 %v471
  %v1196 = vunpack.c.l.b16 %v472
  %v1197 = vunpack.c.h.b16 %v472
  %v1198 = vunpack.c.l.b16 %v473
  %v1199 = vunpack.c.h.b16 %v473
  %v1200 = vunpack.c.l.b16 %v474
  %v1201 = vunpack.c.h.b16 %v474
  %v1202 = vunpack.c.l.b16 %v475
  %v1203 = vunpack.c.h.b16 %v475
  %v1204 = vunpack.c.l.b16 %v476
  %v1205 = vunpack.c.h.b16 %v476
  %v1206 = vunpack.c.l.b16 %v477
  %v1207 = vunpack.c.h.b16 %v477
  %v1208 = vunpack.c.l.b16 %v478
  %v1209 = vunpack.c.h.b16 %v478
  %v1210 = vunpack.c.l.b16 %v479
  %v1211 = vunpack.c.h.b16 %v479
  %v1212 = vunpack.c.l.b16 %v480
  %v1213 = vunpack.c.h.b16 %v480
  %v1214 = vunpack.c.l.b16 %v481
  %v1215 = vunpack.c.h.b16 %v481
  %v1216 = vunpack.c.l.b16 %v482
  %v1217 = vunpack.c.h.b16 %v482
  %v1218 = vunpack.c.l.b16 %v483
  %v1219 = vunpack.c.h.b16 %v483
  %v1220 = vunpack.c.l.b16 %v484
  %v1221 = vunpack.c.h.b16 %v484
  %v1222 = vunpack.c.l.b16 %v485
  %v1223 = vunpack.c.h.b16 %v485
  %v1224 = vunpack.c.l.b16 %v486
  %v1225 = vunpack.c.h.b16 %v486
  %v1226 = vunpack.c.l.b16 %v487
  %v1227 = vunpack.c.h.b16 %v487
  %v1228 = vunpack.c.l.b16 %v488
  %v1229 = vunpack.c.h.b16 %v488
  %v1230 = vunpack.c.l.b16 %v489
  %v1231 = vunpack.c.h.b16 %v489
  %v1232 = vunpack.c.l.b16 %v490
  %v1233 = vunpack.c.h.b16 %v490
  %v1234 = vunpack.c.l.b16 %v491
  %v1235 = vunpack.c.h.b16 %v491
  %v1236 = vunpack.c.l.b16 %v492
  %v1237 = vunpack.c.h.b16 %v492
  %v1238 = vunpack.c.l.b16 %v493
  %v1239 = vunpack.c.h.b16 %v493
  %v1240 = vunpack.c.l.b16 %v494
  %v1241 = vunpack.c.h.b16 %v494
  %v1242 = vunpack.c.l.b16 %v495
  %v1243 = vunpack.c.h.b16 %v495
  %v1244 = vunpack.c.l.b16 %v496
  %v1245 = vunpack.c.h.b16 %v496
  %v1246 = vunpack.c.l.b16 %v497
  %v1247 = vunpack.c.h.b16 %v497
  %v1248 = vunpack.c.l.b16 %v498
  %v1249 = vunpack.c.h.b16 %v498
  %v1250 = vunpack.c.l.b16 %v499
  %v1251 = vunpack.c.h.b16 %v499
  %v1252 = vunpack.c.l.b16 %v500
  %v1253 = vunpack.c.h.b16 %v500
  %v1254 = vunpack.c.l.b16 %v501
  %v1255 = vunpack.c.h.b16 %v501
  %v1256 = vunpack.c.l.b16 %v502
  %v1257 = vunpack.c.h.b16 %v502
  %v1258 = vunpack.c.l.b16 %v503
  %v1259 = vunpack.c.h.b16 %v503
  %v1260 = vunpack.c.l.b16 %v504
  %v1261 = vunpack.c.h.b16 %v504
  %v1262 = vunpack.c.l.b16 %v505
  %v1263 = vunpack.c.h.b16 %v505
  %v1264 = vunpack.c.l.b16 %v506
  %v1265 = vunpack.c.h.b16 %v506
  %v1266 = vunpack.c.l.b16 %v507
  %v1267 = vunpack.c.h.b16 %v507
  %v1268 = vunpack.c.l.b16 %v508
  %v1269 = vunpack.c.h.b16 %v508
  %v1270 = vunpack.c.l.b16 %v509
  %v1271 = vunpack.c.h.b16 %v509
  %v1272 = vunpack.c.l.b16 %v510
  %v1273 = vunpack.c.h.b16 %v510
  %v1274 = vunpack.c.l.b16 %v511
  %v1275 = vunpack.c.h.b16 %v511
  %v1276 = vunpack.c.l.b16 %v512
  %v1277 = vunpack.c.h.b16 %v512
  %v1278 = vunpack.c.l.b16 %v513
  %v1279 = vunpack.c.h.b16 %v513
  %v1280 = vunpack.c.l.b16 %v514
  %v1281 = vunpack.c.h.b16 %v514
  %v1282 = vunpack.c.l.b16 %v515
  %v1283 = vunpack.c.h.b16 %v515
  %v1284 = vunpack.c.l.b16 %v516
  %v1285 = vunpack.c.h.b16 %v516
  %v1286 = vunpack.c.l.b16 %v517
  %v1287 = vunpack.c.h.b16 %v517
  %v1288 = vunpack.c.l.b16 %v518
  %v1289 = vunpack.c.h.b16 %v518
  %v1290 = vunpack.c.l.b16 %v519
  %v1291 = vunpack.c.h.b16 %v519
  %v1292 = vunpack.c.l.b16 %v520
  %v1293 = vunpack.c.h.b16 %v520
  %v1294 = vunpack.c.l.b16 %v521
  %v1295 = vunpack.c.h.b16 %v521
  %v1296 = vunpack.c.l.b16 %v522
  %v1297 = vunpack.c.h.b16 %v522
  %v1298 = vunpack.c.l.b16 %v523
  %v1299 = vunpack.c.h.b16 %v523
  %v1300 = vunpack.c.l.b16 %v524
  %v1301 = vunpack.c.h.b16 %v524
  %v1302 = vunpack.c.l.b16 %v525
  %v1303 = vunpack.c.h.b16 %v525
  %v1304 = vunpack.c.l.b16 %v526
  %v1305 = vunpack.c.h.b16 %v526
  %v1306 = vunpack.c.l.b16 %v527
  %v1307 = vunpack.c.h.b16 %v527
  %v1308 = vunpack.c.l.b16 %v528
  %v1309 = vunpack.c.h.b16 %v528
  %v1310 = vunpack.c.l.b16 %v529
  %v1311 = vunpack.c.h.b16 %v529
  %v1312 = vunpack.c.l.b16 %v530
  %v1313 = vunpack.c.h.b16 %v530
  %v1314 = vunpack.c.l.b16 %v531
  %v1315 = vunpack.c.h.b16 %v531
  %v1316 = vunpack.c.l.b16 %v532
  %v1317 = vunpack.c.h.b16 %v532
  %v1318 = vunpack.c.l.b16 %v533
  %v1319 = vunpack.c.h.b16 %v533
  %v1320 = vunpack.c.l.b16 %v534
  %v1321 = vunpack.c.h.b16 %v534
  %v1322 = vunpack.c.l.b16 %v535
  %v1323 = vunpack.c.h.b16 %v535
  %v1324 = vunpack.c.l.b16 %v536
  %v1325 = vunpack.c.h.b16 %v536
  %v1326 = vunpack.c.l.b16 %v537
  %v1327 = vunpack.c.h.b16 %v537
  %v1328 = vunpack.c.l.b16 %v538
  %v1329 = vunpack.c.h.b16 %v538
  %v1330 = vunpack.c.l.b16 %v539
  %v1331 = vunpack.c.h.b16 %v539
  %v1332 = vunpack.c.l.b16 %v540
  %v1333 = vunpack.c.h.b16 %v540
  %v1334 = vunpack.c.l.b16 %v541
  %v1335 = vunpack.c.h.b16 %v541
  %v1336 = vunpack.c.l.b16 %v542
  %v1337 = vunpack.c.h.b16 %v542
  %v1338 = vunpack.c.l.b16 %v543
  %v1339 = vunpack.c.h.b16 %v543
  %v1340 = vunpack.c.l.b16 %v544
  %v1341 = vunpack.c.h.b16 %v544
  %v1342 = vunpack.c.l.b16 %v545
  %v1343 = vunpack.c.h.b16 %v545
  %v1344 = vpack.c.b16 %v836, %v832
  %v1345 = vpack.c.b16 %v837, %v833
  %v1346 = vpack.c.b16 %v838, %v834
  %v1347 = vpack.c.b16 %v839, %v835
  %v1348 = vpack.c.b16 %v844, %v840
  %v1349 = vpack.c.b16 %v845, %v841
  %v1350 = vpack.c.b16 %v846, %v842
  %v1351 = vpack.c.b16 %v847, %v843
  %v1352 = vpack.c.b16 %v852, %v848
  %v1353 = vpack.c.b16 %v853, %v849
  %v1354 = vpack.c.b16 %v854, %v850
  %v1355 = vpack.c.b16 %v855, %v851
  %v1356 = vpack.c.b16 %v860, %v856
  %v1357 = vpack.c.b16 %v861, %v857
  %v1358 = vpack.c.b16 %v862, %v858
  %v1359 = vpack.c.b16 %v863, %v859
  %v1360 = vpack.c.b16 %v868, %v864
  %v1361 = vpack.c.b16 %v869, %v865
  %v1362 = vpack.c.b16 %v870, %v866
  %v1363 = vpack.c.b16 %v871, %v867
  %v1364 = vpack.c.b16 %v876, %v872
  %v1365 = vpack.c.b16 %v877, %v873
  %v1366 = vpack.c.b16 %v878, %v874
  %v1367 = vpack.c.b16 %v879, %v875
  %v1368 = vpack.c.b16 %v884, %v880
  %v1369 = vpack.c.b16 %v885, %v881
  %v1370 = vpack.c.b16 %v886, %v882
  %v1371 = vpack.c.b16 %v887, %v883
  %v1372 = vpack.c.b16 %v892, %v888
  %v1373 = vpack.c.b16 %v893, %v889
  %v1374 = vpack.c.b16 %v894, %v890
  %v1375 = vpack.c.b16 %v895, %v891
  %v1376 = vpack.c.b16 %v900, %v896
  %v1377 = vpack.c.b16 %v901, %v897
  %v1378 = vpack.c.b16 %v902, %v898
  %v1379 = vpack.c.b16 %v903, %v899
  %v1380 = vpack.c.b16 %v908, %v904
  %v1381 = vpack.c.b16 %v909, %v905
  %v1382 = vpack.c.b16 %v910, %v906
  %v1383 = vpack.c.b16 %v911, %v907
  %v1384 = vpack.c.b16 %v916, %v912
  %v1385 = vpack.c.b16 %v917, %v913
  %v1386 = vpack.c.b16 %v918, %v914
  %v1387 = vpack.c.b16 %v919, %v915
  %v1388 = vpack.c.b16 %v924, %v920
  %v1389 = vpack.c.b16 %v925, %v921
  %v1390 = vpack.c.b16 %v926, %v922
  %v1391 = vpack.c.b16 %v927, %v923
  %v1392 = vpack.c.b16 %v932, %v928
  %v1393 = vpack.c.b16 %v933, %v929
  %v1394 = vpack.c.b16 %v934, %v930
  %v1395 = vpack.c.b16 %v935, %v931
  %v1396 = vpack.c.b16 %v940, %v936
  %v1397 = vpack.c.b16 %v941, %v937
  %v1398 = vpack.c.b16 %v942, %v938
  %v1399 = vpack.c.b16 %v943, %v939
  %v1400 = vpack.c.b16 %v948, %v944
  %v1401 = vpack.c.b16 %v949, %v945
  %v1402 = vpack.c.b16 %v950, %v946
  %v1403 = vpack.c.b16 %v951, %v947
  %v1404 = vpack.c.b16 %v956, %v952
  %v1405 = vpack.c.b16 %v957, %v953
  %v1406 = vpack.c.b16 %v958, %v954
  %v1407 = vpack.c.b16 %v959, %v955
  %v1408 = vpack.c.b16 %v964, %v960
  %v1409 = vpack.c.b16 %v965, %v961
  %v1410 = vpack.c.b16 %v966, %v962
  %v1411 = vpack.c.b16 %v967, %v963
  %v1412 = vpack.c.b16 %v972, %v968
  %v1413 = vpack.c.b16 %v973, %v969
  %v1414 = vpack.c.b16 %v974, %v970
  %v1415 = vpack.c.b16 %v975, %v971
  %v1416 = vpack.c.b16 %v980, %v976
  %v1417 = vpack.c.b16 %v981, %v977
  %v1418 = vpack.c.b16 %v982, %v978
  %v1419 = vpack.c.b16 %v983, %v979
  %v1420 = vpack.c.b16 %v988, %v984
  %v1421 = vpack.c.b16 %v989, %v985
  %v1422 = vpack.c.b16 %v990, %v986
  %v1423 = vpack.c.b16 %v991, %v987
  %v1424 = vpack.c.b16 %v996, %v992
  %v1425 = vpack.c.b16 %v997, %v993
  %v1426 = vpack.c.b16 %v998, %v994
  %v1427 = vpack.c.b16 %v999, %v995
  %v1428 = vpack.c.b16 %v1004, %v1000
  %v1429 = vpack.c.b16 %v1005, %v1001
  %v1430 = vpack.c.b16 %v1006, %v1002
  %v1431 = vpack.c.b16 %v1007, %v1003
  %v1432 = vpack.c.b16 %v1012, %v1008
  %v1433 = vpack.c.b16 %v1013, %v1009
  %v1434 = vpack.c.b16 %v1014, %v1010
  %v1435 = vpack.c.b16 %v1015, %v1011
  %v1436 = vpack.c.b16 %v1020, %v1016
  %v1437 = vpack.c.b16 %v1021, %v1017
  %v1438 = vpack.c.b16 %v1022, %v1018
  %v1439 = vpack.c.b16 %v1023, %v1019
  %v1440 = vpack.c.b16 %v1028, %v1024
  %v1441 = vpack.c.b16 %v1029, %v1025
  %v1442 = vpack.c.b16 %v1030, %v1026
  %v1443 = vpack.c.b16 %v1031, %v1027
  %v1444 = vpack.c.b16 %v1036, %v1032
  %v1445 = vpack.c.b16 %v1037, %v1033
  %v1446 = vpack.c.b16 %v1038, %v1034
  %v1447 = vpack.c.b16 %v1039, %v1035
  %v1448 = vpack.c.b16 %v1044, %v1040
  %v1449 = vpack.c.b16 %v1045, %v1041
  %v1450 = vpack.c.b16 %v1046, %v1042
  %v1451 = vpack.c.b16 %v1047, %v1043
  %v1452 = vpack.c.b16 %v1052, %v1048
  %v1453 = vpack.c.b16 %v1053, %v1049
  %v1454 = vpack.c.b16 %v1054, %v1050
  %v1455 = vpack.c.b16 %v1055, %v1051
  %v1456 = vpack.c.b16 %v1060, %v1056
  %v1457 = vpack.c.b16 %v1061, %v1057
  %v1458 = vpack.c.b16 %v1062, %v1058
  %v1459 = vpack.c.b16 %v1063, %v1059
  %v1460 = vpack.c.b16 %v1068, %v1064
  %v1461 = vpack.c.b16 %v1069, %v1065
  %v1462 = vpack.c.b16 %v1070, %v1066
  %v1463 = vpack.c.b16 %v1071, %v1067
  %v1464 = vpack.c.b16 %v1076, %v1072
  %v1465 = vpack.c.b16 %v1077, %v1073
  %v1466 = vpack.c.b16 %v1078, %v1074
  %v1467 = vpack.c.b16 %v1079, %v1075
  %v1468 = vpack.c.b16 %v1084, %v1080
  %v1469 = vpack.c.b16 %v1085, %v1081
  %v1470 = vpack.c.b16 %v1086, %v1082
  %v1471 = vpack.c.b16 %v1087, %v1083
  %v1472 = vpack.c.b16 %v1092, %v1088
  %v1473 = vpack.c.b16 %v1093, %v1089
  %v1474 = vpack.c.b16 %v1094, %v1090
  %v1475 = vpack.c.b16 %v1095, %v1091
  %v1476 = vpack.c.b16 %v1100, %v1096
  %v1477 = vpack.c.b16 %v1101, %v1097
  %v1478 = vpack.c.b16 %v1102, %v1098
  %v1479 = vpack.c.b16 %v1103, %v1099
  %v1480 = vpack.c.b16 %v1108, %v1104
  %v1481 = vpack.c.b16 %v1109, %v1105
  %v1482 = vpack.c.b16 %v1110, %v1106
  %v1483 = vpack.c.b16 %v1111, %v1107
  %v1484 = vpack.c.b16 %v1116, %v1112
  %v1485 = vpack.c.b16 %v1117, %v1113
  %v1486 = vpack.c.b16 %v1118, %v1114
  %v1487 = vpack.c.b16 %v1119, %v1115
  %v1488 = vpack.c.b16 %v1124, %v1120
  %v1489 = vpack.c.b16 %v1125, %v1121
  %v1490 = vpack.c.b16 %v1126, %v1122
  %v1491 = vpack.c.b16 %v1127, %v1123
  %v1492 = vpack.c.b16 %v1132, %v1128
  %v1493 = vpack.c.b16 %v1133, %v1129
  %v1494 = vpack.c.b16 %v1134, %v1130
  %v1495 = vpack.c.b16 %v1135, %v1131
  %v1496 = vpack.c.b16 %v1140, %v1136
  %v1497 = vpack.c.b16 %v1141, %v1137
  %v1498 = vpack.c.b16 %v1142, %v1138
  %v1499 = vpack.c.b16 %v1143, %v1139
  %v1500 = vpack.c.b16 %v1148, %v1144
  %v1501 = vpack.c.b16 %v1149, %v1145
  %v1502 = vpack.c.b16 %v1150, %v1146
  %v1503 = vpack.c.b16 %v1151, %v1147
  %v1504 = vpack.c.b16 %v1156, %v1152
  %v1505 = vpack.c.b16 %v1157, %v1153
  %v1506 = vpack.c.b16 %v1158, %v1154
  %v1507 = vpack.c.b16 %v1159, %v1155
  %v1508 = vpack.c.b16 %v1164, %v1160
  %v1509 = vpack.c.b16 %v1165, %v1161
  %v1510 = vpack.c.b16 %v1166, %v1162
  %v1511 = vpack.c.b16 %v1167, %v1163
  %v1512 = vpack.c.b16 %v1172, %v1168
  %v1513 = vpack.c.b16 %v1173, %v1169
  %v1514 = vpack.c.b16 %v1174, %v1170
  %v1515 = vpack.c.b16 %v1175, %v1171
  %v1516 = vpack.c.b16 %v1180, %v1176
  %v1517 = vpack.c.b16 %v1181, %v1177
  %v1518 = vpack.c.b16 %v1182, %v1178
  %v1519 = vpack.c.b16 %v1183, %v1179
  %v1520 = vpack.c.b16 %v1188, %v1184
  %v1521 = vpack.c.b16 %v1189, %v1185
  %v1522 = vpack.c.b16 %v1190, %v1186
  %v1523 = vpack.c.b16 %v1191, %v1187
  %v1524 = vpack.c.b16 %v1196, %v1192
  %v1525 = vpack.c.b16 %v1197, %v1193
  %v1526 = vpack.c.b16 %v1198, %v1194
  %v1527 = vpack.c.b16 %v1199, %v1195
  %v1528 = vpack.c.b16 %v1204, %v1200
  %v1529 = vpack.c.b16 %v1205, %v1201
  %v1530 = vpack.c.b16 %v1206, %v1202
  %v1531 = vpack.c.b16 %v1207, %v1203
  %v1532 = vpack.c.b16 %v1212, %v1208
  %v1533 = vpack.c.b16 %v1213, %v1209
  %v1534 = vpack.c.b16 %v1214, %v1210
  %v1535 = vpack.c.b16 %v1215, %v1211
  %v1536 = vpack.c.b16 %v1220, %v1216
  %v1537 = vpack.c.b16 %v1221, %v1217
  %v1538 = vpack.c.b16 %v1222, %v1218
  %v1539 = vpack.c.b16 %v1223, %v1219
  %v1540 = vpack.c.b16 %v1228, %v1224
  %v1541 = vpack.c.b16 %v1229, %v1225
  %v1542 = vpack.c.b16 %v1230, %v1226
  %v1543 = vpack.c.b16 %v1231, %v1227
  %v1544 = vpack.c.b16 %v1236, %v1232
  %v1545 = vpack.c.b16 %v1237, %v1233
  %v1546 = vpack.c.b16 %v1238, %v1234
  %v1547 = vpack.c.b16 %v1239, %v1235
  %v1548 = vpack.c.b16 %v1244, %v1240
  %v1549 = vpack.c.b16 %v1245, %v1241
  %v1550 = vpack.c.b16 %v1246, %v1242
  %v1551 = vpack.c.b16 %v1247, %v1243
  %v1552 = vpack.c.b16 %v1252, %v1248
  %v1553 = vpack.c.b16 %v1253, %v1249
  %v1554 = vpack.c.b16 %v1254, %v1250
  %v1555 = vpack.c.b16 %v1255, %v1251
  %v1556 = vpack.c.b16 %v1260, %v1256
  %v1557 = vpack.c.b16 %v1261, %v1257
  %v1558 = vpack.c.b16 %v1262, %v1258
  %v1559 = vpack.c.b16 %v1263, %v1259
  %v1560 = vpack.c.b16 %v1268, %v1264
  %v1561 = vpack.c.b16 %v1269, %v1265
  %v1562 = vpack.c.b16 %v1270, %v1266
  %v1563 = vpack.c.b16 %v1271, %v1267
  %v1564 = vpack.c.b16 %v1276, %v1272
  %v1565 = vpack.c.b16 %v1277, %v1273
  %v1566 = vpack.c.b16 %v1278, %v1274
  %v1567 = vpack.c.b16 %v1279, %v1275
  %v1568 = vpack.c.b16 %v1284, %v1280
  %v1569 = vpack.c.b16 %v1285, %v1281
  %v1570 = vpack.c.b16 %v1286, %v1282
  %v1571 = vpack.c.b16 %v1287, %v1283
  %v1572 = vpack.c.b16 %v1292, %v1288
  %v1573 = vpack.c.b16 %v1293, %v1289
  %v1574 = vpack.c.b16 %v1294, %v1290
  %v1575 = vpack.c.b16 %v1295, %v1291
  %v1576 = vpack.c.b16 %v1300, %v1296
  %v1577 = vpack.c.b16 %v1301, %v1297
  %v1578 = vpack.c.b16 %v1302, %v1298
  %v1579 = vpack.c.b16 %v1303, %v1299
  %v1580 = vpack.c.b16 %v1308, %v1304
  %v1581 = vpack.c.b16 %v1309, %v1305
  %v1582 = vpack.c.b16 %v1310, %v1306
  %v1583 = vpack.c.b16 %v1311, %v1307
  %v1584 = vpack.c.b16 %v1316, %v1312
  %v1585 = vpack.c.b16 %v1317, %v1313
  %v1586 = vpack.c.b16 %v1318, %v1314
  %v1587 = vpack.c.b16 %v1319, %v1315
  %v1588 = vpack.c.b16 %v1324, %v1320
  %v1589 = vpack.c.b16 %v1325, %v1321
  %v1590 = vpack.c.b16 %v1326, %v1322
  %v1591 = vpack.c.b16 %v1327, %v1323
  %v1592 = vpack.c.b16 %v1332, %v1328
  %v1593 = vpack.c.b16 %v1333, %v1329
  %v1594 = vpack.c.b16 %v1334, %v1330
  %v1595 = vpack.c.b16 %v1335, %v1331
  %v1596 = vpack.c.b16 %v1340, %v1336
  %v1597 = vpack.c.b16 %v1341, %v1337
  %v1598 = vpack.c.b16 %v1342, %v1338
  %v1599 = vpack.c.b16 %v1343, %v1339
  %1856 = vmatprep.subr.bf16.mxu0 %v1345
  %1857 = vmatpush1.bf16.msra.mxu0 %v1344
  %1858 = vmatprep.subr.bf16.mxu0 %v1349
  %1859 = vmatpush1.bf16.msra.mxu0 %v1348
  %1860 = vmatprep.subr.bf16.mxu0 %v1353
  %1861 = vmatpush1.bf16.msra.mxu0 %v1352
  %1862 = vmatprep.subr.bf16.mxu0 %v1357
  %1863 = vmatpush1.bf16.msra.mxu0 %v1356
  %1864 = vmatprep.subr.bf16.mxu0 %v1361
  %1865 = vmatpush1.bf16.msra.mxu0 %v1360
  %1866 = vmatprep.subr.bf16.mxu0 %v1365
  %1867 = vmatpush1.bf16.msra.mxu0 %v1364
  %1868 = vmatprep.subr.bf16.mxu0 %v1369
  %1869 = vmatpush1.bf16.msra.mxu0 %v1368
  %1870 = vmatprep.subr.bf16.mxu0 %v1373
  %1871 = vmatpush1.bf16.msra.mxu0 %v1372
  %1872 = vmatprep.subr.bf16.mxu0 %v1377
  %1873 = vmatpush1.bf16.msra.mxu0 %v1376
  %1874 = vmatprep.subr.bf16.mxu0 %v1381
  %1875 = vmatpush1.bf16.msra.mxu0 %v1380
  %1876 = vmatprep.subr.bf16.mxu0 %v1385
  %1877 = vmatpush1.bf16.msra.mxu0 %v1384
  %1878 = vmatprep.subr.bf16.mxu0 %v1389
  %1879 = vmatpush1.bf16.msra.mxu0 %v1388
  %1880 = vmatprep.subr.bf16.mxu0 %v1393
  %1881 = vmatpush1.bf16.msra.mxu0 %v1392
  %1882 = vmatprep.subr.bf16.mxu0 %v1397
  %1883 = vmatpush1.bf16.msra.mxu0 %v1396
  %1884 = vmatprep.subr.bf16.mxu0 %v1401
  %1885 = vmatpush1.bf16.msra.mxu0 %v1400
  %1886 = vmatprep.subr.bf16.mxu0 %v1405
  %1887 = vmatpush1.bf16.msra.mxu0 %v1404
  %1888 = vmatprep.mubr.bf16.mxu0 %v547
  %1889 = vmatmul.mubr.bf16.gmra.mrb[0].mxu0 %v546
  %v1890 = vpop.f32.mrb[0].mxu0
  %v1891 = vadd.f32 %v559, %v1890
  %v1892 = vpop.f32.mrb[0].mxu0
  %v1893 = vadd.f32 %v563, %v1892
  %v1894 = vpop.f32.mrb[0].mxu0
  %v1895 = vpop.f32.mrb[0].mxu0
  %1896 = vdwg.mxu0
  %1897 = vmatprep.subr.bf16.mxu0 %v1409
  %1898 = vmatpush1.bf16.msra.mxu0 %v1408
  %1899 = vmatprep.subr.bf16.mxu0 %v1413
  %1900 = vmatpush1.bf16.msra.mxu0 %v1412
  %1901 = vmatprep.subr.bf16.mxu0 %v1417
  %1902 = vmatpush1.bf16.msra.mxu0 %v1416
  %1903 = vmatprep.subr.bf16.mxu0 %v1421
  %1904 = vmatpush1.bf16.msra.mxu0 %v1420
  %1905 = vmatprep.subr.bf16.mxu0 %v1425
  %1906 = vmatpush1.bf16.msra.mxu0 %v1424
  %1907 = vmatprep.subr.bf16.mxu0 %v1429
  %1908 = vmatpush1.bf16.msra.mxu0 %v1428
  %1909 = vmatprep.subr.bf16.mxu0 %v1433
  %1910 = vmatpush1.bf16.msra.mxu0 %v1432
  %1911 = vmatprep.subr.bf16.mxu0 %v1437
  %1912 = vmatpush1.bf16.msra.mxu0 %v1436
  %1913 = vmatprep.subr.bf16.mxu0 %v1441
  %1914 = vmatpush1.bf16.msra.mxu0 %v1440
  %1915 = vmatprep.subr.bf16.mxu0 %v1445
  %1916 = vmatpush1.bf16.msra.mxu0 %v1444
  %1917 = vmatprep.subr.bf16.mxu0 %v1449
  %1918 = vmatpush1.bf16.msra.mxu0 %v1448
  %1919 = vmatprep.subr.bf16.mxu0 %v1453
  %1920 = vmatpush1.bf16.msra.mxu0 %v1452
  %1921 = vmatprep.subr.bf16.mxu0 %v1457
  %1922 = vmatpush1.bf16.msra.mxu0 %v1456
  %1923 = vmatprep.subr.bf16.mxu0 %v1461
  %1924 = vmatpush1.bf16.msra.mxu0 %v1460
  %1925 = vmatprep.subr.bf16.mxu0 %v1465
  %1926 = vmatpush1.bf16.msra.mxu0 %v1464
  %1927 = vmatprep.subr.bf16.mxu0 %v1469
  %1928 = vmatpush1.bf16.msra.mxu0 %v1468
  %1929 = vmatprep.mubr.bf16.mxu0 %v549
  %1930 = vmatmul.mubr.bf16.gmra.mrb[0].mxu0 %v548
  %v1931 = vpop.f32.mrb[0].mxu0
  %v1932 = vadd.f32 %v1891, %v1931
  %v1933 = vpop.f32.mrb[0].mxu0
  %v1934 = vadd.f32 %v1893, %v1933
  %v1935 = vpop.f32.mrb[0].mxu0
  %v1936 = vpop.f32.mrb[0].mxu0
  %1937 = vdwg.mxu0
  %1938 = vmatprep.subr.bf16.mxu0 %v1473
  %1939 = vmatpush1.bf16.msra.mxu0 %v1472
  %1940 = vmatprep.subr.bf16.mxu0 %v1477
  %1941 = vmatpush1.bf16.msra.mxu0 %v1476
  %1942 = vmatprep.subr.bf16.mxu0 %v1481
  %1943 = vmatpush1.bf16.msra.mxu0 %v1480
  %1944 = vmatprep.subr.bf16.mxu0 %v1485
  %1945 = vmatpush1.bf16.msra.mxu0 %v1484
  %1946 = vmatprep.subr.bf16.mxu0 %v1489
  %1947 = vmatpush1.bf16.msra.mxu0 %v1488
  %1948 = vmatprep.subr.bf16.mxu0 %v1493
  %1949 = vmatpush1.bf16.msra.mxu0 %v1492
  %1950 = vmatprep.subr.bf16.mxu0 %v1497
  %1951 = vmatpush1.bf16.msra.mxu0 %v1496
  %1952 = vmatprep.subr.bf16.mxu0 %v1501
  %1953 = vmatpush1.bf16.msra.mxu0 %v1500
  %1954 = vmatprep.subr.bf16.mxu0 %v1505
  %1955 = vmatpush1.bf16.msra.mxu0 %v1504
  %1956 = vmatprep.subr.bf16.mxu0 %v1509
  %1957 = vmatpush1.bf16.msra.mxu0 %v1508
  %1958 = vmatprep.subr.bf16.mxu0 %v1513
  %1959 = vmatpush1.bf16.msra.mxu0 %v1512
  %1960 = vmatprep.subr.bf16.mxu0 %v1517
  %1961 = vmatpush1.bf16.msra.mxu0 %v1516
  %1962 = vmatprep.subr.bf16.mxu0 %v1521
  %1963 = vmatpush1.bf16.msra.mxu0 %v1520
  %1964 = vmatprep.subr.bf16.mxu0 %v1525
  %1965 = vmatpush1.bf16.msra.mxu0 %v1524
  %1966 = vmatprep.subr.bf16.mxu0 %v1529
  %1967 = vmatpush1.bf16.msra.mxu0 %v1528
  %1968 = vmatprep.subr.bf16.mxu0 %v1533
  %1969 = vmatpush1.bf16.msra.mxu0 %v1532
  %1970 = vmatprep.mubr.bf16.mxu0 %v551
  %1971 = vmatmul.mubr.bf16.gmra.mrb[0].mxu0 %v550
  %v1972 = vpop.f32.mrb[0].mxu0
  %v1973 = vadd.f32 %v1932, %v1972
  %v1974 = vpop.f32.mrb[0].mxu0
  %v1975 = vadd.f32 %v1934, %v1974
  %v1976 = vpop.f32.mrb[0].mxu0
  %v1977 = vpop.f32.mrb[0].mxu0
  %1978 = vdwg.mxu0
  %1979 = vmatprep.subr.bf16.mxu0 %v1537
  %1980 = vmatpush1.bf16.msra.mxu0 %v1536
  %1981 = vmatprep.subr.bf16.mxu0 %v1541
  %1982 = vmatpush1.bf16.msra.mxu0 %v1540
  %1983 = vmatprep.subr.bf16.mxu0 %v1545
  %1984 = vmatpush1.bf16.msra.mxu0 %v1544
  %1985 = vmatprep.subr.bf16.mxu0 %v1549
  %1986 = vmatpush1.bf16.msra.mxu0 %v1548
  %1987 = vmatprep.subr.bf16.mxu0 %v1553
  %1988 = vmatpush1.bf16.msra.mxu0 %v1552
  %1989 = vmatprep.subr.bf16.mxu0 %v1557
  %1990 = vmatpush1.bf16.msra.mxu0 %v1556
  %1991 = vmatprep.subr.bf16.mxu0 %v1561
  %1992 = vmatpush1.bf16.msra.mxu0 %v1560
  %1993 = vmatprep.subr.bf16.mxu0 %v1565
  %1994 = vmatpush1.bf16.msra.mxu0 %v1564
  %1995 = vmatprep.subr.bf16.mxu0 %v1569
  %1996 = vmatpush1.bf16.msra.mxu0 %v1568
  %1997 = vmatprep.subr.bf16.mxu0 %v1573
  %1998 = vmatpush1.bf16.msra.mxu0 %v1572
  %1999 = vmatprep.subr.bf16.mxu0 %v1577
  %2000 = vmatpush1.bf16.msra.mxu0 %v1576
  %2001 = vmatprep.subr.bf16.mxu0 %v1581
  %2002 = vmatpush1.bf16.msra.mxu0 %v1580
  %2003 = vmatprep.subr.bf16.mxu0 %v1585
  %2004 = vmatpush1.bf16.msra.mxu0 %v1584
  %2005 = vmatprep.subr.bf16.mxu0 %v1589
  %2006 = vmatpush1.bf16.msra.mxu0 %v1588
  %2007 = vmatprep.subr.bf16.mxu0 %v1593
  %2008 = vmatpush1.bf16.msra.mxu0 %v1592
  %2009 = vmatprep.subr.bf16.mxu0 %v1597
  %2010 = vmatpush1.bf16.msra.mxu0 %v1596
  %2011 = vmatprep.mubr.bf16.mxu0 %v553
  %2012 = vmatmul.mubr.bf16.gmra.mrb[0].mxu0 %v552
  %v2013 = vpop.f32.mrb[0].mxu0
  %v2014 = vadd.f32 %v1973, %v2013
  %v2015 = vpop.f32.mrb[0].mxu0
  %v2016 = vadd.f32 %v1975, %v2015
  %v2017 = vpop.f32.mrb[0].mxu0
  %v2018 = vpop.f32.mrb[0].mxu0
  %2019 = vdwg.mxu0
  %2020 = vmatprep.subr.bf16.mxu0 %v1347
  %2021 = vmatpush1.bf16.msra.mxu0 %v1346
  %2022 = vmatprep.subr.bf16.mxu0 %v1351
  %2023 = vmatpush1.bf16.msra.mxu0 %v1350
  %2024 = vmatprep.subr.bf16.mxu0 %v1355
  %2025 = vmatpush1.bf16.msra.mxu0 %v1354
  %2026 = vmatprep.subr.bf16.mxu0 %v1359
  %2027 = vmatpush1.bf16.msra.mxu0 %v1358
  %2028 = vmatprep.subr.bf16.mxu0 %v1363
  %2029 = vmatpush1.bf16.msra.mxu0 %v1362
  %2030 = vmatprep.subr.bf16.mxu0 %v1367
  %2031 = vmatpush1.bf16.msra.mxu0 %v1366
  %2032 = vmatprep.subr.bf16.mxu0 %v1371
  %2033 = vmatpush1.bf16.msra.mxu0 %v1370
  %2034 = vmatprep.subr.bf16.mxu0 %v1375
  %2035 = vmatpush1.bf16.msra.mxu0 %v1374
  %2036 = vmatprep.subr.bf16.mxu0 %v1379
  %2037 = vmatpush1.bf16.msra.mxu0 %v1378
  %2038 = vmatprep.subr.bf16.mxu0 %v1383
  %2039 = vmatpush1.bf16.msra.mxu0 %v1382
  %2040 = vmatprep.subr.bf16.mxu0 %v1387
  %2041 = vmatpush1.bf16.msra.mxu0 %v1386
  %2042 = vmatprep.subr.bf16.mxu0 %v1391
  %2043 = vmatpush1.bf16.msra.mxu0 %v1390
  %2044 = vmatprep.subr.bf16.mxu0 %v1395
  %2045 = vmatpush1.bf16.msra.mxu0 %v1394
  %2046 = vmatprep.subr.bf16.mxu0 %v1399
  %2047 = vmatpush1.bf16.msra.mxu0 %v1398
  %2048 = vmatprep.subr.bf16.mxu0 %v1403
  %2049 = vmatpush1.bf16.msra.mxu0 %v1402
  %2050 = vmatprep.subr.bf16.mxu0 %v1407
  %2051 = vmatpush1.bf16.msra.mxu0 %v1406
  %2052 = vmatprep.mubr.bf16.mxu0 %v547
  %2053 = vmatmul.mubr.bf16.gmra.mrb[0].mxu0 %v546
  %v2054 = vpop.f32.mrb[0].mxu0
  %v2055 = vadd.f32 %v567, %v2054
  %v2056 = vpop.f32.mrb[0].mxu0
  %v2057 = vadd.f32 %v571, %v2056
  %v2058 = vpop.f32.mrb[0].mxu0
  %v2059 = vpop.f32.mrb[0].mxu0
  %2060 = vdwg.mxu0
  %2061 = vmatprep.subr.bf16.mxu0 %v1411
  %2062 = vmatpush1.bf16.msra.mxu0 %v1410
  %2063 = vmatprep.subr.bf16.mxu0 %v1415
  %2064 = vmatpush1.bf16.msra.mxu0 %v1414
  %2065 = vmatprep.subr.bf16.mxu0 %v1419
  %2066 = vmatpush1.bf16.msra.mxu0 %v1418
  %2067 = vmatprep.subr.bf16.mxu0 %v1423
  %2068 = vmatpush1.bf16.msra.mxu0 %v1422
  %2069 = vmatprep.subr.bf16.mxu0 %v1427
  %2070 = vmatpush1.bf16.msra.mxu0 %v1426
  %2071 = vmatprep.subr.bf16.mxu0 %v1431
  %2072 = vmatpush1.bf16.msra.mxu0 %v1430
  %2073 = vmatprep.subr.bf16.mxu0 %v1435
  %2074 = vmatpush1.bf16.msra.mxu0 %v1434
  %2075 = vmatprep.subr.bf16.mxu0 %v1439
  %2076 = vmatpush1.bf16.msra.mxu0 %v1438
  %2077 = vmatprep.subr.bf16.mxu0 %v1443
  %2078 = vmatpush1.bf16.msra.mxu0 %v1442
  %2079 = vmatprep.subr.bf16.mxu0 %v1447
  %2080 = vmatpush1.bf16.msra.mxu0 %v1446
  %2081 = vmatprep.subr.bf16.mxu0 %v1451
  %2082 = vmatpush1.bf16.msra.mxu0 %v1450
  %2083 = vmatprep.subr.bf16.mxu0 %v1455
  %2084 = vmatpush1.bf16.msra.mxu0 %v1454
  %2085 = vmatprep.subr.bf16.mxu0 %v1459
  %2086 = vmatpush1.bf16.msra.mxu0 %v1458
  %2087 = vmatprep.subr.bf16.mxu0 %v1463
  %2088 = vmatpush1.bf16.msra.mxu0 %v1462
  %2089 = vmatprep.subr.bf16.mxu0 %v1467
  %2090 = vmatpush1.bf16.msra.mxu0 %v1466
  %2091 = vmatprep.subr.bf16.mxu0 %v1471
  %2092 = vmatpush1.bf16.msra.mxu0 %v1470
  %2093 = vmatprep.mubr.bf16.mxu0 %v549
  %2094 = vmatmul.mubr.bf16.gmra.mrb[0].mxu0 %v548
  %v2095 = vpop.f32.mrb[0].mxu0
  %v2096 = vadd.f32 %v2055, %v2095
  %v2097 = vpop.f32.mrb[0].mxu0
  %v2098 = vadd.f32 %v2057, %v2097
  %v2099 = vpop.f32.mrb[0].mxu0
  %v2100 = vpop.f32.mrb[0].mxu0
  %2101 = vdwg.mxu0
  %2102 = vmatprep.subr.bf16.mxu0 %v1475
  %2103 = vmatpush1.bf16.msra.mxu0 %v1474
  %2104 = vmatprep.subr.bf16.mxu0 %v1479
  %2105 = vmatpush1.bf16.msra.mxu0 %v1478
  %2106 = vmatprep.subr.bf16.mxu0 %v1483
  %2107 = vmatpush1.bf16.msra.mxu0 %v1482
  %2108 = vmatprep.subr.bf16.mxu0 %v1487
  %2109 = vmatpush1.bf16.msra.mxu0 %v1486
  %2110 = vmatprep.subr.bf16.mxu0 %v1491
  %2111 = vmatpush1.bf16.msra.mxu0 %v1490
  %2112 = vmatprep.subr.bf16.mxu0 %v1495
  %2113 = vmatpush1.bf16.msra.mxu0 %v1494
  %2114 = vmatprep.subr.bf16.mxu0 %v1499
  %2115 = vmatpush1.bf16.msra.mxu0 %v1498
  %2116 = vmatprep.subr.bf16.mxu0 %v1503
  %2117 = vmatpush1.bf16.msra.mxu0 %v1502
  %2118 = vmatprep.subr.bf16.mxu0 %v1507
  %2119 = vmatpush1.bf16.msra.mxu0 %v1506
  %2120 = vmatprep.subr.bf16.mxu0 %v1511
  %2121 = vmatpush1.bf16.msra.mxu0 %v1510
  %2122 = vmatprep.subr.bf16.mxu0 %v1515
  %2123 = vmatpush1.bf16.msra.mxu0 %v1514
  %2124 = vmatprep.subr.bf16.mxu0 %v1519
  %2125 = vmatpush1.bf16.msra.mxu0 %v1518
  %2126 = vmatprep.subr.bf16.mxu0 %v1523
  %2127 = vmatpush1.bf16.msra.mxu0 %v1522
  %2128 = vmatprep.subr.bf16.mxu0 %v1527
  %2129 = vmatpush1.bf16.msra.mxu0 %v1526
  %2130 = vmatprep.subr.bf16.mxu0 %v1531
  %2131 = vmatpush1.bf16.msra.mxu0 %v1530
  %2132 = vmatprep.subr.bf16.mxu0 %v1535
  %2133 = vmatpush1.bf16.msra.mxu0 %v1534
  %2134 = vmatprep.mubr.bf16.mxu0 %v551
  %2135 = vmatmul.mubr.bf16.gmra.mrb[0].mxu0 %v550
  %v2136 = vpop.f32.mrb[0].mxu0
  %v2137 = vadd.f32 %v2096, %v2136
  %v2138 = vpop.f32.mrb[0].mxu0
  %v2139 = vadd.f32 %v2098, %v2138
  %v2140 = vpop.f32.mrb[0].mxu0
  %v2141 = vpop.f32.mrb[0].mxu0
  %2142 = vdwg.mxu0
  %2143 = vmatprep.subr.bf16.mxu0 %v1539
  %2144 = vmatpush1.bf16.msra.mxu0 %v1538
  %2145 = vmatprep.subr.bf16.mxu0 %v1543
  %2146 = vmatpush1.bf16.msra.mxu0 %v1542
  %2147 = vmatprep.subr.bf16.mxu0 %v1547
  %2148 = vmatpush1.bf16.msra.mxu0 %v1546
  %2149 = vmatprep.subr.bf16.mxu0 %v1551
  %2150 = vmatpush1.bf16.msra.mxu0 %v1550
  %2151 = vmatprep.subr.bf16.mxu0 %v1555
  %2152 = vmatpush1.bf16.msra.mxu0 %v1554
  %2153 = vmatprep.subr.bf16.mxu0 %v1559
  %2154 = vmatpush1.bf16.msra.mxu0 %v1558
  %2155 = vmatprep.subr.bf16.mxu0 %v1563
  %2156 = vmatpush1.bf16.msra.mxu0 %v1562
  %2157 = vmatprep.subr.bf16.mxu0 %v1567
  %2158 = vmatpush1.bf16.msra.mxu0 %v1566
  %2159 = vmatprep.subr.bf16.mxu0 %v1571
  %2160 = vmatpush1.bf16.msra.mxu0 %v1570
  %2161 = vmatprep.subr.bf16.mxu0 %v1575
  %2162 = vmatpush1.bf16.msra.mxu0 %v1574
  %2163 = vmatprep.subr.bf16.mxu0 %v1579
  %2164 = vmatpush1.bf16.msra.mxu0 %v1578
  %2165 = vmatprep.subr.bf16.mxu0 %v1583
  %2166 = vmatpush1.bf16.msra.mxu0 %v1582
  %2167 = vmatprep.subr.bf16.mxu0 %v1587
  %2168 = vmatpush1.bf16.msra.mxu0 %v1586
  %2169 = vmatprep.subr.bf16.mxu0 %v1591
  %2170 = vmatpush1.bf16.msra.mxu0 %v1590
  %2171 = vmatprep.subr.bf16.mxu0 %v1595
  %2172 = vmatpush1.bf16.msra.mxu0 %v1594
  %2173 = vmatprep.subr.bf16.mxu0 %v1599
  %2174 = vmatpush1.bf16.msra.mxu0 %v1598
  %2175 = vmatprep.mubr.bf16.mxu0 %v553
  %2176 = vmatmul.mubr.bf16.gmra.mrb[0].mxu0 %v552
  %v2177 = vpop.f32.mrb[0].mxu0
  %v2178 = vadd.f32 %v2137, %v2177
  %v2179 = vpop.f32.mrb[0].mxu0
  %v2180 = vadd.f32 %v2139, %v2179
  %v2181 = vpop.f32.mrb[0].mxu0
  %v2182 = vpop.f32.mrb[0].mxu0
  %2183 = vdwg.mxu0
  %v2184 = vmax.f32 %v2014, 0.0
  %v2185 = vmax.f32 %v2016, 0.0
  %v2186 = vmax.f32 %v2178, 0.0
  %v2187 = vmax.f32 %v2180, 0.0
  %vm2188 = vcmask 1041408
  %v2189 = vsel %vm2188, %v2184, 0.0
  %v2190 = vrot.slane %v2189, 4
  %v2191 = vadd.f32 %v2189, %v2190
  %v2192 = vrot.slane %v2191, 2
  %v2193 = vadd.f32 %v2191, %v2192
  %v2194 = vrot.slane %v2193, 1
  %v2195 = vadd.f32 %v2193, %v2194
  %v2196 = vsel %vm2188, %v2185, 0.0
  %v2197 = vrot.slane %v2196, 4
  %v2198 = vadd.f32 %v2196, %v2197
  %v2199 = vrot.slane %v2198, 2
  %v2200 = vadd.f32 %v2198, %v2199
  %v2201 = vrot.slane %v2200, 1
  %v2202 = vadd.f32 %v2200, %v2201
  %v2203 = vsel %vm2188, %v2186, 0.0
  %v2204 = vrot.slane %v2203, 4
  %v2205 = vadd.f32 %v2203, %v2204
  %v2206 = vrot.slane %v2205, 2
  %v2207 = vadd.f32 %v2205, %v2206
  %v2208 = vrot.slane %v2207, 1
  %v2209 = vadd.f32 %v2207, %v2208
  %v2210 = vsel %vm2188, %v2187, 0.0
  %v2211 = vrot.slane %v2210, 4
  %v2212 = vadd.f32 %v2210, %v2211
  %v2213 = vrot.slane %v2212, 2
  %v2214 = vadd.f32 %v2212, %v2213
  %v2215 = vrot.slane %v2214, 1
  %v2216 = vadd.f32 %v2214, %v2215
  %v2217 = vrcp.pop 2.0
  %v2218 = vmul.f32 %v2195, %v2217
  %v2219 = vmul.f32 %v2202, %v2217
  %v2220 = vmul.f32 %v2209, %v2217
  %v2221 = vmul.f32 %v2216, %v2217
  %v2222 = vmul.f32 %v2184, %v2184
  %v2223 = vmul.f32 %v2185, %v2185
  %v2224 = vmul.f32 %v2186, %v2186
  %v2225 = vmul.f32 %v2187, %v2187
  %v2226 = vsel %vm2188, %v2222, 0.0
  %v2227 = vrot.slane %v2226, 4
  %v2228 = vadd.f32 %v2226, %v2227
  %v2229 = vrot.slane %v2228, 2
  %v2230 = vadd.f32 %v2228, %v2229
  %v2231 = vrot.slane %v2230, 1
  %v2232 = vadd.f32 %v2230, %v2231
  %v2233 = vsel %vm2188, %v2223, 0.0
  %v2234 = vrot.slane %v2233, 4
  %v2235 = vadd.f32 %v2233, %v2234
  %v2236 = vrot.slane %v2235, 2
  %v2237 = vadd.f32 %v2235, %v2236
  %v2238 = vrot.slane %v2237, 1
  %v2239 = vadd.f32 %v2237, %v2238
  %v2240 = vsel %vm2188, %v2224, 0.0
  %v2241 = vrot.slane %v2240, 4
  %v2242 = vadd.f32 %v2240, %v2241
  %v2243 = vrot.slane %v2242, 2
  %v2244 = vadd.f32 %v2242, %v2243
  %v2245 = vrot.slane %v2244, 1
  %v2246 = vadd.f32 %v2244, %v2245
  %v2247 = vsel %vm2188, %v2225, 0.0
  %v2248 = vrot.slane %v2247, 4
  %v2249 = vadd.f32 %v2247, %v2248
  %v2250 = vrot.slane %v2249, 2
  %v2251 = vadd.f32 %v2249, %v2250
  %v2252 = vrot.slane %v2251, 1
  %v2253 = vadd.f32 %v2251, %v2252
  %v2254 = vmul.f32 %v2232, %v2217
  %v2255 = vmul.f32 %v2239, %v2217
  %v2256 = vmul.f32 %v2246, %v2217
  %v2257 = vmul.f32 %v2253, %v2217
  %v2258 = vmul.f32 %v2218, %v2218
  %v2259 = vmul.f32 %v2219, %v2219
  %v2260 = vmul.f32 %v2220, %v2220
  %v2261 = vmul.f32 %v2221, %v2221
  %v2262 = vsub.f32 %v2254, %v2258
  %v2263 = vsub.f32 %v2255, %v2259
  %v2264 = vsub.f32 %v2256, %v2260
  %v2265 = vsub.f32 %v2257, %v2261
  %v2266 = vsub.f32 %v2184, %v2218
  %v2267 = vsub.f32 %v2185, %v2219
  %v2268 = vsub.f32 %v2186, %v2220
  %v2269 = vsub.f32 %v2187, %v2221
  %v2270 = vadd.f32 %v2262, 1e-05
  %v2271 = vadd.f32 %v2263, 1e-05
  %v2272 = vadd.f32 %v2264, 1e-05
  %v2273 = vadd.f32 %v2265, 1e-05
  %v2274 = vrsqrt.pop %v2270
  %v2275 = vrsqrt.pop %v2271
  %v2276 = vrsqrt.pop %v2272
  %v2277 = vrsqrt.pop %v2273
  %v2278 = vmul.f32 %v2266, %v2274
  %v2279 = vmul.f32 %v2267, %v2275
  %v2280 = vmul.f32 %v2268, %v2276
  %v2281 = vmul.f32 %v2269, %v2277
  %v2282 = vld [vmem:[%s6] sm:$0xf]
  %v2284 = vlaneseq
  %v2285 = vshrl.u32 %v2284, 7
  %v2286 = vsub.s32 0, %v2285
  %v2287 = vrot.slane %v2282, %v2286
  %v2288 = vlaneseq
  %v2289 = vshrl.u32 %v2288, 7
  %v2290 = vsub.s32 1, %v2289
  %v2291 = vrot.slane %v2282, %v2290
  %v2292 = vlaneseq
  %v2293 = vshrl.u32 %v2292, 7
  %v2294 = vsub.s32 2, %v2293
  %v2295 = vrot.slane %v2282, %v2294
  %v2296 = vlaneseq
  %v2297 = vshrl.u32 %v2296, 7
  %v2298 = vsub.s32 3, %v2297
  %v2299 = vrot.slane %v2282, %v2298
  %v2304 = vmul.f32 %v2278, %v2287
  %v2305 = vmul.f32 %v2279, %v2291
  %v2306 = vmul.f32 %v2280, %v2295
  %v2307 = vmul.f32 %v2281, %v2299
  %v2308 = vld [vmem:[%s7] sm:$0xf]
  %v2310 = vlaneseq
  %v2311 = vshrl.u32 %v2310, 7
  %v2312 = vsub.s32 0, %v2311
  %v2313 = vrot.slane %v2308, %v2312
  %v2314 = vlaneseq
  %v2315 = vshrl.u32 %v2314, 7
  %v2316 = vsub.s32 1, %v2315
  %v2317 = vrot.slane %v2308, %v2316
  %v2318 = vlaneseq
  %v2319 = vshrl.u32 %v2318, 7
  %v2320 = vsub.s32 2, %v2319
  %v2321 = vrot.slane %v2308, %v2320
  %v2322 = vlaneseq
  %v2323 = vshrl.u32 %v2322, 7
  %v2324 = vsub.s32 3, %v2323
  %v2325 = vrot.slane %v2308, %v2324
  %v2330 = vadd.f32 %v2304, %v2313
  %v2331 = vadd.f32 %v2305, %v2317
  %v2332 = vadd.f32 %v2306, %v2321
  %v2333 = vadd.f32 %v2307, %v2325
  %v2334 = vld [vmem:[%s8] sm:$0xff]
  %v2335 = vld [vmem:[%s8 + $0x8] sm:$0xff]
  %v2336 = vld [vmem:[%s8 + $0x10] sm:$0xff]
  %v2337 = vld [vmem:[%s8 + $0x18] sm:$0xff]
  %v2338 = vld [vmem:[%s8 + $0x20] sm:$0xff]
  %v2339 = vld [vmem:[%s8 + $0x28] sm:$0xff]
  %v2340 = vld [vmem:[%s8 + $0x30] sm:$0xff]
  %v2341 = vld [vmem:[%s8 + $0x38] sm:$0xff]
  %v2342 = vld [vmem:[%s8 + $0x40] sm:$0xff]
  %v2343 = vld [vmem:[%s8 + $0x48] sm:$0xff]
  %v2344 = vld [vmem:[%s8 + $0x50] sm:$0xff]
  %v2345 = vld [vmem:[%s8 + $0x58] sm:$0xff]
  %v2346 = vld [vmem:[%s8 + $0x60] sm:$0xff]
  %v2347 = vld [vmem:[%s8 + $0x68] sm:$0xff]
  %v2348 = vld [vmem:[%s8 + $0x70] sm:$0xff]
  %v2349 = vld [vmem:[%s8 + $0x78] sm:$0xff]
  %v2350 = vld [vmem:[%s8 + $0x80] sm:$0xff]
  %v2351 = vld [vmem:[%s8 + $0x88] sm:$0xff]
  %v2352 = vld [vmem:[%s8 + $0x90] sm:$0xff]
  %v2353 = vld [vmem:[%s8 + $0x98] sm:$0xff]
  %v2354 = vld [vmem:[%s8 + $0xa0] sm:$0xff]
  %v2355 = vld [vmem:[%s8 + $0xa8] sm:$0xff]
  %v2356 = vld [vmem:[%s8 + $0xb0] sm:$0xff]
  %v2357 = vld [vmem:[%s8 + $0xb8] sm:$0xff]
  %v2358 = vld [vmem:[%s8 + $0xc0] sm:$0xff]
  %v2359 = vld [vmem:[%s8 + $0xc8] sm:$0xff]
  %v2360 = vld [vmem:[%s8 + $0xd0] sm:$0xff]
  %v2361 = vld [vmem:[%s8 + $0xd8] sm:$0xff]
  %v2362 = vld [vmem:[%s8 + $0xe0] sm:$0xff]
  %v2363 = vld [vmem:[%s8 + $0xe8] sm:$0xff]
  %v2364 = vld [vmem:[%s8 + $0xf0] sm:$0xff]
  %v2365 = vld [vmem:[%s8 + $0xf8] sm:$0xff]
  %v2366 = vld [vmem:[%s8 + $0x100] sm:$0xff]
  %v2367 = vld [vmem:[%s8 + $0x108] sm:$0xff]
  %v2368 = vld [vmem:[%s8 + $0x110] sm:$0xff]
  %v2369 = vld [vmem:[%s8 + $0x118] sm:$0xff]
  %v2370 = vld [vmem:[%s8 + $0x120] sm:$0xff]
  %v2371 = vld [vmem:[%s8 + $0x128] sm:$0xff]
  %v2372 = vld [vmem:[%s8 + $0x130] sm:$0xff]
  %v2373 = vld [vmem:[%s8 + $0x138] sm:$0xff]
  %v2374 = vld [vmem:[%s8 + $0x140] sm:$0xff]
  %v2375 = vld [vmem:[%s8 + $0x148] sm:$0xff]
  %v2376 = vld [vmem:[%s8 + $0x150] sm:$0xff]
  %v2377 = vld [vmem:[%s8 + $0x158] sm:$0xff]
  %v2378 = vld [vmem:[%s8 + $0x160] sm:$0xff]
  %v2379 = vld [vmem:[%s8 + $0x168] sm:$0xff]
  %v2380 = vld [vmem:[%s8 + $0x170] sm:$0xff]
  %v2381 = vld [vmem:[%s8 + $0x178] sm:$0xff]
  %v2382 = vld [vmem:[%s8 + $0x180] sm:$0xff]
  %v2383 = vld [vmem:[%s8 + $0x188] sm:$0xff]
  %v2384 = vld [vmem:[%s8 + $0x190] sm:$0xff]
  %v2385 = vld [vmem:[%s8 + $0x198] sm:$0xff]
  %v2386 = vld [vmem:[%s8 + $0x1a0] sm:$0xff]
  %v2387 = vld [vmem:[%s8 + $0x1a8] sm:$0xff]
  %v2388 = vld [vmem:[%s8 + $0x1b0] sm:$0xff]
  %v2389 = vld [vmem:[%s8 + $0x1b8] sm:$0xff]
  %v2390 = vld [vmem:[%s8 + $0x1c0] sm:$0xff]
  %v2391 = vld [vmem:[%s8 + $0x1c8] sm:$0xff]
  %v2392 = vld [vmem:[%s8 + $0x1d0] sm:$0xff]
  %v2393 = vld [vmem:[%s8 + $0x1d8] sm:$0xff]
  %v2394 = vld [vmem:[%s8 + $0x1e0] sm:$0xff]
  %v2395 = vld [vmem:[%s8 + $0x1e8] sm:$0xff]
  %v2396 = vld [vmem:[%s8 + $0x1f0] sm:$0xff]
  %v2397 = vld [vmem:[%s8 + $0x1f8] sm:$0xff]
  %v2398 = vpack.c.bf16 %v2330, %v2330
  %v2399 = vpack.c.bf16 %v2331, %v2331
  %v2400 = vpack.c.bf16 %v2332, %v2332
  %v2401 = vpack.c.bf16 %v2333, %v2333
  %v2402 = vld [vmem:[%s9] sm:$0x3]
  %v2404 = vlaneseq
  %v2405 = vshrl.u32 %v2404, 7
  %v2406 = vsub.s32 0, %v2405
  %v2407 = vrot.slane %v2402, %v2406
  %v2408 = vlaneseq
  %v2409 = vshrl.u32 %v2408, 7
  %v2410 = vsub.s32 1, %v2409
  %v2411 = vrot.slane %v2402, %v2410
  %v2478 = vunpack.c.l.b16 %v2334
  %v2479 = vunpack.c.h.b16 %v2334
  %v2480 = vunpack.c.l.b16 %v2335
  %v2481 = vunpack.c.h.b16 %v2335
  %v2482 = vunpack.c.l.b16 %v2336
  %v2483 = vunpack.c.h.b16 %v2336
  %v2484 = vunpack.c.l.b16 %v2337
  %v2485 = vunpack.c.h.b16 %v2337
  %v2486 = vunpack.c.l.b16 %v2338
  %v2487 = vunpack.c.h.b16 %v2338
  %v2488 = vunpack.c.l.b16 %v2339
  %v2489 = vunpack.c.h.b16 %v2339
  %v2490 = vunpack.c.l.b16 %v2340
  %v2491 = vunpack.c.h.b16 %v2340
  %v2492 = vunpack.c.l.b16 %v2341
  %v2493 = vunpack.c.h.b16 %v2341
  %v2494 = vunpack.c.l.b16 %v2342
  %v2495 = vunpack.c.h.b16 %v2342
  %v2496 = vunpack.c.l.b16 %v2343
  %v2497 = vunpack.c.h.b16 %v2343
  %v2498 = vunpack.c.l.b16 %v2344
  %v2499 = vunpack.c.h.b16 %v2344
  %v2500 = vunpack.c.l.b16 %v2345
  %v2501 = vunpack.c.h.b16 %v2345
  %v2502 = vunpack.c.l.b16 %v2346
  %v2503 = vunpack.c.h.b16 %v2346
  %v2504 = vunpack.c.l.b16 %v2347
  %v2505 = vunpack.c.h.b16 %v2347
  %v2506 = vunpack.c.l.b16 %v2348
  %v2507 = vunpack.c.h.b16 %v2348
  %v2508 = vunpack.c.l.b16 %v2349
  %v2509 = vunpack.c.h.b16 %v2349
  %v2510 = vunpack.c.l.b16 %v2350
  %v2511 = vunpack.c.h.b16 %v2350
  %v2512 = vunpack.c.l.b16 %v2351
  %v2513 = vunpack.c.h.b16 %v2351
  %v2514 = vunpack.c.l.b16 %v2352
  %v2515 = vunpack.c.h.b16 %v2352
  %v2516 = vunpack.c.l.b16 %v2353
  %v2517 = vunpack.c.h.b16 %v2353
  %v2518 = vunpack.c.l.b16 %v2354
  %v2519 = vunpack.c.h.b16 %v2354
  %v2520 = vunpack.c.l.b16 %v2355
  %v2521 = vunpack.c.h.b16 %v2355
  %v2522 = vunpack.c.l.b16 %v2356
  %v2523 = vunpack.c.h.b16 %v2356
  %v2524 = vunpack.c.l.b16 %v2357
  %v2525 = vunpack.c.h.b16 %v2357
  %v2526 = vunpack.c.l.b16 %v2358
  %v2527 = vunpack.c.h.b16 %v2358
  %v2528 = vunpack.c.l.b16 %v2359
  %v2529 = vunpack.c.h.b16 %v2359
  %v2530 = vunpack.c.l.b16 %v2360
  %v2531 = vunpack.c.h.b16 %v2360
  %v2532 = vunpack.c.l.b16 %v2361
  %v2533 = vunpack.c.h.b16 %v2361
  %v2534 = vunpack.c.l.b16 %v2362
  %v2535 = vunpack.c.h.b16 %v2362
  %v2536 = vunpack.c.l.b16 %v2363
  %v2537 = vunpack.c.h.b16 %v2363
  %v2538 = vunpack.c.l.b16 %v2364
  %v2539 = vunpack.c.h.b16 %v2364
  %v2540 = vunpack.c.l.b16 %v2365
  %v2541 = vunpack.c.h.b16 %v2365
  %v2542 = vunpack.c.l.b16 %v2366
  %v2543 = vunpack.c.h.b16 %v2366
  %v2544 = vunpack.c.l.b16 %v2367
  %v2545 = vunpack.c.h.b16 %v2367
  %v2546 = vunpack.c.l.b16 %v2368
  %v2547 = vunpack.c.h.b16 %v2368
  %v2548 = vunpack.c.l.b16 %v2369
  %v2549 = vunpack.c.h.b16 %v2369
  %v2550 = vunpack.c.l.b16 %v2370
  %v2551 = vunpack.c.h.b16 %v2370
  %v2552 = vunpack.c.l.b16 %v2371
  %v2553 = vunpack.c.h.b16 %v2371
  %v2554 = vunpack.c.l.b16 %v2372
  %v2555 = vunpack.c.h.b16 %v2372
  %v2556 = vunpack.c.l.b16 %v2373
  %v2557 = vunpack.c.h.b16 %v2373
  %v2558 = vunpack.c.l.b16 %v2374
  %v2559 = vunpack.c.h.b16 %v2374
  %v2560 = vunpack.c.l.b16 %v2375
  %v2561 = vunpack.c.h.b16 %v2375
  %v2562 = vunpack.c.l.b16 %v2376
  %v2563 = vunpack.c.h.b16 %v2376
  %v2564 = vunpack.c.l.b16 %v2377
  %v2565 = vunpack.c.h.b16 %v2377
  %v2566 = vunpack.c.l.b16 %v2378
  %v2567 = vunpack.c.h.b16 %v2378
  %v2568 = vunpack.c.l.b16 %v2379
  %v2569 = vunpack.c.h.b16 %v2379
  %v2570 = vunpack.c.l.b16 %v2380
  %v2571 = vunpack.c.h.b16 %v2380
  %v2572 = vunpack.c.l.b16 %v2381
  %v2573 = vunpack.c.h.b16 %v2381
  %v2574 = vunpack.c.l.b16 %v2382
  %v2575 = vunpack.c.h.b16 %v2382
  %v2576 = vunpack.c.l.b16 %v2383
  %v2577 = vunpack.c.h.b16 %v2383
  %v2578 = vunpack.c.l.b16 %v2384
  %v2579 = vunpack.c.h.b16 %v2384
  %v2580 = vunpack.c.l.b16 %v2385
  %v2581 = vunpack.c.h.b16 %v2385
  %v2582 = vunpack.c.l.b16 %v2386
  %v2583 = vunpack.c.h.b16 %v2386
  %v2584 = vunpack.c.l.b16 %v2387
  %v2585 = vunpack.c.h.b16 %v2387
  %v2586 = vunpack.c.l.b16 %v2388
  %v2587 = vunpack.c.h.b16 %v2388
  %v2588 = vunpack.c.l.b16 %v2389
  %v2589 = vunpack.c.h.b16 %v2389
  %v2590 = vunpack.c.l.b16 %v2390
  %v2591 = vunpack.c.h.b16 %v2390
  %v2592 = vunpack.c.l.b16 %v2391
  %v2593 = vunpack.c.h.b16 %v2391
  %v2594 = vunpack.c.l.b16 %v2392
  %v2595 = vunpack.c.h.b16 %v2392
  %v2596 = vunpack.c.l.b16 %v2393
  %v2597 = vunpack.c.h.b16 %v2393
  %v2598 = vunpack.c.l.b16 %v2394
  %v2599 = vunpack.c.h.b16 %v2394
  %v2600 = vunpack.c.l.b16 %v2395
  %v2601 = vunpack.c.h.b16 %v2395
  %v2602 = vunpack.c.l.b16 %v2396
  %v2603 = vunpack.c.h.b16 %v2396
  %v2604 = vunpack.c.l.b16 %v2397
  %v2605 = vunpack.c.h.b16 %v2397
  %v2606 = vpack.c.b16 %v2480, %v2478
  %v2607 = vpack.c.b16 %v2481, %v2479
  %v2608 = vpack.c.b16 %v2484, %v2482
  %v2609 = vpack.c.b16 %v2485, %v2483
  %v2610 = vpack.c.b16 %v2488, %v2486
  %v2611 = vpack.c.b16 %v2489, %v2487
  %v2612 = vpack.c.b16 %v2492, %v2490
  %v2613 = vpack.c.b16 %v2493, %v2491
  %v2614 = vpack.c.b16 %v2496, %v2494
  %v2615 = vpack.c.b16 %v2497, %v2495
  %v2616 = vpack.c.b16 %v2500, %v2498
  %v2617 = vpack.c.b16 %v2501, %v2499
  %v2618 = vpack.c.b16 %v2504, %v2502
  %v2619 = vpack.c.b16 %v2505, %v2503
  %v2620 = vpack.c.b16 %v2508, %v2506
  %v2621 = vpack.c.b16 %v2509, %v2507
  %v2622 = vpack.c.b16 %v2512, %v2510
  %v2623 = vpack.c.b16 %v2513, %v2511
  %v2624 = vpack.c.b16 %v2516, %v2514
  %v2625 = vpack.c.b16 %v2517, %v2515
  %v2626 = vpack.c.b16 %v2520, %v2518
  %v2627 = vpack.c.b16 %v2521, %v2519
  %v2628 = vpack.c.b16 %v2524, %v2522
  %v2629 = vpack.c.b16 %v2525, %v2523
  %v2630 = vpack.c.b16 %v2528, %v2526
  %v2631 = vpack.c.b16 %v2529, %v2527
  %v2632 = vpack.c.b16 %v2532, %v2530
  %v2633 = vpack.c.b16 %v2533, %v2531
  %v2634 = vpack.c.b16 %v2536, %v2534
  %v2635 = vpack.c.b16 %v2537, %v2535
  %v2636 = vpack.c.b16 %v2540, %v2538
  %v2637 = vpack.c.b16 %v2541, %v2539
  %v2638 = vpack.c.b16 %v2544, %v2542
  %v2639 = vpack.c.b16 %v2545, %v2543
  %v2640 = vpack.c.b16 %v2548, %v2546
  %v2641 = vpack.c.b16 %v2549, %v2547
  %v2642 = vpack.c.b16 %v2552, %v2550
  %v2643 = vpack.c.b16 %v2553, %v2551
  %v2644 = vpack.c.b16 %v2556, %v2554
  %v2645 = vpack.c.b16 %v2557, %v2555
  %v2646 = vpack.c.b16 %v2560, %v2558
  %v2647 = vpack.c.b16 %v2561, %v2559
  %v2648 = vpack.c.b16 %v2564, %v2562
  %v2649 = vpack.c.b16 %v2565, %v2563
  %v2650 = vpack.c.b16 %v2568, %v2566
  %v2651 = vpack.c.b16 %v2569, %v2567
  %v2652 = vpack.c.b16 %v2572, %v2570
  %v2653 = vpack.c.b16 %v2573, %v2571
  %v2654 = vpack.c.b16 %v2576, %v2574
  %v2655 = vpack.c.b16 %v2577, %v2575
  %v2656 = vpack.c.b16 %v2580, %v2578
  %v2657 = vpack.c.b16 %v2581, %v2579
  %v2658 = vpack.c.b16 %v2584, %v2582
  %v2659 = vpack.c.b16 %v2585, %v2583
  %v2660 = vpack.c.b16 %v2588, %v2586
  %v2661 = vpack.c.b16 %v2589, %v2587
  %v2662 = vpack.c.b16 %v2592, %v2590
  %v2663 = vpack.c.b16 %v2593, %v2591
  %v2664 = vpack.c.b16 %v2596, %v2594
  %v2665 = vpack.c.b16 %v2597, %v2595
  %v2666 = vpack.c.b16 %v2600, %v2598
  %v2667 = vpack.c.b16 %v2601, %v2599
  %v2668 = vpack.c.b16 %v2604, %v2602
  %v2669 = vpack.c.b16 %v2605, %v2603
  %2734 = vmatprep.subr.bf16.mxu0 %v2607
  %2735 = vmatpush1.bf16.msra.mxu0 %v2606
  %2736 = vmatprep.subr.bf16.mxu0 %v2609
  %2737 = vmatpush1.bf16.msra.mxu0 %v2608
  %2738 = vmatprep.subr.bf16.mxu0 %v2611
  %2739 = vmatpush1.bf16.msra.mxu0 %v2610
  %2740 = vmatprep.subr.bf16.mxu0 %v2613
  %2741 = vmatpush1.bf16.msra.mxu0 %v2612
  %2742 = vmatprep.subr.bf16.mxu0 %v2615
  %2743 = vmatpush1.bf16.msra.mxu0 %v2614
  %2744 = vmatprep.subr.bf16.mxu0 %v2617
  %2745 = vmatpush1.bf16.msra.mxu0 %v2616
  %2746 = vmatprep.subr.bf16.mxu0 %v2619
  %2747 = vmatpush1.bf16.msra.mxu0 %v2618
  %2748 = vmatprep.subr.bf16.mxu0 %v2621
  %2749 = vmatpush1.bf16.msra.mxu0 %v2620
  %2750 = vmatprep.subr.bf16.mxu0 %v2623
  %2751 = vmatpush1.bf16.msra.mxu0 %v2622
  %2752 = vmatprep.subr.bf16.mxu0 %v2625
  %2753 = vmatpush1.bf16.msra.mxu0 %v2624
  %2754 = vmatprep.subr.bf16.mxu0 %v2627
  %2755 = vmatpush1.bf16.msra.mxu0 %v2626
  %2756 = vmatprep.subr.bf16.mxu0 %v2629
  %2757 = vmatpush1.bf16.msra.mxu0 %v2628
  %2758 = vmatprep.subr.bf16.mxu0 %v2631
  %2759 = vmatpush1.bf16.msra.mxu0 %v2630
  %2760 = vmatprep.subr.bf16.mxu0 %v2633
  %2761 = vmatpush1.bf16.msra.mxu0 %v2632
  %2762 = vmatprep.subr.bf16.mxu0 %v2635
  %2763 = vmatpush1.bf16.msra.mxu0 %v2634
  %2764 = vmatprep.subr.bf16.mxu0 %v2637
  %2765 = vmatpush1.bf16.msra.mxu0 %v2636
  %2766 = vmatprep.mubr.bf16.mxu0 %v2399
  %2767 = vmatmul.mubr.bf16.gmra.mrb[0].mxu0 %v2398
  %v2768 = vpop.f32.mrb[0].mxu0
  %v2769 = vadd.f32 %v2407, %v2768
  %v2770 = vpop.f32.mrb[0].mxu0
  %v2771 = vadd.f32 %v2411, %v2770
  %v2772 = vpop.f32.mrb[0].mxu0
  %v2773 = vpop.f32.mrb[0].mxu0
  %2774 = vdwg.mxu0
  %2775 = vmatprep.subr.bf16.mxu0 %v2639
  %2776 = vmatpush1.bf16.msra.mxu0 %v2638
  %2777 = vmatprep.subr.bf16.mxu0 %v2641
  %2778 = vmatpush1.bf16.msra.mxu0 %v2640
  %2779 = vmatprep.subr.bf16.mxu0 %v2643
  %2780 = vmatpush1.bf16.msra.mxu0 %v2642
  %2781 = vmatprep.subr.bf16.mxu0 %v2645
  %2782 = vmatpush1.bf16.msra.mxu0 %v2644
  %2783 = vmatprep.subr.bf16.mxu0 %v2647
  %2784 = vmatpush1.bf16.msra.mxu0 %v2646
  %2785 = vmatprep.subr.bf16.mxu0 %v2649
  %2786 = vmatpush1.bf16.msra.mxu0 %v2648
  %2787 = vmatprep.subr.bf16.mxu0 %v2651
  %2788 = vmatpush1.bf16.msra.mxu0 %v2650
  %2789 = vmatprep.subr.bf16.mxu0 %v2653
  %2790 = vmatpush1.bf16.msra.mxu0 %v2652
  %2791 = vmatprep.subr.bf16.mxu0 %v2655
  %2792 = vmatpush1.bf16.msra.mxu0 %v2654
  %2793 = vmatprep.subr.bf16.mxu0 %v2657
  %2794 = vmatpush1.bf16.msra.mxu0 %v2656
  %2795 = vmatprep.subr.bf16.mxu0 %v2659
  %2796 = vmatpush1.bf16.msra.mxu0 %v2658
  %2797 = vmatprep.subr.bf16.mxu0 %v2661
  %2798 = vmatpush1.bf16.msra.mxu0 %v2660
  %2799 = vmatprep.subr.bf16.mxu0 %v2663
  %2800 = vmatpush1.bf16.msra.mxu0 %v2662
  %2801 = vmatprep.subr.bf16.mxu0 %v2665
  %2802 = vmatpush1.bf16.msra.mxu0 %v2664
  %2803 = vmatprep.subr.bf16.mxu0 %v2667
  %2804 = vmatpush1.bf16.msra.mxu0 %v2666
  %2805 = vmatprep.subr.bf16.mxu0 %v2669
  %2806 = vmatpush1.bf16.msra.mxu0 %v2668
  %2807 = vmatprep.mubr.bf16.mxu0 %v2401
  %2808 = vmatmul.mubr.bf16.gmra.mrb[0].mxu0 %v2400
  %v2809 = vpop.f32.mrb[0].mxu0
  %v2810 = vadd.f32 %v2769, %v2809
  %v2811 = vpop.f32.mrb[0].mxu0
  %v2812 = vadd.f32 %v2771, %v2811
  %v2813 = vpop.f32.mrb[0].mxu0
  %v2814 = vpop.f32.mrb[0].mxu0
  %2815 = vdwg.mxu0
  %v2816 = vmax.f32 %v2810, 0.0
  %v2817 = vmax.f32 %v2812, 0.0
  %v2818 = vsel %vm2188, %v2816, 0.0
  %v2819 = vrot.slane %v2818, 4
  %v2820 = vadd.f32 %v2818, %v2819
  %v2821 = vrot.slane %v2820, 2
  %v2822 = vadd.f32 %v2820, %v2821
  %v2823 = vrot.slane %v2822, 1
  %v2824 = vadd.f32 %v2822, %v2823
  %v2825 = vsel %vm2188, %v2817, 0.0
  %v2826 = vrot.slane %v2825, 4
  %v2827 = vadd.f32 %v2825, %v2826
  %v2828 = vrot.slane %v2827, 2
  %v2829 = vadd.f32 %v2827, %v2828
  %v2830 = vrot.slane %v2829, 1
  %v2831 = vadd.f32 %v2829, %v2830
  %v2832 = vmul.f32 %v2824, %v2217
  %v2833 = vmul.f32 %v2831, %v2217
  %v2834 = vmul.f32 %v2816, %v2816
  %v2835 = vmul.f32 %v2817, %v2817
  %v2836 = vsel %vm2188, %v2834, 0.0
  %v2837 = vrot.slane %v2836, 4
  %v2838 = vadd.f32 %v2836, %v2837
  %v2839 = vrot.slane %v2838, 2
  %v2840 = vadd.f32 %v2838, %v2839
  %v2841 = vrot.slane %v2840, 1
  %v2842 = vadd.f32 %v2840, %v2841
  %v2843 = vsel %vm2188, %v2835, 0.0
  %v2844 = vrot.slane %v2843, 4
  %v2845 = vadd.f32 %v2843, %v2844
  %v2846 = vrot.slane %v2845, 2
  %v2847 = vadd.f32 %v2845, %v2846
  %v2848 = vrot.slane %v2847, 1
  %v2849 = vadd.f32 %v2847, %v2848
  %v2850 = vmul.f32 %v2842, %v2217
  %v2851 = vmul.f32 %v2849, %v2217
  %v2852 = vmul.f32 %v2832, %v2832
  %v2853 = vmul.f32 %v2833, %v2833
  %v2854 = vsub.f32 %v2850, %v2852
  %v2855 = vsub.f32 %v2851, %v2853
  %v2856 = vsub.f32 %v2816, %v2832
  %v2857 = vsub.f32 %v2817, %v2833
  %v2858 = vadd.f32 %v2854, 1e-05
  %v2859 = vadd.f32 %v2855, 1e-05
  %v2860 = vrsqrt.pop %v2858
  %v2861 = vrsqrt.pop %v2859
  %v2862 = vmul.f32 %v2856, %v2860
  %v2863 = vmul.f32 %v2857, %v2861
  %v2864 = vld [vmem:[%s10] sm:$0x3]
  %v2866 = vlaneseq
  %v2867 = vshrl.u32 %v2866, 7
  %v2868 = vsub.s32 0, %v2867
  %v2869 = vrot.slane %v2864, %v2868
  %v2870 = vlaneseq
  %v2871 = vshrl.u32 %v2870, 7
  %v2872 = vsub.s32 1, %v2871
  %v2873 = vrot.slane %v2864, %v2872
  %v2876 = vmul.f32 %v2862, %v2869
  %v2877 = vmul.f32 %v2863, %v2873
  %v2878 = vld [vmem:[%s11] sm:$0x3]
  %v2880 = vlaneseq
  %v2881 = vshrl.u32 %v2880, 7
  %v2882 = vsub.s32 0, %v2881
  %v2883 = vrot.slane %v2878, %v2882
  %v2884 = vlaneseq
  %v2885 = vshrl.u32 %v2884, 7
  %v2886 = vsub.s32 1, %v2885
  %v2887 = vrot.slane %v2878, %v2886
  %v2890 = vadd.f32 %v2876, %v2883
  %v2891 = vadd.f32 %v2877, %v2887
  %v2892 = vld [vmem:[%s12] sm:$0xf]
  %v2893 = vld [vmem:[%s12 + $0x4] sm:$0xf]
  %v2894 = vld [vmem:[%s12 + $0x8] sm:$0xf]
  %v2895 = vld [vmem:[%s12 + $0xc] sm:$0xf]
  %v2896 = vld [vmem:[%s12 + $0x10] sm:$0xf]
  %v2897 = vld [vmem:[%s12 + $0x14] sm:$0xf]
  %v2898 = vld [vmem:[%s12 + $0x18] sm:$0xf]
  %v2899 = vld [vmem:[%s12 + $0x1c] sm:$0xf]
  %v2900 = vld [vmem:[%s12 + $0x20] sm:$0xf]
  %v2901 = vld [vmem:[%s12 + $0x24] sm:$0xf]
  %v2902 = vld [vmem:[%s12 + $0x28] sm:$0xf]
  %v2903 = vld [vmem:[%s12 + $0x2c] sm:$0xf]
  %v2904 = vld [vmem:[%s12 + $0x30] sm:$0xf]
  %v2905 = vld [vmem:[%s12 + $0x34] sm:$0xf]
  %v2906 = vld [vmem:[%s12 + $0x38] sm:$0xf]
  %v2907 = vld [vmem:[%s12 + $0x3c] sm:$0xf]
  %v2908 = vld [vmem:[%s12 + $0x40] sm:$0xf]
  %v2909 = vld [vmem:[%s12 + $0x44] sm:$0xf]
  %v2910 = vld [vmem:[%s12 + $0x48] sm:$0xf]
  %v2911 = vld [vmem:[%s12 + $0x4c] sm:$0xf]
  %v2912 = vld [vmem:[%s12 + $0x50] sm:$0xf]
  %v2913 = vld [vmem:[%s12 + $0x54] sm:$0xf]
  %v2914 = vld [vmem:[%s12 + $0x58] sm:$0xf]
  %v2915 = vld [vmem:[%s12 + $0x5c] sm:$0xf]
  %v2916 = vld [vmem:[%s12 + $0x60] sm:$0xf]
  %v2917 = vld [vmem:[%s12 + $0x64] sm:$0xf]
  %v2918 = vld [vmem:[%s12 + $0x68] sm:$0xf]
  %v2919 = vld [vmem:[%s12 + $0x6c] sm:$0xf]
  %v2920 = vld [vmem:[%s12 + $0x70] sm:$0xf]
  %v2921 = vld [vmem:[%s12 + $0x74] sm:$0xf]
  %v2922 = vld [vmem:[%s12 + $0x78] sm:$0xf]
  %v2923 = vld [vmem:[%s12 + $0x7c] sm:$0xf]
  %v2924 = vpack.c.bf16 %v2890, %v2890
  %v2925 = vpack.c.bf16 %v2891, %v2891
  %v2926 = vld [vmem:[%s13] sm:$0x1]
  %v2928 = vlaneseq
  %v2929 = vshrl.u32 %v2928, 7
  %v2930 = vsub.s32 0, %v2929
  %v2931 = vrot.slane %v2926, %v2930
  %v2965 = vunpack.c.l.b16 %v2892
  %v2966 = vunpack.c.l.b16 %v2893
  %v2967 = vunpack.c.l.b16 %v2894
  %v2968 = vunpack.c.l.b16 %v2895
  %v2969 = vunpack.c.l.b16 %v2896
  %v2970 = vunpack.c.l.b16 %v2897
  %v2971 = vunpack.c.l.b16 %v2898
  %v2972 = vunpack.c.l.b16 %v2899
  %v2973 = vunpack.c.l.b16 %v2900
  %v2974 = vunpack.c.l.b16 %v2901
  %v2975 = vunpack.c.l.b16 %v2902
  %v2976 = vunpack.c.l.b16 %v2903
  %v2977 = vunpack.c.l.b16 %v2904
  %v2978 = vunpack.c.l.b16 %v2905
  %v2979 = vunpack.c.l.b16 %v2906
  %v2980 = vunpack.c.l.b16 %v2907
  %v2981 = vunpack.c.l.b16 %v2908
  %v2982 = vunpack.c.l.b16 %v2909
  %v2983 = vunpack.c.l.b16 %v2910
  %v2984 = vunpack.c.l.b16 %v2911
  %v2985 = vunpack.c.l.b16 %v2912
  %v2986 = vunpack.c.l.b16 %v2913
  %v2987 = vunpack.c.l.b16 %v2914
  %v2988 = vunpack.c.l.b16 %v2915
  %v2989 = vunpack.c.l.b16 %v2916
  %v2990 = vunpack.c.l.b16 %v2917
  %v2991 = vunpack.c.l.b16 %v2918
  %v2992 = vunpack.c.l.b16 %v2919
  %v2993 = vunpack.c.l.b16 %v2920
  %v2994 = vunpack.c.l.b16 %v2921
  %v2995 = vunpack.c.l.b16 %v2922
  %v2996 = vunpack.c.l.b16 %v2923
  %v2997 = vpack.c.b16 %v2966, %v2965
  %v2998 = vpack.c.b16 %v2968, %v2967
  %v2999 = vpack.c.b16 %v2970, %v2969
  %v3000 = vpack.c.b16 %v2972, %v2971
  %v3001 = vpack.c.b16 %v2974, %v2973
  %v3002 = vpack.c.b16 %v2976, %v2975
  %v3003 = vpack.c.b16 %v2978, %v2977
  %v3004 = vpack.c.b16 %v2980, %v2979
  %v3005 = vpack.c.b16 %v2982, %v2981
  %v3006 = vpack.c.b16 %v2984, %v2983
  %v3007 = vpack.c.b16 %v2986, %v2985
  %v3008 = vpack.c.b16 %v2988, %v2987
  %v3009 = vpack.c.b16 %v2990, %v2989
  %v3010 = vpack.c.b16 %v2992, %v2991
  %v3011 = vpack.c.b16 %v2994, %v2993
  %v3012 = vpack.c.b16 %v2996, %v2995
  %3029 = vmatprep.subr.bf16.mxu0 0
  %3030 = vmatpush1.bf16.msra.mxu0 %v2997
  %3031 = vmatprep.subr.bf16.mxu0 0
  %3032 = vmatpush1.bf16.msra.mxu0 %v2998
  %3033 = vmatprep.subr.bf16.mxu0 0
  %3034 = vmatpush1.bf16.msra.mxu0 %v2999
  %3035 = vmatprep.subr.bf16.mxu0 0
  %3036 = vmatpush1.bf16.msra.mxu0 %v3000
  %3037 = vmatprep.subr.bf16.mxu0 0
  %3038 = vmatpush1.bf16.msra.mxu0 %v3001
  %3039 = vmatprep.subr.bf16.mxu0 0
  %3040 = vmatpush1.bf16.msra.mxu0 %v3002
  %3041 = vmatprep.subr.bf16.mxu0 0
  %3042 = vmatpush1.bf16.msra.mxu0 %v3003
  %3043 = vmatprep.subr.bf16.mxu0 0
  %3044 = vmatpush1.bf16.msra.mxu0 %v3004
  %3045 = vmatprep.subr.bf16.mxu0 0
  %3046 = vmatpush1.bf16.msra.mxu0 %v3005
  %3047 = vmatprep.subr.bf16.mxu0 0
  %3048 = vmatpush1.bf16.msra.mxu0 %v3006
  %3049 = vmatprep.subr.bf16.mxu0 0
  %3050 = vmatpush1.bf16.msra.mxu0 %v3007
  %3051 = vmatprep.subr.bf16.mxu0 0
  %3052 = vmatpush1.bf16.msra.mxu0 %v3008
  %3053 = vmatprep.subr.bf16.mxu0 0
  %3054 = vmatpush1.bf16.msra.mxu0 %v3009
  %3055 = vmatprep.subr.bf16.mxu0 0
  %3056 = vmatpush1.bf16.msra.mxu0 %v3010
  %3057 = vmatprep.subr.bf16.mxu0 0
  %3058 = vmatpush1.bf16.msra.mxu0 %v3011
  %3059 = vmatprep.subr.bf16.mxu0 0
  %3060 = vmatpush1.bf16.msra.mxu0 %v3012
  %3061 = vmatprep.mubr.bf16.mxu0 %v2925
  %3062 = vmatmul.mubr.bf16.gmra.mrb[0].mxu0 %v2924
  %v3063 = vpop.f32.mrb[0].mxu0
  %v3064 = vadd.f32 %v2931, %v3063
  %v3065 = vpop.f32.mrb[0].mxu0
  %v3066 = vpop.f32.mrb[0].mxu0
  %v3067 = vpop.f32.mrb[0].mxu0
  %3068 = vdwg.mxu0
  %3069 = vst [vmem:[%s14] sm:$0x3] %v3064
  // Predicated region
  $region58: #{tnet_forward.7} parent=0 // pred_check
    _
  $region59: #{tnet_forward.7} parent=0 // pred_check_branch
    %3071 = sbr.rel (0) target = $region61
  $region60: #{tnet_forward.7} parent=0 // pred_region
    _
  $region61: #{tnet_forward.7} parent=0 // pred_fallthru
    _
  // Predicated region
  $region62: #{tnet_forward.7} parent=0 // pred_check
    _
  $region63: #{tnet_forward.7} parent=0 // pred_check_branch
    %3073 = sbr.rel (0) target = $region65
  $region64: #{tnet_forward.7} parent=0 // pred_region
    _
  $region65: #{tnet_forward.7} parent=0 // pred_fallthru
    _

</llo_original>
